<compile_context>
chip_gen: v7x
topology: tpu7x:2x2x1
jax: 0.10.0
libtpu: 0.0.40
codegen_flags: <defaults>
</compile_context>

<pallas_src>
import jax
import jax.numpy as jnp
from jax.experimental import pallas as pl
from jax.experimental.pallas import tpu as pltpu

# ---------------- small config (consistent with the module's structure) -------------
BATCH = 2
SEQ = 8            # decoder seq == encoder seq (required by the reference cross-mask)
HIDDEN = 32
NUM_HEADS = 4
HEAD_DIM = HIDDEN // NUM_HEADS   # qkv_hidden_size; heads * qkv == hidden
NUM_LAYERS = 2
VOCAB = 50
POS_MAXLEN = HIDDEN              # maxlen == hidden so PE fills every column
LN_EPS = 1e-5
MASK_FILL = -1.0e9               # same value the reference uses for masked_fill

# MXU operand dtype (accumulation is always f32 via preferred_element_type).
# Flip to jnp.bfloat16 at real sizes (weights are stored in this dtype too, halving
# their DMA/VMEM footprint); kept float32 at toy size -- see header comment.
MATMUL_DTYPE = jnp.float32


# ------------------------------- Pallas kernel --------------------------------------
def decoder_layer_kernel(emb_ref, pe_ref, enc_ref, encmask_ref,
                         wq1_ref, wk1_ref, wv1_ref, wo1_ref,
                         wq2_ref, wk2_ref, wv2_ref, wo2_ref,
                         w1_ref, b1_ref, w2_ref, b2_ref,
                         gamma_ref, beta_ref,
                         out_ref,
                         x_scr):
    # grid = (batch, layer): batch is "parallel" (megacore), layer is "arbitrary"
    # (weights streamed layer-by-layer, activation carried in x_scr).
    l = pl.program_id(1)
    S, H = out_ref.shape
    nh = wq1_ref.shape[0]

    @pl.when(l == 0)
    def _init():
        # Fused embedding + positional-encoding add (emb/pe blocks stay VMEM-resident
        # across the layer axis, so this costs no extra DMA).
        x_scr[...] = emb_ref[...] + pe_ref[...]

    x = x_scr[...]                 # (S, H) activation carried across layer steps
    enc = enc_ref[...]             # (S, H) encoder output for this batch

    # Hoisted per-layer-step broadcasts (JAX does not CSE broadcast_in_dim).
    gamma = jnp.broadcast_to(gamma_ref[...], (S, H))
    beta = jnp.broadcast_to(beta_ref[...], (S, H))

    # Masks built in-kernel (VPU iota/compare filler -- no (BS, C) bias DMAs).
    qi = jax.lax.broadcasted_iota(jnp.int32, (S, S), 0)
    ki = jax.lax.broadcasted_iota(jnp.int32, (S, S), 1)
    causal_mask = (ki > qi)[None, :, :]                      # (1,S,S) True = masked
    cross_mask = (encmask_ref[...] != 0.0)[None, :, :]       # (1,S,1): masks whole query rows

    def mm(a, b):
        return jnp.dot(a.astype(MATMUL_DTYPE), b.astype(MATMUL_DTYPE),
                       preferred_element_type=jnp.float32)

    def bmm(subs, a, b):  # batch-leading batched matmul on the MXU, f32 accumulation
        return jnp.einsum(subs, a.astype(MATMUL_DTYPE), b.astype(MATMUL_DTYPE),
                          preferred_element_type=jnp.float32)

    def layernorm(y):
        mu = jnp.mean(y, axis=-1, keepdims=True)
        d = y - mu
        var = jnp.mean(d * d, axis=-1, keepdims=True)
        return d * jax.lax.rsqrt(var + LN_EPS) * gamma + beta   # rsqrt -> EUP slot

    def mha(q_h, kv_h, wq, wk, wv, wo, mask):
        # q_h / kv_h: (nh, S, H) head-broadcast activations; wq/wk/wv: (nh, H, dh);
        # wo: (nh, dh, H).  Every contraction is a clean batch-leading dot_general --
        # no one-hot head expansion, no per-head Python loop, no in-kernel reshapes.
        qh = bmm('hqk,hkd->hqd', q_h, wq)          # (nh, S, dh)
        kh = bmm('hqk,hkd->hqd', kv_h, wk)
        vh = bmm('hqk,hkd->hqd', kv_h, wv)
        s = bmm('hqd,hkd->hqk', qh, kh)            # (nh, S, S); NO 1/sqrt(dk) (per reference)
        s = jnp.where(mask, MASK_FILL, s)          # exact masked_fill semantics
        m = jnp.max(s, axis=-1, keepdims=True)
        e = jnp.exp(s - m)
        den = jnp.sum(e, axis=-1, keepdims=True)   # plain row reduction (no gsum matmul)
        w = e * pl.reciprocal(den, approx=True)    # EUP slot
        av = bmm('hqk,hkd->hqd', w, vh)            # (nh, S, dh)
        # combine heads + output projection: batched (dh x H) then sum over heads
        return jnp.sum(bmm('hqd,hdo->hqo', av, wo), axis=0)     # (S, H)

    enc_h = jnp.broadcast_to(enc[None], (nh, S, H))

    # --- masked self-attention + residual + LN ---
    x_h = jnp.broadcast_to(x[None], (nh, S, H))
    h1 = layernorm(x + mha(x_h, x_h, wq1_ref[...], wk1_ref[...], wv1_ref[...],
                           wo1_ref[...], causal_mask))
    # --- encoder-decoder cross attention + residual + LN ---
    h1_h = jnp.broadcast_to(h1[None], (nh, S, H))
    h2 = layernorm(h1 + mha(h1_h, enc_h, wq2_ref[...], wk2_ref[...], wv2_ref[...],
                            wo2_ref[...], cross_mask))
    # --- feed-forward + residual + LN ---
    ff = jnp.maximum(mm(h2, w1_ref[...]) + b1_ref[...], 0.0)
    ff = mm(ff, w2_ref[...]) + b2_ref[...]
    x_new = layernorm(h2 + ff)

    x_scr[...] = x_new
    # TODO(synk): H=32 output is not 128-lane dense (masked vst); pad H to a multiple
    # of 128 (and keep the 4H FFN width a multiple of 128) when scaling the model.
    out_ref[...] = x_new


# ------------------------------- plain-JAX glue --------------------------------------
def pos_encoding(seq_len, hidden, maxlen):
    i = jnp.arange(maxlen // 2, dtype=jnp.float32)
    denom = jnp.power(10000.0, 2.0 * i / float(hidden))
    pos = jnp.arange(seq_len, dtype=jnp.float32)[:, None]
    angle = pos / denom[None, :]
    pe = jnp.zeros((seq_len, hidden), jnp.float32)
    pe = pe.at[:, 0::2].set(jnp.sin(angle))
    pe = pe.at[:, 1::2].set(jnp.cos(angle))
    return pe


def init_layer_params(key, H):
    ks = jax.random.split(key, 10)
    s = 1.0 / jnp.sqrt(jnp.float32(H))
    s4 = 1.0 / jnp.sqrt(jnp.float32(4 * H))
    return {
        'wq1': jax.random.normal(ks[0], (H, H), jnp.float32) * s,
        'wk1': jax.random.normal(ks[1], (H, H), jnp.float32) * s,
        'wv1': jax.random.normal(ks[2], (H, H), jnp.float32) * s,
        'wo1': jax.random.normal(ks[3], (H, H), jnp.float32) * s,
        'wq2': jax.random.normal(ks[4], (H, H), jnp.float32) * s,
        'wk2': jax.random.normal(ks[5], (H, H), jnp.float32) * s,
        'wv2': jax.random.normal(ks[6], (H, H), jnp.float32) * s,
        'wo2': jax.random.normal(ks[7], (H, H), jnp.float32) * s,
        'w1': jax.random.normal(ks[8], (H, 4 * H), jnp.float32) * s,
        'b1': jnp.zeros((1, 4 * H), jnp.float32),
        'w2': jax.random.normal(ks[9], (4 * H, H), jnp.float32) * s4,
        'b2': jnp.zeros((1, H), jnp.float32),
        'gamma': jnp.ones((1, H), jnp.float32),   # nn.LayerNorm defaults
        'beta': jnp.zeros((1, H), jnp.float32),
    }


@jax.jit
def transformer_decoder_pallas(input_ids, enc_output, enc_attention_mask,
                               embed_table, layer_params):
    B, S = input_ids.shape
    H = embed_table.shape[1]
    nh, dh, L = NUM_HEADS, HEAD_DIM, NUM_LAYERS
    assert enc_output.shape == (B, S, H), "reference cross-mask requires S_dec == S_enc"

    # TODO(synk): the embedding gather (jnp.take) stays in XLA glue (data-dependent
    # row gather, not a tile pattern); the embedding+PE *add* is fused into the kernel.
    emb = jnp.take(embed_table, input_ids, axis=0)                       # (B, S, H)
    pe = pos_encoding(S, H, POS_MAXLEN)                                  # (S, H), passed once
    encmask = enc_attention_mask.astype(jnp.float32).reshape(B, S, 1)    # row mask per query

    # Pre-reshape projection weights so the kernel only sees batch-leading matmuls.
    def split_qkv(w):  # (H, H) -> (nh, H, dh): head h owns output cols [h*dh:(h+1)*dh]
        return w.reshape(H, nh, dh).transpose(1, 0, 2)

    def split_out(w):  # (H, H) -> (nh, dh, H): head h owns input rows [h*dh:(h+1)*dh]
        return w.reshape(nh, dh, H)

    def stack(fn, key):
        return jnp.stack([fn(p[key]) for p in layer_params]).astype(MATMUL_DTYPE)

    wq1 = stack(split_qkv, 'wq1'); wk1 = stack(split_qkv, 'wk1')
    wv1 = stack(split_qkv, 'wv1'); wo1 = stack(split_out, 'wo1')
    wq2 = stack(split_qkv, 'wq2'); wk2 = stack(split_qkv, 'wk2')
    wv2 = stack(split_qkv, 'wv2'); wo2 = stack(split_out, 'wo2')
    w1 = stack(lambda w: w, 'w1'); w2 = stack(lambda w: w, 'w2')
    b1 = jnp.stack([p['b1'] for p in layer_params])
    b2 = jnp.stack([p['b2'] for p in layer_params])
    gamma = jnp.stack([p['gamma'] for p in layer_params])
    beta = jnp.stack([p['beta'] for p in layer_params])

    def wspec(*shape):  # per-layer weight block, streamed (double-buffered) over l
        zeros = (0,) * len(shape)
        return pl.BlockSpec((None,) + tuple(shape), lambda b, l: (l,) + zeros)

    in_specs = [
        pl.BlockSpec((None, S, H), lambda b, l: (b, 0, 0)),    # emb (per batch)
        pl.BlockSpec((S, H), lambda b, l: (0, 0)),             # pe  (shared, resident)
        pl.BlockSpec((None, S, H), lambda b, l: (b, 0, 0)),    # enc output (per batch)
        pl.BlockSpec((None, S, 1), lambda b, l: (b, 0, 0)),    # enc row mask (per batch)
        wspec(nh, H, dh), wspec(nh, H, dh), wspec(nh, H, dh), wspec(nh, dh, H),  # self-attn
        wspec(nh, H, dh), wspec(nh, H, dh), wspec(nh, H, dh), wspec(nh, dh, H),  # cross-attn
        wspec(H, 4 * H), wspec(1, 4 * H), wspec(4 * H, H), wspec(1, H),          # FFN
        wspec(1, H), wspec(1, H),                                                # LN gamma/beta
    ]
    out_specs = pl.BlockSpec((None, S, H), lambda b, l: (b, 0, 0))

    out = pl.pallas_call(
        decoder_layer_kernel,
        out_shape=jax.ShapeDtypeStruct((B, S, H), jnp.float32),
        grid_spec=pltpu.PrefetchScalarGridSpec(
            num_scalar_prefetch=0,
            grid=(B, L),                                   # batch x layer
            in_specs=in_specs,
            out_specs=out_specs,
            scratch_shapes=[pltpu.VMEM((S, H), jnp.float32)],  # activation carry
        ),
        compiler_params=pltpu.CompilerParams(
            dimension_semantics=("parallel", "arbitrary")),    # megacore over batch
    )(emb, pe, enc_output, encmask,
      wq1, wk1, wv1, wo1, wq2, wk2, wv2, wo2,
      w1, b1, w2, b2, gamma, beta)
    return out


# ------------------------------- pure-JAX reference ----------------------------------
def _ref_layer(x, enc, enc_mask, p):
    def ln(y):
        mu = jnp.mean(y, axis=-1, keepdims=True)
        var = jnp.mean((y - mu) ** 2, axis=-1, keepdims=True)
        return (y - mu) / jnp.sqrt(var + LN_EPS) * p['gamma'] + p['beta']

    def split(t):
        b, s, h = t.shape
        return t.reshape(b, s, NUM_HEADS, h // NUM_HEADS).transpose(0, 2, 1, 3)

    def mha(q_in, kv_in, wq, wk, wv, wo, mask_bqk):
        qh, kh, vh = split(q_in @ wq), split(kv_in @ wk), split(kv_in @ wv)
        sc = jnp.einsum('bhqd,bhkd->bhqk', qh, kh)
        sc = jnp.where(mask_bqk[:, None, :, :], MASK_FILL, sc)
        w = jax.nn.softmax(sc, axis=-1)
        o = jnp.einsum('bhqk,bhkd->bhqd', w, vh)
        o = o.transpose(0, 2, 1, 3).reshape(q_in.shape[0], q_in.shape[1], -1)
        return o @ wo

    B, S, H = x.shape
    Se = enc.shape[1]
    row = jnp.arange(S)[:, None]
    col = jnp.arange(S)[None, :]
    causal = jnp.broadcast_to((col > row)[None], (B, S, S))
    h1 = ln(x + mha(x, x, p['wq1'], p['wk1'], p['wv1'], p['wo1'], causal))
    cmask = jnp.broadcast_to((enc_mask != 0.0)[:, :, None], (B, S, Se))
    h2 = ln(h1 + mha(h1, enc, p['wq2'], p['wk2'], p['wv2'], p['wo2'], cmask))
    ff = jnp.maximum(h2 @ p['w1'] + p['b1'], 0.0) @ p['w2'] + p['b2']
    return ln(h2 + ff)


def _ref_decoder(input_ids, enc_output, enc_mask, embed_table, layer_params):
    x = jnp.take(embed_table, input_ids, axis=0)
    x = x + pos_encoding(x.shape[1], x.shape[2], POS_MAXLEN)
    for p in layer_params:
        x = _ref_layer(x, enc_output, enc_mask, p)
    return x


# -------------------------------------- main -----------------------------------------
if __name__ == "__main__":
    key = jax.random.PRNGKey(0)
    k_ids, k_enc, k_mask, k_emb, k_layers = jax.random.split(key, 5)

    dec_input_ids = jax.random.randint(k_ids, (BATCH, SEQ), 0, VOCAB)
    enc_output = jax.random.normal(k_enc, (BATCH, SEQ, HIDDEN), jnp.float32)
    enc_attention_mask = jax.random.randint(
        k_mask, (BATCH, SEQ), 0, 2).astype(jnp.float32)
    embed_table = jax.random.normal(k_emb, (VOCAB, HIDDEN), jnp.float32) * 0.05

    layer_keys = jax.random.split(k_layers, NUM_LAYERS)
    layer_params = [init_layer_params(lk, HIDDEN) for lk in layer_keys]

    out = transformer_decoder_pallas(dec_input_ids, enc_output, enc_attention_mask,
                                     embed_table, layer_params)
    out = jax.block_until_ready(out)

    ref = _ref_decoder(dec_input_ids, enc_output, enc_attention_mask,
                       embed_table, layer_params)
    ref = jax.block_until_ready(ref)

    tol = 1e-2 if MATMUL_DTYPE == jnp.float32 else 1e-1  # bf16 operands need headroom
    max_err = float(jnp.max(jnp.abs(out - ref)))
    assert out.shape == (BATCH, SEQ, HIDDEN)
    assert max_err < tol, f"mismatch vs pure-JAX reference: {max_err}"
    print("KERNEL_OK")
</pallas_src>

<mosaic_0001>
module attributes {stable_mosaic.version = 11 : i64} {
  func.func @decoder_layer_kernel(%arg0: i32, %arg1: i32, %arg2: memref<1x8x32xf32, #tpu.memory_space<vmem>>, %arg3: memref<8x32xf32, #tpu.memory_space<vmem>>, %arg4: memref<1x8x32xf32, #tpu.memory_space<vmem>>, %arg5: memref<1x8x1xf32, #tpu.memory_space<vmem>>, %arg6: memref<1x4x32x8xf32, #tpu.memory_space<vmem>>, %arg7: memref<1x4x32x8xf32, #tpu.memory_space<vmem>>, %arg8: memref<1x4x32x8xf32, #tpu.memory_space<vmem>>, %arg9: memref<1x4x8x32xf32, #tpu.memory_space<vmem>>, %arg10: memref<1x4x32x8xf32, #tpu.memory_space<vmem>>, %arg11: memref<1x4x32x8xf32, #tpu.memory_space<vmem>>, %arg12: memref<1x4x32x8xf32, #tpu.memory_space<vmem>>, %arg13: memref<1x4x8x32xf32, #tpu.memory_space<vmem>>, %arg14: memref<1x32x128xf32, #tpu.memory_space<vmem>>, %arg15: memref<1x1x128xf32, #tpu.memory_space<vmem>>, %arg16: memref<1x128x32xf32, #tpu.memory_space<vmem>>, %arg17: memref<1x1x32xf32, #tpu.memory_space<vmem>>, %arg18: memref<1x1x32xf32, #tpu.memory_space<vmem>>, %arg19: memref<1x1x32xf32, #tpu.memory_space<vmem>>, %arg20: memref<1x8x32xf32, #tpu.memory_space<vmem>>, %arg21: memref<8x32xf32, #tpu.memory_space<vmem>>) attributes {dimension_semantics = [#tpu.dimension_semantics<parallel>, #tpu.dimension_semantics<arbitrary>], iteration_bounds = array<i64: 2, 2>, scalar_prefetch = 0 : i64, scratch_operands = 1 : i64, tpu.core_type = #tpu.core_type<tc>, window_params = [{transform_indices = @transform_0, window_bounds = array<i64: 1, 8, 32>}, {pipeline_mode = #tpu.pipeline_mode<synchronous>, transform_indices = @transform_1, window_bounds = array<i64: 8, 32>}, {transform_indices = @transform_2, window_bounds = array<i64: 1, 8, 32>}, {transform_indices = @transform_3, window_bounds = array<i64: 1, 8, 1>}, {transform_indices = @transform_4, window_bounds = array<i64: 1, 4, 32, 8>}, {transform_indices = @transform_5, window_bounds = array<i64: 1, 4, 32, 8>}, {transform_indices = @transform_6, window_bounds = array<i64: 1, 4, 32, 8>}, {transform_indices = @transform_7, window_bounds = array<i64: 1, 4, 8, 32>}, {transform_indices = @transform_8, window_bounds = array<i64: 1, 4, 32, 8>}, {transform_indices = @transform_9, window_bounds = array<i64: 1, 4, 32, 8>}, {transform_indices = @transform_10, window_bounds = array<i64: 1, 4, 32, 8>}, {transform_indices = @transform_11, window_bounds = array<i64: 1, 4, 8, 32>}, {transform_indices = @transform_12, window_bounds = array<i64: 1, 32, 128>}, {transform_indices = @transform_13, window_bounds = array<i64: 1, 1, 128>}, {transform_indices = @transform_14, window_bounds = array<i64: 1, 128, 32>}, {transform_indices = @transform_15, window_bounds = array<i64: 1, 1, 32>}, {transform_indices = @transform_16, window_bounds = array<i64: 1, 1, 32>}, {transform_indices = @transform_17, window_bounds = array<i64: 1, 1, 32>}, {transform_indices = @transform_18, window_bounds = array<i64: 1, 8, 32>}]} {
    %c0_i32 = arith.constant 0 : i32
    %0 = arith.cmpi eq, %arg1, %c0_i32 : i32
    %1 = arith.extui %0 : i1 to i32
    %c0_i32_0 = arith.constant 0 : i32
    %2 = arith.cmpi ne, %1, %c0_i32_0 : i32
    scf.if %2 {
      %c0_101 = arith.constant 0 : index
      %c0_102 = arith.constant 0 : index
      %c0_103 = arith.constant 0 : index
      %167 = vector.load %arg2[%c0_101, %c0_102, %c0_103] : memref<1x8x32xf32, #tpu.memory_space<vmem>>, vector<1x8x32xf32>
      %168 = vector.shape_cast %167 : vector<1x8x32xf32> to vector<8x32xf32>
      %c0_104 = arith.constant 0 : index
      %c0_105 = arith.constant 0 : index
      %169 = vector.load %arg3[%c0_104, %c0_105] : memref<8x32xf32, #tpu.memory_space<vmem>>, vector<8x32xf32>
      %170 = arith.addf %168, %169 : vector<8x32xf32>
      %c0_106 = arith.constant 0 : index
      %c0_107 = arith.constant 0 : index
      %171 = vector.load %arg21[%c0_106, %c0_107] : memref<8x32xf32, #tpu.memory_space<vmem>>, vector<8x32xf32>
      tpu.vector_store %arg21[%c0_106, %c0_107], %170 {strides = array<i32>} : memref<8x32xf32, #tpu.memory_space<vmem>>, vector<8x32xf32>,
    } else {
    }
    %c0 = arith.constant 0 : index
    %c0_1 = arith.constant 0 : index
    %3 = vector.load %arg21[%c0, %c0_1] : memref<8x32xf32, #tpu.memory_space<vmem>>, vector<8x32xf32>
    %c0_2 = arith.constant 0 : index
    %c0_3 = arith.constant 0 : index
    %c0_4 = arith.constant 0 : index
    %4 = vector.load %arg4[%c0_2, %c0_3, %c0_4] : memref<1x8x32xf32, #tpu.memory_space<vmem>>, vector<1x8x32xf32>
    %5 = vector.shape_cast %4 : vector<1x8x32xf32> to vector<8x32xf32>
    %c0_5 = arith.constant 0 : index
    %c0_6 = arith.constant 0 : index
    %c0_7 = arith.constant 0 : index
    %6 = vector.load %arg18[%c0_5, %c0_6, %c0_7] : memref<1x1x32xf32, #tpu.memory_space<vmem>>, vector<1x1x32xf32>
    %7 = vector.shape_cast %6 : vector<1x1x32xf32> to vector<1x32xf32>
    %8 = vector.shape_cast %7 : vector<1x32xf32> to vector<1x32xf32>
    %9 = vector.broadcast %8 : vector<1x32xf32> to vector<8x32xf32>
    %c0_8 = arith.constant 0 : index
    %c0_9 = arith.constant 0 : index
    %c0_10 = arith.constant 0 : index
    %10 = vector.load %arg19[%c0_8, %c0_9, %c0_10] : memref<1x1x32xf32, #tpu.memory_space<vmem>>, vector<1x1x32xf32>
    %11 = vector.shape_cast %10 : vector<1x1x32xf32> to vector<1x32xf32>
    %12 = vector.shape_cast %11 : vector<1x32xf32> to vector<1x32xf32>
    %13 = vector.broadcast %12 : vector<1x32xf32> to vector<8x32xf32>
    %14 = tpu.iota {dimensions = array<i32: 0>} : vector<8x8xi32>
    %15 = tpu.iota {dimensions = array<i32: 1>} : vector<8x8xi32>
    %16 = arith.cmpi sgt, %15, %14 : vector<8x8xi32>
    %17 = vector.shape_cast %16 : vector<8x8xi1> to vector<1x8x8xi1>
    %c0_11 = arith.constant 0 : index
    %c0_12 = arith.constant 0 : index
    %c0_13 = arith.constant 0 : index
    %18 = vector.load %arg5[%c0_11, %c0_12, %c0_13] : memref<1x8x1xf32, #tpu.memory_space<vmem>>, vector<1x8x1xf32>
    %19 = vector.shape_cast %18 : vector<1x8x1xf32> to vector<8x1xf32>
    %cst = arith.constant 0.000000e+00 : f32
    %20 = vector.broadcast %cst : f32 to vector<8x1xf32>
    %21 = arith.cmpf one, %19, %20 : vector<8x1xf32>
    %22 = vector.shape_cast %21 : vector<8x1xi1> to vector<1x8x1xi1>
    %23 = vector.shape_cast %5 : vector<8x32xf32> to vector<1x8x32xf32>
    %24 = vector.shape_cast %23 : vector<1x8x32xf32> to vector<1x8x32xf32>
    %25 = vector.broadcast %24 : vector<1x8x32xf32> to vector<4x8x32xf32>
    %26 = vector.shape_cast %3 : vector<8x32xf32> to vector<1x8x32xf32>
    %27 = vector.shape_cast %26 : vector<1x8x32xf32> to vector<1x8x32xf32>
    %28 = vector.broadcast %27 : vector<1x8x32xf32> to vector<4x8x32xf32>
    %c0_14 = arith.constant 0 : index
    %c0_15 = arith.constant 0 : index
    %c0_16 = arith.constant 0 : index
    %c0_17 = arith.constant 0 : index
    %29 = vector.load %arg6[%c0_14, %c0_15, %c0_16, %c0_17] : memref<1x4x32x8xf32, #tpu.memory_space<vmem>>, vector<1x4x32x8xf32>
    %30 = vector.shape_cast %29 : vector<1x4x32x8xf32> to vector<4x32x8xf32>
    %c0_18 = arith.constant 0 : index
    %c0_19 = arith.constant 0 : index
    %c0_20 = arith.constant 0 : index
    %c0_21 = arith.constant 0 : index
    %31 = vector.load %arg7[%c0_18, %c0_19, %c0_20, %c0_21] : memref<1x4x32x8xf32, #tpu.memory_space<vmem>>, vector<1x4x32x8xf32>
    %32 = vector.shape_cast %31 : vector<1x4x32x8xf32> to vector<4x32x8xf32>
    %c0_22 = arith.constant 0 : index
    %c0_23 = arith.constant 0 : index
    %c0_24 = arith.constant 0 : index
    %c0_25 = arith.constant 0 : index
    %33 = vector.load %arg8[%c0_22, %c0_23, %c0_24, %c0_25] : memref<1x4x32x8xf32, #tpu.memory_space<vmem>>, vector<1x4x32x8xf32>
    %34 = vector.shape_cast %33 : vector<1x4x32x8xf32> to vector<4x32x8xf32>
    %c0_26 = arith.constant 0 : index
    %c0_27 = arith.constant 0 : index
    %c0_28 = arith.constant 0 : index
    %c0_29 = arith.constant 0 : index
    %35 = vector.load %arg9[%c0_26, %c0_27, %c0_28, %c0_29] : memref<1x4x8x32xf32, #tpu.memory_space<vmem>>, vector<1x4x8x32xf32>
    %36 = vector.shape_cast %35 : vector<1x4x8x32xf32> to vector<4x8x32xf32>
    "tpu.trace_start"() <{level = 10 : i32, message = "hqk,hkd->hqd"}> : () -> ()
    %cst_30 = arith.constant dense<0.000000e+00> : vector<4x8x8xf32>
    %37 = tpu.matmul %28, %30, %cst_30 {dimension_numbers = #tpu.dot_dimension_numbers<[2], [1], [1], [2], [0, 0, 0, 1, 1, 2], [0], [0]>} : vector<4x8x32xf32>, vector<4x32x8xf32>, vector<4x8x8xf32> -> vector<4x8x8xf32>
    %cst_31 = arith.constant dense<0.000000e+00> : vector<4x8x8xf32>
    %38 = tpu.matmul %28, %32, %cst_31 {dimension_numbers = #tpu.dot_dimension_numbers<[2], [1], [1], [2], [0, 0, 0, 1, 1, 2], [0], [0]>} : vector<4x8x32xf32>, vector<4x32x8xf32>, vector<4x8x8xf32> -> vector<4x8x8xf32>
    %cst_32 = arith.constant dense<0.000000e+00> : vector<4x8x8xf32>
    %39 = tpu.matmul %28, %34, %cst_32 {dimension_numbers = #tpu.dot_dimension_numbers<[2], [1], [1], [2], [0, 0, 0, 1, 1, 2], [0], [0]>} : vector<4x8x32xf32>, vector<4x32x8xf32>, vector<4x8x8xf32> -> vector<4x8x8xf32>
    "tpu.trace_stop"() : () -> ()
    "tpu.trace_start"() <{level = 10 : i32, message = "hqd,hkd->hqk"}> : () -> ()
    %cst_33 = arith.constant dense<0.000000e+00> : vector<4x8x8xf32>
    %40 = tpu.matmul %37, %38, %cst_33 {dimension_numbers = #tpu.dot_dimension_numbers<[2], [2], [1], [1], [0, 0, 0, 1, 1, 1], [0], [0]>} : vector<4x8x8xf32>, vector<4x8x8xf32>, vector<4x8x8xf32> -> vector<4x8x8xf32>
    %cst_34 = arith.constant -1.000000e+09 : f32
    "tpu.trace_stop"() : () -> ()
    %41 = vector.shape_cast %17 : vector<1x8x8xi1> to vector<1x8x8xi1>
    %42 = vector.broadcast %41 : vector<1x8x8xi1> to vector<4x8x8xi1>
    %43 = vector.broadcast %cst_34 : f32 to vector<4x8x8xf32>
    %44 = arith.select %42, %43, %40 : vector<4x8x8xi1>, vector<4x8x8xf32>
    %cst_35 = arith.constant dense<0xFF800000> : vector<4x8xf32>
    %45 = vector.multi_reduction <maximumf>, %44, %cst_35 [2] : vector<4x8x8xf32> to vector<4x8xf32>
    %46 = vector.shape_cast %45 : vector<4x8xf32> to vector<4x8x1xf32>
    %47 = vector.broadcast %46 : vector<4x8x1xf32> to vector<4x8x8xf32>
    %48 = arith.subf %44, %47 : vector<4x8x8xf32>
    %49 = math.exp %48 : vector<4x8x8xf32>
    %cst_36 = arith.constant dense<0.000000e+00> : vector<4x8xf32>
    %50 = vector.multi_reduction <add>, %49, %cst_36 [2] : vector<4x8x8xf32> to vector<4x8xf32>
    %51 = vector.shape_cast %50 : vector<4x8xf32> to vector<4x8x1xf32>
    %52 = tpu.reciprocal %51 {approx = true} : vector<4x8x1xf32> -> vector<4x8x1xf32>
    %53 = vector.broadcast %52 : vector<4x8x1xf32> to vector<4x8x8xf32>
    %54 = arith.mulf %49, %53 : vector<4x8x8xf32>
    "tpu.trace_start"() <{level = 10 : i32, message = "hqk,hkd->hqd"}> : () -> ()
    %cst_37 = arith.constant dense<0.000000e+00> : vector<4x8x8xf32>
    %55 = tpu.matmul %54, %39, %cst_37 {dimension_numbers = #tpu.dot_dimension_numbers<[2], [1], [1], [2], [0, 0, 0, 1, 1, 2], [0], [0]>} : vector<4x8x8xf32>, vector<4x8x8xf32>, vector<4x8x8xf32> -> vector<4x8x8xf32>
    "tpu.trace_stop"() : () -> ()
    "tpu.trace_start"() <{level = 10 : i32, message = "hqd,hdo->hqo"}> : () -> ()
    %cst_38 = arith.constant dense<0.000000e+00> : vector<4x8x32xf32>
    %56 = tpu.matmul %55, %36, %cst_38 {dimension_numbers = #tpu.dot_dimension_numbers<[2], [1], [1], [2], [0, 0, 0, 1, 1, 2], [0], [0]>} : vector<4x8x8xf32>, vector<4x8x32xf32>, vector<4x8x32xf32> -> vector<4x8x32xf32>
    "tpu.trace_stop"() : () -> ()
    %cst_39 = arith.constant dense<0.000000e+00> : vector<8x32xf32>
    %57 = vector.multi_reduction <add>, %56, %cst_39 [0] : vector<4x8x32xf32> to vector<8x32xf32>
    %58 = arith.addf %3, %57 : vector<8x32xf32>
    %cst_40 = arith.constant dense<0.000000e+00> : vector<8xf32>
    %59 = vector.multi_reduction <add>, %58, %cst_40 [1] : vector<8x32xf32> to vector<8xf32>
    %60 = vector.shape_cast %59 : vector<8xf32> to vector<8x1xf32>
    %cst_41 = arith.constant 3.200000e+01 : f32
    %61 = vector.broadcast %cst_41 : f32 to vector<8x1xf32>
    %62 = arith.divf %60, %61 : vector<8x1xf32>
    %63 = vector.broadcast %62 : vector<8x1xf32> to vector<8x32xf32>
    %64 = arith.subf %58, %63 : vector<8x32xf32>
    %65 = arith.mulf %64, %64 : vector<8x32xf32>
    %cst_42 = arith.constant dense<0.000000e+00> : vector<8xf32>
    %66 = vector.multi_reduction <add>, %65, %cst_42 [1] : vector<8x32xf32> to vector<8xf32>
    %67 = vector.shape_cast %66 : vector<8xf32> to vector<8x1xf32>
    %cst_43 = arith.constant 3.200000e+01 : f32
    %68 = vector.broadcast %cst_43 : f32 to vector<8x1xf32>
    %69 = arith.divf %67, %68 : vector<8x1xf32>
    %cst_44 = arith.constant 9.99999974E-6 : f32
    %70 = vector.broadcast %cst_44 : f32 to vector<8x1xf32>
    %71 = arith.addf %69, %70 : vector<8x1xf32>
    %72 = math.rsqrt %71 : vector<8x1xf32>
    %73 = vector.broadcast %72 : vector<8x1xf32> to vector<8x32xf32>
    %74 = arith.mulf %64, %73 : vector<8x32xf32>
    %75 = arith.mulf %74, %9 : vector<8x32xf32>
    %76 = arith.addf %75, %13 : vector<8x32xf32>
    %77 = vector.shape_cast %76 : vector<8x32xf32> to vector<1x8x32xf32>
    %78 = vector.shape_cast %77 : vector<1x8x32xf32> to vector<1x8x32xf32>
    %79 = vector.broadcast %78 : vector<1x8x32xf32> to vector<4x8x32xf32>
    %c0_45 = arith.constant 0 : index
    %c0_46 = arith.constant 0 : index
    %c0_47 = arith.constant 0 : index
    %c0_48 = arith.constant 0 : index
    %80 = vector.load %arg10[%c0_45, %c0_46, %c0_47, %c0_48] : memref<1x4x32x8xf32, #tpu.memory_space<vmem>>, vector<1x4x32x8xf32>
    %81 = vector.shape_cast %80 : vector<1x4x32x8xf32> to vector<4x32x8xf32>
    %c0_49 = arith.constant 0 : index
    %c0_50 = arith.constant 0 : index
    %c0_51 = arith.constant 0 : index
    %c0_52 = arith.constant 0 : index
    %82 = vector.load %arg11[%c0_49, %c0_50, %c0_51, %c0_52] : memref<1x4x32x8xf32, #tpu.memory_space<vmem>>, vector<1x4x32x8xf32>
    %83 = vector.shape_cast %82 : vector<1x4x32x8xf32> to vector<4x32x8xf32>
    %c0_53 = arith.constant 0 : index
    %c0_54 = arith.constant 0 : index
    %c0_55 = arith.constant 0 : index
    %c0_56 = arith.constant 0 : index
    %84 = vector.load %arg12[%c0_53, %c0_54, %c0_55, %c0_56] : memref<1x4x32x8xf32, #tpu.memory_space<vmem>>, vector<1x4x32x8xf32>
    %85 = vector.shape_cast %84 : vector<1x4x32x8xf32> to vector<4x32x8xf32>
    %c0_57 = arith.constant 0 : index
    %c0_58 = arith.constant 0 : index
    %c0_59 = arith.constant 0 : index
    %c0_60 = arith.constant 0 : index
    %86 = vector.load %arg13[%c0_57, %c0_58, %c0_59, %c0_60] : memref<1x4x8x32xf32, #tpu.memory_space<vmem>>, vector<1x4x8x32xf32>
    %87 = vector.shape_cast %86 : vector<1x4x8x32xf32> to vector<4x8x32xf32>
    "tpu.trace_start"() <{level = 10 : i32, message = "hqk,hkd->hqd"}> : () -> ()
    %cst_61 = arith.constant dense<0.000000e+00> : vector<4x8x8xf32>
    %88 = tpu.matmul %79, %81, %cst_61 {dimension_numbers = #tpu.dot_dimension_numbers<[2], [1], [1], [2], [0, 0, 0, 1, 1, 2], [0], [0]>} : vector<4x8x32xf32>, vector<4x32x8xf32>, vector<4x8x8xf32> -> vector<4x8x8xf32>
    %cst_62 = arith.constant dense<0.000000e+00> : vector<4x8x8xf32>
    %89 = tpu.matmul %25, %83, %cst_62 {dimension_numbers = #tpu.dot_dimension_numbers<[2], [1], [1], [2], [0, 0, 0, 1, 1, 2], [0], [0]>} : vector<4x8x32xf32>, vector<4x32x8xf32>, vector<4x8x8xf32> -> vector<4x8x8xf32>
    %cst_63 = arith.constant dense<0.000000e+00> : vector<4x8x8xf32>
    %90 = tpu.matmul %25, %85, %cst_63 {dimension_numbers = #tpu.dot_dimension_numbers<[2], [1], [1], [2], [0, 0, 0, 1, 1, 2], [0], [0]>} : vector<4x8x32xf32>, vector<4x32x8xf32>, vector<4x8x8xf32> -> vector<4x8x8xf32>
    "tpu.trace_stop"() : () -> ()
    "tpu.trace_start"() <{level = 10 : i32, message = "hqd,hkd->hqk"}> : () -> ()
    %cst_64 = arith.constant dense<0.000000e+00> : vector<4x8x8xf32>
    %91 = tpu.matmul %88, %89, %cst_64 {dimension_numbers = #tpu.dot_dimension_numbers<[2], [2], [1], [1], [0, 0, 0, 1, 1, 1], [0], [0]>} : vector<4x8x8xf32>, vector<4x8x8xf32>, vector<4x8x8xf32> -> vector<4x8x8xf32>
    %cst_65 = arith.constant -1.000000e+09 : f32
    "tpu.trace_stop"() : () -> ()
    %92 = vector.shape_cast %22 : vector<1x8x1xi1> to vector<1x8x1xi1>
    %93 = vector.broadcast %92 : vector<1x8x1xi1> to vector<4x8x8xi1>
    %94 = vector.broadcast %cst_65 : f32 to vector<4x8x8xf32>
    %95 = arith.select %93, %94, %91 : vector<4x8x8xi1>, vector<4x8x8xf32>
    %cst_66 = arith.constant dense<0xFF800000> : vector<4x8xf32>
    %96 = vector.multi_reduction <maximumf>, %95, %cst_66 [2] : vector<4x8x8xf32> to vector<4x8xf32>
    %97 = vector.shape_cast %96 : vector<4x8xf32> to vector<4x8x1xf32>
    %98 = vector.broadcast %97 : vector<4x8x1xf32> to vector<4x8x8xf32>
    %99 = arith.subf %95, %98 : vector<4x8x8xf32>
    %100 = math.exp %99 : vector<4x8x8xf32>
    %cst_67 = arith.constant dense<0.000000e+00> : vector<4x8xf32>
    %101 = vector.multi_reduction <add>, %100, %cst_67 [2] : vector<4x8x8xf32> to vector<4x8xf32>
    %102 = vector.shape_cast %101 : vector<4x8xf32> to vector<4x8x1xf32>
    %103 = tpu.reciprocal %102 {approx = true} : vector<4x8x1xf32> -> vector<4x8x1xf32>
    %104 = vector.broadcast %103 : vector<4x8x1xf32> to vector<4x8x8xf32>
    %105 = arith.mulf %100, %104 : vector<4x8x8xf32>
    "tpu.trace_start"() <{level = 10 : i32, message = "hqk,hkd->hqd"}> : () -> ()
    %cst_68 = arith.constant dense<0.000000e+00> : vector<4x8x8xf32>
    %106 = tpu.matmul %105, %90, %cst_68 {dimension_numbers = #tpu.dot_dimension_numbers<[2], [1], [1], [2], [0, 0, 0, 1, 1, 2], [0], [0]>} : vector<4x8x8xf32>, vector<4x8x8xf32>, vector<4x8x8xf32> -> vector<4x8x8xf32>
    "tpu.trace_stop"() : () -> ()
    "tpu.trace_start"() <{level = 10 : i32, message = "hqd,hdo->hqo"}> : () -> ()
    %cst_69 = arith.constant dense<0.000000e+00> : vector<4x8x32xf32>
    %107 = tpu.matmul %106, %87, %cst_69 {dimension_numbers = #tpu.dot_dimension_numbers<[2], [1], [1], [2], [0, 0, 0, 1, 1, 2], [0], [0]>} : vector<4x8x8xf32>, vector<4x8x32xf32>, vector<4x8x32xf32> -> vector<4x8x32xf32>
    "tpu.trace_stop"() : () -> ()
    %cst_70 = arith.constant dense<0.000000e+00> : vector<8x32xf32>
    %108 = vector.multi_reduction <add>, %107, %cst_70 [0] : vector<4x8x32xf32> to vector<8x32xf32>
    %109 = arith.addf %76, %108 : vector<8x32xf32>
    %cst_71 = arith.constant dense<0.000000e+00> : vector<8xf32>
    %110 = vector.multi_reduction <add>, %109, %cst_71 [1] : vector<8x32xf32> to vector<8xf32>
    %111 = vector.shape_cast %110 : vector<8xf32> to vector<8x1xf32>
    %cst_72 = arith.constant 3.200000e+01 : f32
    %112 = vector.broadcast %cst_72 : f32 to vector<8x1xf32>
    %113 = arith.divf %111, %112 : vector<8x1xf32>
    %114 = vector.broadcast %113 : vector<8x1xf32> to vector<8x32xf32>
    %115 = arith.subf %109, %114 : vector<8x32xf32>
    %116 = arith.mulf %115, %115 : vector<8x32xf32>
    %cst_73 = arith.constant dense<0.000000e+00> : vector<8xf32>
    %117 = vector.multi_reduction <add>, %116, %cst_73 [1] : vector<8x32xf32> to vector<8xf32>
    %118 = vector.shape_cast %117 : vector<8xf32> to vector<8x1xf32>
    %cst_74 = arith.constant 3.200000e+01 : f32
    %119 = vector.broadcast %cst_74 : f32 to vector<8x1xf32>
    %120 = arith.divf %118, %119 : vector<8x1xf32>
    %cst_75 = arith.constant 9.99999974E-6 : f32
    %121 = vector.broadcast %cst_75 : f32 to vector<8x1xf32>
    %122 = arith.addf %120, %121 : vector<8x1xf32>
    %123 = math.rsqrt %122 : vector<8x1xf32>
    %124 = vector.broadcast %123 : vector<8x1xf32> to vector<8x32xf32>
    %125 = arith.mulf %115, %124 : vector<8x32xf32>
    %126 = arith.mulf %125, %9 : vector<8x32xf32>
    %127 = arith.addf %126, %13 : vector<8x32xf32>
    %c0_76 = arith.constant 0 : index
    %c0_77 = arith.constant 0 : index
    %c0_78 = arith.constant 0 : index
    %128 = vector.load %arg14[%c0_76, %c0_77, %c0_78] : memref<1x32x128xf32, #tpu.memory_space<vmem>>, vector<1x32x128xf32>
    %129 = vector.shape_cast %128 : vector<1x32x128xf32> to vector<32x128xf32>
    %cst_79 = arith.constant dense<0.000000e+00> : vector<8x128xf32>
    %130 = tpu.matmul %127, %129, %cst_79 {dimension_numbers = #tpu.dot_dimension_numbers<[1], [0], [0], [1], [0, 0, 1, 1], [], []>} : vector<8x32xf32>, vector<32x128xf32>, vector<8x128xf32> -> vector<8x128xf32>
    %c0_80 = arith.constant 0 : index
    %c0_81 = arith.constant 0 : index
    %c0_82 = arith.constant 0 : index
    %131 = vector.load %arg15[%c0_80, %c0_81, %c0_82] : memref<1x1x128xf32, #tpu.memory_space<vmem>>, vector<1x1x128xf32>
    %132 = vector.shape_cast %131 : vector<1x1x128xf32> to vector<1x128xf32>
    %133 = vector.broadcast %132 : vector<1x128xf32> to vector<8x128xf32>
    %134 = arith.addf %130, %133 : vector<8x128xf32>
    %cst_83 = arith.constant 0.000000e+00 : f32
    %135 = vector.broadcast %cst_83 : f32 to vector<8x128xf32>
    %136 = arith.maximumf %134, %135 : vector<8x128xf32>
    %c0_84 = arith.constant 0 : index
    %c0_85 = arith.constant 0 : index
    %c0_86 = arith.constant 0 : index
    %137 = vector.load %arg16[%c0_84, %c0_85, %c0_86] : memref<1x128x32xf32, #tpu.memory_space<vmem>>, vector<1x128x32xf32>
    %138 = vector.shape_cast %137 : vector<1x128x32xf32> to vector<128x32xf32>
    %cst_87 = arith.constant dense<0.000000e+00> : vector<8x32xf32>
    %139 = tpu.matmul %136, %138, %cst_87 {dimension_numbers = #tpu.dot_dimension_numbers<[1], [0], [0], [1], [0, 0, 1, 1], [], []>} : vector<8x128xf32>, vector<128x32xf32>, vector<8x32xf32> -> vector<8x32xf32>
    %c0_88 = arith.constant 0 : index
    %c0_89 = arith.constant 0 : index
    %c0_90 = arith.constant 0 : index
    %140 = vector.load %arg17[%c0_88, %c0_89, %c0_90] : memref<1x1x32xf32, #tpu.memory_space<vmem>>, vector<1x1x32xf32>
    %141 = vector.shape_cast %140 : vector<1x1x32xf32> to vector<1x32xf32>
    %142 = vector.broadcast %141 : vector<1x32xf32> to vector<8x32xf32>
    %143 = arith.addf %139, %142 : vector<8x32xf32>
    %144 = arith.addf %127, %143 : vector<8x32xf32>
    %cst_91 = arith.constant dense<0.000000e+00> : vector<8xf32>
    %145 = vector.multi_reduction <add>, %144, %cst_91 [1] : vector<8x32xf32> to vector<8xf32>
    %146 = vector.shape_cast %145 : vector<8xf32> to vector<8x1xf32>
    %cst_92 = arith.constant 3.200000e+01 : f32
    %147 = vector.broadcast %cst_92 : f32 to vector<8x1xf32>
    %148 = arith.divf %146, %147 : vector<8x1xf32>
    %149 = vector.broadcast %148 : vector<8x1xf32> to vector<8x32xf32>
    %150 = arith.subf %144, %149 : vector<8x32xf32>
    %151 = arith.mulf %150, %150 : vector<8x32xf32>
    %cst_93 = arith.constant dense<0.000000e+00> : vector<8xf32>
    %152 = vector.multi_reduction <add>, %151, %cst_93 [1] : vector<8x32xf32> to vector<8xf32>
    %153 = vector.shape_cast %152 : vector<8xf32> to vector<8x1xf32>
    %cst_94 = arith.constant 3.200000e+01 : f32
    %154 = vector.broadcast %cst_94 : f32 to vector<8x1xf32>
    %155 = arith.divf %153, %154 : vector<8x1xf32>
    %cst_95 = arith.constant 9.99999974E-6 : f32
    %156 = vector.broadcast %cst_95 : f32 to vector<8x1xf32>
    %157 = arith.addf %155, %156 : vector<8x1xf32>
    %158 = math.rsqrt %157 : vector<8x1xf32>
    %159 = vector.broadcast %158 : vector<8x1xf32> to vector<8x32xf32>
    %160 = arith.mulf %150, %159 : vector<8x32xf32>
    %161 = arith.mulf %160, %9 : vector<8x32xf32>
    %162 = arith.addf %161, %13 : vector<8x32xf32>
    %c0_96 = arith.constant 0 : index
    %c0_97 = arith.constant 0 : index
    %163 = vector.load %arg21[%c0_96, %c0_97] : memref<8x32xf32, #tpu.memory_space<vmem>>, vector<8x32xf32>
    tpu.vector_store %arg21[%c0_96, %c0_97], %162 {strides = array<i32>} : memref<8x32xf32, #tpu.memory_space<vmem>>, vector<8x32xf32>,
    %c0_98 = arith.constant 0 : index
    %c0_99 = arith.constant 0 : index
    %c0_100 = arith.constant 0 : index
    %164 = vector.load %arg20[%c0_98, %c0_99, %c0_100] : memref<1x8x32xf32, #tpu.memory_space<vmem>>, vector<1x8x32xf32>
    %165 = vector.shape_cast %164 : vector<1x8x32xf32> to vector<8x32xf32>
    %166 = vector.shape_cast %162 : vector<8x32xf32> to vector<1x8x32xf32>
    tpu.vector_store %arg20[%c0_98, %c0_99, %c0_100], %166 {strides = array<i32>} : memref<1x8x32xf32, #tpu.memory_space<vmem>>, vector<1x8x32xf32>,
    return
  }
  func.func @transform_0(%arg0: i32, %arg1: i32) -> (i32, i32, i32) {
    %c0_i32 = arith.constant 0 : i32
    %c0_i32_0 = arith.constant 0 : i32
    %c0_i32_1 = arith.constant 0 : i32
    return %arg0, %c0_i32, %c0_i32_0 : i32, i32, i32
  }
  func.func @transform_1(%arg0: i32, %arg1: i32) -> (i32, i32) {
    %c0_i32 = arith.constant 0 : i32
    %c0_i32_0 = arith.constant 0 : i32
    %c0_i32_1 = arith.constant 0 : i32
    return %c0_i32, %c0_i32_0 : i32, i32
  }
  func.func @transform_2(%arg0: i32, %arg1: i32) -> (i32, i32, i32) {
    %c0_i32 = arith.constant 0 : i32
    %c0_i32_0 = arith.constant 0 : i32
    %c0_i32_1 = arith.constant 0 : i32
    return %arg0, %c0_i32, %c0_i32_0 : i32, i32, i32
  }
  func.func @transform_3(%arg0: i32, %arg1: i32) -> (i32, i32, i32) {
    %c0_i32 = arith.constant 0 : i32
    %c0_i32_0 = arith.constant 0 : i32
    %c0_i32_1 = arith.constant 0 : i32
    return %arg0, %c0_i32, %c0_i32_0 : i32, i32, i32
  }
  func.func @transform_4(%arg0: i32, %arg1: i32) -> (i32, i32, i32, i32) {
    %c0_i32 = arith.constant 0 : i32
    %c0_i32_0 = arith.constant 0 : i32
    %c0_i32_1 = arith.constant 0 : i32
    %c0_i32_2 = arith.constant 0 : i32
    return %arg1, %c0_i32, %c0_i32_0, %c0_i32_1 : i32, i32, i32, i32
  }
  func.func @transform_5(%arg0: i32, %arg1: i32) -> (i32, i32, i32, i32) {
    %c0_i32 = arith.constant 0 : i32
    %c0_i32_0 = arith.constant 0 : i32
    %c0_i32_1 = arith.constant 0 : i32
    %c0_i32_2 = arith.constant 0 : i32
    return %arg1, %c0_i32, %c0_i32_0, %c0_i32_1 : i32, i32, i32, i32
  }
  func.func @transform_6(%arg0: i32, %arg1: i32) -> (i32, i32, i32, i32) {
    %c0_i32 = arith.constant 0 : i32
    %c0_i32_0 = arith.constant 0 : i32
    %c0_i32_1 = arith.constant 0 : i32
    %c0_i32_2 = arith.constant 0 : i32
    return %arg1, %c0_i32, %c0_i32_0, %c0_i32_1 : i32, i32, i32, i32
  }
  func.func @transform_7(%arg0: i32, %arg1: i32) -> (i32, i32, i32, i32) {
    %c0_i32 = arith.constant 0 : i32
    %c0_i32_0 = arith.constant 0 : i32
    %c0_i32_1 = arith.constant 0 : i32
    %c0_i32_2 = arith.constant 0 : i32
    return %arg1, %c0_i32, %c0_i32_0, %c0_i32_1 : i32, i32, i32, i32
  }
  func.func @transform_8(%arg0: i32, %arg1: i32) -> (i32, i32, i32, i32) {
    %c0_i32 = arith.constant 0 : i32
    %c0_i32_0 = arith.constant 0 : i32
    %c0_i32_1 = arith.constant 0 : i32
    %c0_i32_2 = arith.constant 0 : i32
    return %arg1, %c0_i32, %c0_i32_0, %c0_i32_1 : i32, i32, i32, i32
  }
  func.func @transform_9(%arg0: i32, %arg1: i32) -> (i32, i32, i32, i32) {
    %c0_i32 = arith.constant 0 : i32
    %c0_i32_0 = arith.constant 0 : i32
    %c0_i32_1 = arith.constant 0 : i32
    %c0_i32_2 = arith.constant 0 : i32
    return %arg1, %c0_i32, %c0_i32_0, %c0_i32_1 : i32, i32, i32, i32
  }
  func.func @transform_10(%arg0: i32, %arg1: i32) -> (i32, i32, i32, i32) {
    %c0_i32 = arith.constant 0 : i32
    %c0_i32_0 = arith.constant 0 : i32
    %c0_i32_1 = arith.constant 0 : i32
    %c0_i32_2 = arith.constant 0 : i32
    return %arg1, %c0_i32, %c0_i32_0, %c0_i32_1 : i32, i32, i32, i32
  }
  func.func @transform_11(%arg0: i32, %arg1: i32) -> (i32, i32, i32, i32) {
    %c0_i32 = arith.constant 0 : i32
    %c0_i32_0 = arith.constant 0 : i32
    %c0_i32_1 = arith.constant 0 : i32
    %c0_i32_2 = arith.constant 0 : i32
    return %arg1, %c0_i32, %c0_i32_0, %c0_i32_1 : i32, i32, i32, i32
  }
  func.func @transform_12(%arg0: i32, %arg1: i32) -> (i32, i32, i32) {
    %c0_i32 = arith.constant 0 : i32
    %c0_i32_0 = arith.constant 0 : i32
    %c0_i32_1 = arith.constant 0 : i32
    return %arg1, %c0_i32, %c0_i32_0 : i32, i32, i32
  }
  func.func @transform_13(%arg0: i32, %arg1: i32) -> (i32, i32, i32) {
    %c0_i32 = arith.constant 0 : i32
    %c0_i32_0 = arith.constant 0 : i32
    %c0_i32_1 = arith.constant 0 : i32
    return %arg1, %c0_i32, %c0_i32_0 : i32, i32, i32
  }
  func.func @transform_14(%arg0: i32, %arg1: i32) -> (i32, i32, i32) {
    %c0_i32 = arith.constant 0 : i32
    %c0_i32_0 = arith.constant 0 : i32
    %c0_i32_1 = arith.constant 0 : i32
    return %arg1, %c0_i32, %c0_i32_0 : i32, i32, i32
  }
  func.func @transform_15(%arg0: i32, %arg1: i32) -> (i32, i32, i32) {
    %c0_i32 = arith.constant 0 : i32
    %c0_i32_0 = arith.constant 0 : i32
    %c0_i32_1 = arith.constant 0 : i32
    return %arg1, %c0_i32, %c0_i32_0 : i32, i32, i32
  }
  func.func @transform_16(%arg0: i32, %arg1: i32) -> (i32, i32, i32) {
    %c0_i32 = arith.constant 0 : i32
    %c0_i32_0 = arith.constant 0 : i32
    %c0_i32_1 = arith.constant 0 : i32
    return %arg1, %c0_i32, %c0_i32_0 : i32, i32, i32
  }
  func.func @transform_17(%arg0: i32, %arg1: i32) -> (i32, i32, i32) {
    %c0_i32 = arith.constant 0 : i32
    %c0_i32_0 = arith.constant 0 : i32
    %c0_i32_1 = arith.constant 0 : i32
    return %arg1, %c0_i32, %c0_i32_0 : i32, i32, i32
  }
  func.func @transform_18(%arg0: i32, %arg1: i32) -> (i32, i32, i32) {
    %c0_i32 = arith.constant 0 : i32
    %c0_i32_0 = arith.constant 0 : i32
    %c0_i32_1 = arith.constant 0 : i32
    return %arg0, %c0_i32, %c0_i32_0 : i32, i32, i32
  }
}

</mosaic_0001>

<llo_original>
// kernel: transformer_decoder_pallas.1
$region0: #{transformer_decoder_pallas.1}
  #allocation0 [shape = 'u32[]', space=smem, size = 0x4, offset = 0x4, fixed_abs, tag = 'smem constant byte address 0x4 - core index']
  #allocation1 [shape = 'u32[144,128]{1,0:T(1,128)}', space=vmem, size = 0x12000, scoped, tag = 'internal scratch']
  #allocation2 [shape = 'f32[8,32]{1,0:T(8,128)}', space=vmem, size = 0x1000, scoped, tag = 'scratch operand']
  %s0 = inlined_call_operand.vmem [shape: f32[2,8,32], index: 0, kind: input, shape index: {}]
  %s1 = inlined_call_operand.vmem [shape: f32[8,32], index: 1, kind: input, shape index: {}]
  %s2 = inlined_call_operand.vmem [shape: f32[2,8,32], index: 2, kind: input, shape index: {}]
  %s3 = inlined_call_operand.vmem [shape: f32[2,8,1], index: 3, kind: input, shape index: {}]
  %s4 = inlined_call_operand.vmem [shape: f32[2,4,32,8], index: 4, kind: input, shape index: {}]
  %s5 = inlined_call_operand.vmem [shape: f32[2,4,32,8], index: 5, kind: input, shape index: {}]
  %s6 = inlined_call_operand.vmem [shape: f32[2,4,32,8], index: 6, kind: input, shape index: {}]
  %s7 = inlined_call_operand.vmem [shape: f32[2,4,8,32], index: 7, kind: input, shape index: {}]
  %s8 = inlined_call_operand.vmem [shape: f32[2,4,32,8], index: 8, kind: input, shape index: {}]
  %s9 = inlined_call_operand.vmem [shape: f32[2,4,32,8], index: 9, kind: input, shape index: {}]
  %s10 = inlined_call_operand.vmem [shape: f32[2,4,32,8], index: 10, kind: input, shape index: {}]
  %s11 = inlined_call_operand.vmem [shape: f32[2,4,8,32], index: 11, kind: input, shape index: {}]
  %s12 = inlined_call_operand.vmem [shape: f32[2,32,128], index: 12, kind: input, shape index: {}]
  %s13 = inlined_call_operand.vmem [shape: f32[2,1,128], index: 13, kind: input, shape index: {}]
  %s14 = inlined_call_operand.vmem [shape: f32[2,128,32], index: 14, kind: input, shape index: {}]
  %s15 = inlined_call_operand.vmem [shape: f32[2,1,32], index: 15, kind: input, shape index: {}]
  %s16 = inlined_call_operand.vmem [shape: f32[2,1,32], index: 16, kind: input, shape index: {}]
  %s17 = inlined_call_operand.vmem [shape: f32[2,1,32], index: 17, kind: input, shape index: {}]
  %s18 = inlined_call_operand.hbm [shape: f32[2,8,32], index: 18, kind: output, shape index: {}]
  %s19 = sld [smem:[#allocation0]]
  $region109: #{transformer_decoder_pallas.1} parent=0
    _
  %s21 = ssub.s32 1, %s19
  %s22 = scalar_select 0, %s21, %s19
  $region1: #{transformer_decoder_pallas.1} parent=0
    #allocation3 [shape = 'u8[8192]{0}', space=vmem, size = 0x2000, scoped, tag = 'output window, operand 0']
    #allocation4 [shape = 's32[2]{0}', space=sflag, size = 0x8, scoped, tag = 'scoped memory for transformer_decoder_pallas.1']
    %23 = vsyncpa [#allocation4], 0
    %s24 = scalar_lea.sflag [#allocation4], 1
    %25 = vsyncpa %s24, 0
    loop: start=0, step=1, limit=6
    $region2: #{transformer_decoder_pallas.1} parent=1 // loop_pre_header
      _
    $region3: #{transformer_decoder_pallas.1} parent=1 // loop_header
      %s27 = sphi 0, %s31
      %p28 = scmp.ge.s32.totalorder %s27, 6
      %s34 = sphi 0, %s46
      %s35 = sphi 0, %s42
      %s36 = sphi 0, %s34
      %s37 = sphi 0, %s35
      %s38 = sphi 0, %s36
      %s39 = sphi 0, %s37
      %s49 = sphi 0, %s51
      %s52 = sphi 0, %s49
      %s53 = sphi 0, %s52
      %s69 = sphi 0, %s53
      %s73 = sphi 0, %s73
      %s75 = sphi 0, %s73
      %s76 = sphi 0, %s75
      %s90 = sphi 0, %s76
      %s96 = sphi 0, %s98
      %s99 = sphi 0, %s96
      %s100 = sphi 0, %s99
      %s116 = sphi 0, %s100
      %s122 = sphi 0, %s124
      %s125 = sphi 0, %s122
      %s126 = sphi 0, %s125
      %s142 = sphi 0, %s126
      %s148 = sphi 0, %s150
      %s151 = sphi 0, %s148
      %s152 = sphi 0, %s151
      %s168 = sphi 0, %s152
      %s174 = sphi 0, %s176
      %s177 = sphi 0, %s174
      %s178 = sphi 0, %s177
      %s194 = sphi 0, %s178
      %s200 = sphi 0, %s202
      %s203 = sphi 0, %s200
      %s204 = sphi 0, %s203
      %s220 = sphi 0, %s204
      %s226 = sphi 0, %s228
      %s229 = sphi 0, %s226
      %s230 = sphi 0, %s229
      %s246 = sphi 0, %s230
      %s252 = sphi 0, %s254
      %s255 = sphi 0, %s252
      %s256 = sphi 0, %s255
      %s272 = sphi 0, %s256
      %s278 = sphi 0, %s280
      %s281 = sphi 0, %s278
      %s282 = sphi 0, %s281
      %s298 = sphi 0, %s282
      %s304 = sphi 0, %s306
      %s307 = sphi 0, %s304
      %s308 = sphi 0, %s307
      %s324 = sphi 0, %s308
      %s330 = sphi 0, %s332
      %s333 = sphi 0, %s330
      %s334 = sphi 0, %s333
      %s350 = sphi 0, %s334
      %s356 = sphi 0, %s358
      %s359 = sphi 0, %s356
      %s360 = sphi 0, %s359
      %s376 = sphi 0, %s360
      %s382 = sphi 0, %s384
      %s385 = sphi 0, %s382
      %s386 = sphi 0, %s385
      %s402 = sphi 0, %s386
      %s408 = sphi 0, %s410
      %s411 = sphi 0, %s408
      %s412 = sphi 0, %s411
      %s428 = sphi 0, %s412
      %s434 = sphi 0, %s436
      %s437 = sphi 0, %s434
      %s438 = sphi 0, %s437
      %s454 = sphi 0, %s438
      %s460 = sphi 0, %s462
      %s463 = sphi 0, %s460
      %s464 = sphi 0, %s463
      %s480 = sphi 0, %s464
      %s486 = sphi 0, %s488
      %s489 = sphi 0, %s486
      %s490 = sphi 0, %s489
      %s506 = sphi 0, %s490
      %s512 = sphi 0, %s514
      %s515 = sphi 0, %s512
      %s516 = sphi 0, %s515
      %s532 = sphi 0, %s516
    $region4: #{transformer_decoder_pallas.1} parent=1 // loop_header_branch
      %30 = sbr.rel (%p28) target = $region8
    $region5: #{transformer_decoder_pallas.1} parent=1 // loop_body
      %s32 = ssub.s32 %s27, 1
      %s33 = ssub.s32 %s27, 2
      %s40 = sadd.s32 1, %s35
      %p41 = scmp.ge.s32.totalorder %s40, 2
      %s42 = scalar_select %p41, 0, %s40
      %s43 = sadd.s32 1, %s34
      %s44 = scalar_select %p41, %s43, %s34
      %p45 = scmp.ge.s32.totalorder %s44, 2
      %s46 = scalar_select %p45, 0, %s44
      %s47 = ssub.s32 %s34, %s46
      %p48 = scmp.eq.s32.totalorder %s47, 0
      %s50 = sadd.s32 %s49, 1
      %s51 = scalar_select %p48, %s49, %s50
      %p54 = pneg %p48
      %p55 = scmp.eq.s32.totalorder %s27, 3
      %p56 = por %p54, %p55
      %p57 = scmp.ne.s32.totalorder %s49, %s52
      %p58 = scmp.eq.s32.totalorder %s27, 0
      %p59 = por %p57, %p58
      %p60 = scmp.ne.s32.totalorder %s49, %s52
      %p61 = scmp.eq.s32.totalorder %s32, 3
      %p62 = por %p60, %p61
      %p63 = scmp.ne.s32.totalorder %s52, %s53
      %p64 = scmp.eq.s32.totalorder %s32, 0
      %p65 = por %p63, %p64
      %p66 = scmp.ne.s32.totalorder %s52, %s53
      %p67 = scmp.eq.s32.totalorder %s33, 3
      %p68 = por %p66, %p67
      %p70 = scmp.ne.s32.totalorder %s53, %s69
      %p71 = scmp.eq.s32.totalorder %s33, 0
      %p72 = por %p70, %p71
      %s74 = sadd.s32 %s73, 1
      %p77 = scmp.eq.s32.totalorder %s27, 3
      %p78 = scmp.ne.s32.totalorder %s73, %s75
      %p79 = scmp.eq.s32.totalorder %s27, 0
      %p80 = por %p78, %p79
      %p81 = scmp.ne.s32.totalorder %s73, %s75
      %p82 = scmp.eq.s32.totalorder %s32, 3
      %p83 = por %p81, %p82
      %p84 = scmp.ne.s32.totalorder %s75, %s76
      %p85 = scmp.eq.s32.totalorder %s32, 0
      %p86 = por %p84, %p85
      %p87 = scmp.ne.s32.totalorder %s75, %s76
      %p88 = scmp.eq.s32.totalorder %s33, 3
      %p89 = por %p87, %p88
      %p91 = scmp.ne.s32.totalorder %s76, %s90
      %p92 = scmp.eq.s32.totalorder %s33, 0
      %p93 = por %p91, %p92
      %s94 = ssub.s32 %s34, %s46
      %p95 = scmp.eq.s32.totalorder %s94, 0
      %s97 = sadd.s32 %s96, 1
      %s98 = scalar_select %p95, %s96, %s97
      %p101 = pneg %p95
      %p102 = scmp.eq.s32.totalorder %s27, 3
      %p103 = por %p101, %p102
      %p104 = scmp.ne.s32.totalorder %s96, %s99
      %p105 = scmp.eq.s32.totalorder %s27, 0
      %p106 = por %p104, %p105
      %p107 = scmp.ne.s32.totalorder %s96, %s99
      %p108 = scmp.eq.s32.totalorder %s32, 3
      %p109 = por %p107, %p108
      %p110 = scmp.ne.s32.totalorder %s99, %s100
      %p111 = scmp.eq.s32.totalorder %s32, 0
      %p112 = por %p110, %p111
      %p113 = scmp.ne.s32.totalorder %s99, %s100
      %p114 = scmp.eq.s32.totalorder %s33, 3
      %p115 = por %p113, %p114
      %p117 = scmp.ne.s32.totalorder %s100, %s116
      %p118 = scmp.eq.s32.totalorder %s33, 0
      %p119 = por %p117, %p118
      %s120 = ssub.s32 %s34, %s46
      %p121 = scmp.eq.s32.totalorder %s120, 0
      %s123 = sadd.s32 %s122, 1
      %s124 = scalar_select %p121, %s122, %s123
      %p127 = pneg %p121
      %p128 = scmp.eq.s32.totalorder %s27, 3
      %p129 = por %p127, %p128
      %p130 = scmp.ne.s32.totalorder %s122, %s125
      %p131 = scmp.eq.s32.totalorder %s27, 0
      %p132 = por %p130, %p131
      %p133 = scmp.ne.s32.totalorder %s122, %s125
      %p134 = scmp.eq.s32.totalorder %s32, 3
      %p135 = por %p133, %p134
      %p136 = scmp.ne.s32.totalorder %s125, %s126
      %p137 = scmp.eq.s32.totalorder %s32, 0
      %p138 = por %p136, %p137
      %p139 = scmp.ne.s32.totalorder %s125, %s126
      %p140 = scmp.eq.s32.totalorder %s33, 3
      %p141 = por %p139, %p140
      %p143 = scmp.ne.s32.totalorder %s126, %s142
      %p144 = scmp.eq.s32.totalorder %s33, 0
      %p145 = por %p143, %p144
      %s146 = ssub.s32 %s35, %s42
      %p147 = scmp.eq.s32.totalorder %s146, 0
      %s149 = sadd.s32 %s148, 1
      %s150 = scalar_select %p147, %s148, %s149
      %p153 = pneg %p147
      %p154 = scmp.eq.s32.totalorder %s27, 3
      %p155 = por %p153, %p154
      %p156 = scmp.ne.s32.totalorder %s148, %s151
      %p157 = scmp.eq.s32.totalorder %s27, 0
      %p158 = por %p156, %p157
      %p159 = scmp.ne.s32.totalorder %s148, %s151
      %p160 = scmp.eq.s32.totalorder %s32, 3
      %p161 = por %p159, %p160
      %p162 = scmp.ne.s32.totalorder %s151, %s152
      %p163 = scmp.eq.s32.totalorder %s32, 0
      %p164 = por %p162, %p163
      %p165 = scmp.ne.s32.totalorder %s151, %s152
      %p166 = scmp.eq.s32.totalorder %s33, 3
      %p167 = por %p165, %p166
      %p169 = scmp.ne.s32.totalorder %s152, %s168
      %p170 = scmp.eq.s32.totalorder %s33, 0
      %p171 = por %p169, %p170
      %s172 = ssub.s32 %s35, %s42
      %p173 = scmp.eq.s32.totalorder %s172, 0
      %s175 = sadd.s32 %s174, 1
      %s176 = scalar_select %p173, %s174, %s175
      %p179 = pneg %p173
      %p180 = scmp.eq.s32.totalorder %s27, 3
      %p181 = por %p179, %p180
      %p182 = scmp.ne.s32.totalorder %s174, %s177
      %p183 = scmp.eq.s32.totalorder %s27, 0
      %p184 = por %p182, %p183
      %p185 = scmp.ne.s32.totalorder %s174, %s177
      %p186 = scmp.eq.s32.totalorder %s32, 3
      %p187 = por %p185, %p186
      %p188 = scmp.ne.s32.totalorder %s177, %s178
      %p189 = scmp.eq.s32.totalorder %s32, 0
      %p190 = por %p188, %p189
      %p191 = scmp.ne.s32.totalorder %s177, %s178
      %p192 = scmp.eq.s32.totalorder %s33, 3
      %p193 = por %p191, %p192
      %p195 = scmp.ne.s32.totalorder %s178, %s194
      %p196 = scmp.eq.s32.totalorder %s33, 0
      %p197 = por %p195, %p196
      %s198 = ssub.s32 %s35, %s42
      %p199 = scmp.eq.s32.totalorder %s198, 0
      %s201 = sadd.s32 %s200, 1
      %s202 = scalar_select %p199, %s200, %s201
      %p205 = pneg %p199
      %p206 = scmp.eq.s32.totalorder %s27, 3
      %p207 = por %p205, %p206
      %p208 = scmp.ne.s32.totalorder %s200, %s203
      %p209 = scmp.eq.s32.totalorder %s27, 0
      %p210 = por %p208, %p209
      %p211 = scmp.ne.s32.totalorder %s200, %s203
      %p212 = scmp.eq.s32.totalorder %s32, 3
      %p213 = por %p211, %p212
      %p214 = scmp.ne.s32.totalorder %s203, %s204
      %p215 = scmp.eq.s32.totalorder %s32, 0
      %p216 = por %p214, %p215
      %p217 = scmp.ne.s32.totalorder %s203, %s204
      %p218 = scmp.eq.s32.totalorder %s33, 3
      %p219 = por %p217, %p218
      %p221 = scmp.ne.s32.totalorder %s204, %s220
      %p222 = scmp.eq.s32.totalorder %s33, 0
      %p223 = por %p221, %p222
      %s224 = ssub.s32 %s35, %s42
      %p225 = scmp.eq.s32.totalorder %s224, 0
      %s227 = sadd.s32 %s226, 1
      %s228 = scalar_select %p225, %s226, %s227
      %p231 = pneg %p225
      %p232 = scmp.eq.s32.totalorder %s27, 3
      %p233 = por %p231, %p232
      %p234 = scmp.ne.s32.totalorder %s226, %s229
      %p235 = scmp.eq.s32.totalorder %s27, 0
      %p236 = por %p234, %p235
      %p237 = scmp.ne.s32.totalorder %s226, %s229
      %p238 = scmp.eq.s32.totalorder %s32, 3
      %p239 = por %p237, %p238
      %p240 = scmp.ne.s32.totalorder %s229, %s230
      %p241 = scmp.eq.s32.totalorder %s32, 0
      %p242 = por %p240, %p241
      %p243 = scmp.ne.s32.totalorder %s229, %s230
      %p244 = scmp.eq.s32.totalorder %s33, 3
      %p245 = por %p243, %p244
      %p247 = scmp.ne.s32.totalorder %s230, %s246
      %p248 = scmp.eq.s32.totalorder %s33, 0
      %p249 = por %p247, %p248
      %s250 = ssub.s32 %s35, %s42
      %p251 = scmp.eq.s32.totalorder %s250, 0
      %s253 = sadd.s32 %s252, 1
      %s254 = scalar_select %p251, %s252, %s253
      %p257 = pneg %p251
      %p258 = scmp.eq.s32.totalorder %s27, 3
      %p259 = por %p257, %p258
      %p260 = scmp.ne.s32.totalorder %s252, %s255
      %p261 = scmp.eq.s32.totalorder %s27, 0
      %p262 = por %p260, %p261
      %p263 = scmp.ne.s32.totalorder %s252, %s255
      %p264 = scmp.eq.s32.totalorder %s32, 3
      %p265 = por %p263, %p264
      %p266 = scmp.ne.s32.totalorder %s255, %s256
      %p267 = scmp.eq.s32.totalorder %s32, 0
      %p268 = por %p266, %p267
      %p269 = scmp.ne.s32.totalorder %s255, %s256
      %p270 = scmp.eq.s32.totalorder %s33, 3
      %p271 = por %p269, %p270
      %p273 = scmp.ne.s32.totalorder %s256, %s272
      %p274 = scmp.eq.s32.totalorder %s33, 0
      %p275 = por %p273, %p274
      %s276 = ssub.s32 %s35, %s42
      %p277 = scmp.eq.s32.totalorder %s276, 0
      %s279 = sadd.s32 %s278, 1
      %s280 = scalar_select %p277, %s278, %s279
      %p283 = pneg %p277
      %p284 = scmp.eq.s32.totalorder %s27, 3
      %p285 = por %p283, %p284
      %p286 = scmp.ne.s32.totalorder %s278, %s281
      %p287 = scmp.eq.s32.totalorder %s27, 0
      %p288 = por %p286, %p287
      %p289 = scmp.ne.s32.totalorder %s278, %s281
      %p290 = scmp.eq.s32.totalorder %s32, 3
      %p291 = por %p289, %p290
      %p292 = scmp.ne.s32.totalorder %s281, %s282
      %p293 = scmp.eq.s32.totalorder %s32, 0
      %p294 = por %p292, %p293
      %p295 = scmp.ne.s32.totalorder %s281, %s282
      %p296 = scmp.eq.s32.totalorder %s33, 3
      %p297 = por %p295, %p296
      %p299 = scmp.ne.s32.totalorder %s282, %s298
      %p300 = scmp.eq.s32.totalorder %s33, 0
      %p301 = por %p299, %p300
      %s302 = ssub.s32 %s35, %s42
      %p303 = scmp.eq.s32.totalorder %s302, 0
      %s305 = sadd.s32 %s304, 1
      %s306 = scalar_select %p303, %s304, %s305
      %p309 = pneg %p303
      %p310 = scmp.eq.s32.totalorder %s27, 3
      %p311 = por %p309, %p310
      %p312 = scmp.ne.s32.totalorder %s304, %s307
      %p313 = scmp.eq.s32.totalorder %s27, 0
      %p314 = por %p312, %p313
      %p315 = scmp.ne.s32.totalorder %s304, %s307
      %p316 = scmp.eq.s32.totalorder %s32, 3
      %p317 = por %p315, %p316
      %p318 = scmp.ne.s32.totalorder %s307, %s308
      %p319 = scmp.eq.s32.totalorder %s32, 0
      %p320 = por %p318, %p319
      %p321 = scmp.ne.s32.totalorder %s307, %s308
      %p322 = scmp.eq.s32.totalorder %s33, 3
      %p323 = por %p321, %p322
      %p325 = scmp.ne.s32.totalorder %s308, %s324
      %p326 = scmp.eq.s32.totalorder %s33, 0
      %p327 = por %p325, %p326
      %s328 = ssub.s32 %s35, %s42
      %p329 = scmp.eq.s32.totalorder %s328, 0
      %s331 = sadd.s32 %s330, 1
      %s332 = scalar_select %p329, %s330, %s331
      %p335 = pneg %p329
      %p336 = scmp.eq.s32.totalorder %s27, 3
      %p337 = por %p335, %p336
      %p338 = scmp.ne.s32.totalorder %s330, %s333
      %p339 = scmp.eq.s32.totalorder %s27, 0
      %p340 = por %p338, %p339
      %p341 = scmp.ne.s32.totalorder %s330, %s333
      %p342 = scmp.eq.s32.totalorder %s32, 3
      %p343 = por %p341, %p342
      %p344 = scmp.ne.s32.totalorder %s333, %s334
      %p345 = scmp.eq.s32.totalorder %s32, 0
      %p346 = por %p344, %p345
      %p347 = scmp.ne.s32.totalorder %s333, %s334
      %p348 = scmp.eq.s32.totalorder %s33, 3
      %p349 = por %p347, %p348
      %p351 = scmp.ne.s32.totalorder %s334, %s350
      %p352 = scmp.eq.s32.totalorder %s33, 0
      %p353 = por %p351, %p352
      %s354 = ssub.s32 %s35, %s42
      %p355 = scmp.eq.s32.totalorder %s354, 0
      %s357 = sadd.s32 %s356, 1
      %s358 = scalar_select %p355, %s356, %s357
      %p361 = pneg %p355
      %p362 = scmp.eq.s32.totalorder %s27, 3
      %p363 = por %p361, %p362
      %p364 = scmp.ne.s32.totalorder %s356, %s359
      %p365 = scmp.eq.s32.totalorder %s27, 0
      %p366 = por %p364, %p365
      %p367 = scmp.ne.s32.totalorder %s356, %s359
      %p368 = scmp.eq.s32.totalorder %s32, 3
      %p369 = por %p367, %p368
      %p370 = scmp.ne.s32.totalorder %s359, %s360
      %p371 = scmp.eq.s32.totalorder %s32, 0
      %p372 = por %p370, %p371
      %p373 = scmp.ne.s32.totalorder %s359, %s360
      %p374 = scmp.eq.s32.totalorder %s33, 3
      %p375 = por %p373, %p374
      %p377 = scmp.ne.s32.totalorder %s360, %s376
      %p378 = scmp.eq.s32.totalorder %s33, 0
      %p379 = por %p377, %p378
      %s380 = ssub.s32 %s35, %s42
      %p381 = scmp.eq.s32.totalorder %s380, 0
      %s383 = sadd.s32 %s382, 1
      %s384 = scalar_select %p381, %s382, %s383
      %p387 = pneg %p381
      %p388 = scmp.eq.s32.totalorder %s27, 3
      %p389 = por %p387, %p388
      %p390 = scmp.ne.s32.totalorder %s382, %s385
      %p391 = scmp.eq.s32.totalorder %s27, 0
      %p392 = por %p390, %p391
      %p393 = scmp.ne.s32.totalorder %s382, %s385
      %p394 = scmp.eq.s32.totalorder %s32, 3
      %p395 = por %p393, %p394
      %p396 = scmp.ne.s32.totalorder %s385, %s386
      %p397 = scmp.eq.s32.totalorder %s32, 0
      %p398 = por %p396, %p397
      %p399 = scmp.ne.s32.totalorder %s385, %s386
      %p400 = scmp.eq.s32.totalorder %s33, 3
      %p401 = por %p399, %p400
      %p403 = scmp.ne.s32.totalorder %s386, %s402
      %p404 = scmp.eq.s32.totalorder %s33, 0
      %p405 = por %p403, %p404
      %s406 = ssub.s32 %s35, %s42
      %p407 = scmp.eq.s32.totalorder %s406, 0
      %s409 = sadd.s32 %s408, 1
      %s410 = scalar_select %p407, %s408, %s409
      %p413 = pneg %p407
      %p414 = scmp.eq.s32.totalorder %s27, 3
      %p415 = por %p413, %p414
      %p416 = scmp.ne.s32.totalorder %s408, %s411
      %p417 = scmp.eq.s32.totalorder %s27, 0
      %p418 = por %p416, %p417
      %p419 = scmp.ne.s32.totalorder %s408, %s411
      %p420 = scmp.eq.s32.totalorder %s32, 3
      %p421 = por %p419, %p420
      %p422 = scmp.ne.s32.totalorder %s411, %s412
      %p423 = scmp.eq.s32.totalorder %s32, 0
      %p424 = por %p422, %p423
      %p425 = scmp.ne.s32.totalorder %s411, %s412
      %p426 = scmp.eq.s32.totalorder %s33, 3
      %p427 = por %p425, %p426
      %p429 = scmp.ne.s32.totalorder %s412, %s428
      %p430 = scmp.eq.s32.totalorder %s33, 0
      %p431 = por %p429, %p430
      %s432 = ssub.s32 %s35, %s42
      %p433 = scmp.eq.s32.totalorder %s432, 0
      %s435 = sadd.s32 %s434, 1
      %s436 = scalar_select %p433, %s434, %s435
      %p439 = pneg %p433
      %p440 = scmp.eq.s32.totalorder %s27, 3
      %p441 = por %p439, %p440
      %p442 = scmp.ne.s32.totalorder %s434, %s437
      %p443 = scmp.eq.s32.totalorder %s27, 0
      %p444 = por %p442, %p443
      %p445 = scmp.ne.s32.totalorder %s434, %s437
      %p446 = scmp.eq.s32.totalorder %s32, 3
      %p447 = por %p445, %p446
      %p448 = scmp.ne.s32.totalorder %s437, %s438
      %p449 = scmp.eq.s32.totalorder %s32, 0
      %p450 = por %p448, %p449
      %p451 = scmp.ne.s32.totalorder %s437, %s438
      %p452 = scmp.eq.s32.totalorder %s33, 3
      %p453 = por %p451, %p452
      %p455 = scmp.ne.s32.totalorder %s438, %s454
      %p456 = scmp.eq.s32.totalorder %s33, 0
      %p457 = por %p455, %p456
      %s458 = ssub.s32 %s35, %s42
      %p459 = scmp.eq.s32.totalorder %s458, 0
      %s461 = sadd.s32 %s460, 1
      %s462 = scalar_select %p459, %s460, %s461
      %p465 = pneg %p459
      %p466 = scmp.eq.s32.totalorder %s27, 3
      %p467 = por %p465, %p466
      %p468 = scmp.ne.s32.totalorder %s460, %s463
      %p469 = scmp.eq.s32.totalorder %s27, 0
      %p470 = por %p468, %p469
      %p471 = scmp.ne.s32.totalorder %s460, %s463
      %p472 = scmp.eq.s32.totalorder %s32, 3
      %p473 = por %p471, %p472
      %p474 = scmp.ne.s32.totalorder %s463, %s464
      %p475 = scmp.eq.s32.totalorder %s32, 0
      %p476 = por %p474, %p475
      %p477 = scmp.ne.s32.totalorder %s463, %s464
      %p478 = scmp.eq.s32.totalorder %s33, 3
      %p479 = por %p477, %p478
      %p481 = scmp.ne.s32.totalorder %s464, %s480
      %p482 = scmp.eq.s32.totalorder %s33, 0
      %p483 = por %p481, %p482
      %s484 = ssub.s32 %s35, %s42
      %p485 = scmp.eq.s32.totalorder %s484, 0
      %s487 = sadd.s32 %s486, 1
      %s488 = scalar_select %p485, %s486, %s487
      %p491 = pneg %p485
      %p492 = scmp.eq.s32.totalorder %s27, 3
      %p493 = por %p491, %p492
      %p494 = scmp.ne.s32.totalorder %s486, %s489
      %p495 = scmp.eq.s32.totalorder %s27, 0
      %p496 = por %p494, %p495
      %p497 = scmp.ne.s32.totalorder %s486, %s489
      %p498 = scmp.eq.s32.totalorder %s32, 3
      %p499 = por %p497, %p498
      %p500 = scmp.ne.s32.totalorder %s489, %s490
      %p501 = scmp.eq.s32.totalorder %s32, 0
      %p502 = por %p500, %p501
      %p503 = scmp.ne.s32.totalorder %s489, %s490
      %p504 = scmp.eq.s32.totalorder %s33, 3
      %p505 = por %p503, %p504
      %p507 = scmp.ne.s32.totalorder %s490, %s506
      %p508 = scmp.eq.s32.totalorder %s33, 0
      %p509 = por %p507, %p508
      %s510 = ssub.s32 %s34, %s46
      %p511 = scmp.eq.s32.totalorder %s510, 0
      %s513 = sadd.s32 %s512, 1
      %s514 = scalar_select %p511, %s512, %s513
      %p517 = pneg %p511
      %p518 = scmp.eq.s32.totalorder %s27, 3
      %p519 = por %p517, %p518
      %p520 = scmp.ne.s32.totalorder %s512, %s515
      %p521 = scmp.eq.s32.totalorder %s27, 0
      %p522 = por %p520, %p521
      %p523 = scmp.ne.s32.totalorder %s512, %s515
      %p524 = scmp.eq.s32.totalorder %s32, 3
      %p525 = por %p523, %p524
      %p526 = scmp.ne.s32.totalorder %s515, %s516
      %p527 = scmp.eq.s32.totalorder %s32, 0
      %p528 = por %p526, %p527
      %p529 = scmp.ne.s32.totalorder %s515, %s516
      %p530 = scmp.eq.s32.totalorder %s33, 3
      %p531 = por %p529, %p530
      %p533 = scmp.ne.s32.totalorder %s516, %s532
      %p534 = scmp.eq.s32.totalorder %s33, 0
      %p535 = por %p533, %p534
      %p536 = scmp.le.s32.totalorder 1, %s27
      %p537 = scmp.lt.s32.totalorder %s27, 5
      %p538 = pnand %p536, %p537
      %p539 = pneg %p538
      // Predicated region
      $region9: #{transformer_decoder_pallas.1} parent=5 // pred_check
        _
      $region10: #{transformer_decoder_pallas.1} parent=5 // pred_check_branch
        %541 = sbr.rel (%p538) target = $region12
      $region11: #{transformer_decoder_pallas.1} parent=5 // pred_region
        %s542 = ssub.s32 %s27, 1
        // Predicated region
        $region13: #{transformer_decoder_pallas.1} parent=11 // pred_check
          %p543 = pneg %p86
        $region14: #{transformer_decoder_pallas.1} parent=11 // pred_check_branch
          %545 = sbr.rel (%p543) target = $region16
        $region15: #{transformer_decoder_pallas.1} parent=11 // pred_region
          _
        $region16: #{transformer_decoder_pallas.1} parent=11 // pred_fallthru
          _
      $region12: #{transformer_decoder_pallas.1} parent=5 // pred_fallthru
        _
      %p546 = scmp.lt.s32.totalorder %s27, 4
      // Predicated region
      $region17: #{transformer_decoder_pallas.1} parent=5 // pred_check
        %p547 = pneg %p546
      $region18: #{transformer_decoder_pallas.1} parent=5 // pred_check_branch
        %549 = sbr.rel (%p547) target = $region20
      $region19: #{transformer_decoder_pallas.1} parent=5 // pred_region
        // Predicated region
        $region21: #{transformer_decoder_pallas.1} parent=19 // pred_check
          %p550 = pneg %p59
        $region22: #{transformer_decoder_pallas.1} parent=19 // pred_check_branch
          %552 = sbr.rel (%p550) target = $region24
        $region23: #{transformer_decoder_pallas.1} parent=19 // pred_region
          %p553 = scmp.lt.s32.totalorder %s34, 1
          %s554 = scalar_select %p553, %s34, 1
          %s555 = smul.addr %s554, 8
          %s556 = scalar_lea.vmem %s0, %s555
        $region24: #{transformer_decoder_pallas.1} parent=19 // pred_fallthru
          _
        // Predicated region
        $region25: #{transformer_decoder_pallas.1} parent=19 // pred_check
          %p557 = pneg %p106
        $region26: #{transformer_decoder_pallas.1} parent=19 // pred_check_branch
          %559 = sbr.rel (%p557) target = $region28
        $region27: #{transformer_decoder_pallas.1} parent=19 // pred_region
          %p560 = scmp.lt.s32.totalorder %s34, 1
          %s561 = scalar_select %p560, %s34, 1
          %s562 = smul.addr %s561, 8
          %s563 = scalar_lea.vmem %s2, %s562
        $region28: #{transformer_decoder_pallas.1} parent=19 // pred_fallthru
          _
        // Predicated region
        $region29: #{transformer_decoder_pallas.1} parent=19 // pred_check
          %p564 = pneg %p132
        $region30: #{transformer_decoder_pallas.1} parent=19 // pred_check_branch
          %566 = sbr.rel (%p564) target = $region32
        $region31: #{transformer_decoder_pallas.1} parent=19 // pred_region
          %p567 = scmp.lt.s32.totalorder %s34, 1
          %s568 = scalar_select %p567, %s34, 1
          %s569 = smul.addr %s568, 8
          %s570 = scalar_lea.vmem %s3, %s569
        $region32: #{transformer_decoder_pallas.1} parent=19 // pred_fallthru
          _
        // Predicated region
        $region33: #{transformer_decoder_pallas.1} parent=19 // pred_check
          %p571 = pneg %p158
        $region34: #{transformer_decoder_pallas.1} parent=19 // pred_check_branch
          %573 = sbr.rel (%p571) target = $region36
        $region35: #{transformer_decoder_pallas.1} parent=19 // pred_region
          %p574 = scmp.lt.s32.totalorder %s35, 1
          %s575 = scalar_select %p574, %s35, 1
          %s576 = smul.addr %s575, 16
          %s577 = smul.addr %s576, 8
          %s578 = scalar_lea.vmem %s4, %s577
        $region36: #{transformer_decoder_pallas.1} parent=19 // pred_fallthru
          _
        // Predicated region
        $region37: #{transformer_decoder_pallas.1} parent=19 // pred_check
          %p579 = pneg %p184
        $region38: #{transformer_decoder_pallas.1} parent=19 // pred_check_branch
          %581 = sbr.rel (%p579) target = $region40
        $region39: #{transformer_decoder_pallas.1} parent=19 // pred_region
          %p582 = scmp.lt.s32.totalorder %s35, 1
          %s583 = scalar_select %p582, %s35, 1
          %s584 = smul.addr %s583, 16
          %s585 = smul.addr %s584, 8
          %s586 = scalar_lea.vmem %s5, %s585
        $region40: #{transformer_decoder_pallas.1} parent=19 // pred_fallthru
          _
        // Predicated region
        $region41: #{transformer_decoder_pallas.1} parent=19 // pred_check
          %p587 = pneg %p210
        $region42: #{transformer_decoder_pallas.1} parent=19 // pred_check_branch
          %589 = sbr.rel (%p587) target = $region44
        $region43: #{transformer_decoder_pallas.1} parent=19 // pred_region
          %p590 = scmp.lt.s32.totalorder %s35, 1
          %s591 = scalar_select %p590, %s35, 1
          %s592 = smul.addr %s591, 16
          %s593 = smul.addr %s592, 8
          %s594 = scalar_lea.vmem %s6, %s593
        $region44: #{transformer_decoder_pallas.1} parent=19 // pred_fallthru
          _
        // Predicated region
        $region45: #{transformer_decoder_pallas.1} parent=19 // pred_check
          %p595 = pneg %p236
        $region46: #{transformer_decoder_pallas.1} parent=19 // pred_check_branch
          %597 = sbr.rel (%p595) target = $region48
        $region47: #{transformer_decoder_pallas.1} parent=19 // pred_region
          %p598 = scmp.lt.s32.totalorder %s35, 1
          %s599 = scalar_select %p598, %s35, 1
          %s600 = smul.addr %s599, 4
          %s601 = smul.addr %s600, 8
          %s602 = scalar_lea.vmem %s7, %s601
        $region48: #{transformer_decoder_pallas.1} parent=19 // pred_fallthru
          _
        // Predicated region
        $region49: #{transformer_decoder_pallas.1} parent=19 // pred_check
          %p603 = pneg %p262
        $region50: #{transformer_decoder_pallas.1} parent=19 // pred_check_branch
          %605 = sbr.rel (%p603) target = $region52
        $region51: #{transformer_decoder_pallas.1} parent=19 // pred_region
          %p606 = scmp.lt.s32.totalorder %s35, 1
          %s607 = scalar_select %p606, %s35, 1
          %s608 = smul.addr %s607, 16
          %s609 = smul.addr %s608, 8
          %s610 = scalar_lea.vmem %s8, %s609
        $region52: #{transformer_decoder_pallas.1} parent=19 // pred_fallthru
          _
        // Predicated region
        $region53: #{transformer_decoder_pallas.1} parent=19 // pred_check
          %p611 = pneg %p288
        $region54: #{transformer_decoder_pallas.1} parent=19 // pred_check_branch
          %613 = sbr.rel (%p611) target = $region56
        $region55: #{transformer_decoder_pallas.1} parent=19 // pred_region
          %p614 = scmp.lt.s32.totalorder %s35, 1
          %s615 = scalar_select %p614, %s35, 1
          %s616 = smul.addr %s615, 16
          %s617 = smul.addr %s616, 8
          %s618 = scalar_lea.vmem %s9, %s617
        $region56: #{transformer_decoder_pallas.1} parent=19 // pred_fallthru
          _
        // Predicated region
        $region57: #{transformer_decoder_pallas.1} parent=19 // pred_check
          %p619 = pneg %p314
        $region58: #{transformer_decoder_pallas.1} parent=19 // pred_check_branch
          %621 = sbr.rel (%p619) target = $region60
        $region59: #{transformer_decoder_pallas.1} parent=19 // pred_region
          %p622 = scmp.lt.s32.totalorder %s35, 1
          %s623 = scalar_select %p622, %s35, 1
          %s624 = smul.addr %s623, 16
          %s625 = smul.addr %s624, 8
          %s626 = scalar_lea.vmem %s10, %s625
        $region60: #{transformer_decoder_pallas.1} parent=19 // pred_fallthru
          _
        // Predicated region
        $region61: #{transformer_decoder_pallas.1} parent=19 // pred_check
          %p627 = pneg %p340
        $region62: #{transformer_decoder_pallas.1} parent=19 // pred_check_branch
          %629 = sbr.rel (%p627) target = $region64
        $region63: #{transformer_decoder_pallas.1} parent=19 // pred_region
          %p630 = scmp.lt.s32.totalorder %s35, 1
          %s631 = scalar_select %p630, %s35, 1
          %s632 = smul.addr %s631, 4
          %s633 = smul.addr %s632, 8
          %s634 = scalar_lea.vmem %s11, %s633
        $region64: #{transformer_decoder_pallas.1} parent=19 // pred_fallthru
          _
        // Predicated region
        $region65: #{transformer_decoder_pallas.1} parent=19 // pred_check
          %p635 = pneg %p366
        $region66: #{transformer_decoder_pallas.1} parent=19 // pred_check_branch
          %637 = sbr.rel (%p635) target = $region68
        $region67: #{transformer_decoder_pallas.1} parent=19 // pred_region
          %p638 = scmp.lt.s32.totalorder %s35, 1
          %s639 = scalar_select %p638, %s35, 1
          %s640 = smul.addr %s639, 4
          %s641 = smul.addr %s640, 8
          %s642 = scalar_lea.vmem %s12, %s641
        $region68: #{transformer_decoder_pallas.1} parent=19 // pred_fallthru
          _
        // Predicated region
        $region69: #{transformer_decoder_pallas.1} parent=19 // pred_check
          %p643 = pneg %p392
        $region70: #{transformer_decoder_pallas.1} parent=19 // pred_check_branch
          %645 = sbr.rel (%p643) target = $region72
        $region71: #{transformer_decoder_pallas.1} parent=19 // pred_region
          %p646 = scmp.lt.s32.totalorder %s35, 1
          %s647 = scalar_select %p646, %s35, 1
          %s648 = scalar_lea.vmem %s13, %s647
        $region72: #{transformer_decoder_pallas.1} parent=19 // pred_fallthru
          _
        // Predicated region
        $region73: #{transformer_decoder_pallas.1} parent=19 // pred_check
          %p649 = pneg %p418
        $region74: #{transformer_decoder_pallas.1} parent=19 // pred_check_branch
          %651 = sbr.rel (%p649) target = $region76
        $region75: #{transformer_decoder_pallas.1} parent=19 // pred_region
          %p652 = scmp.lt.s32.totalorder %s35, 1
          %s653 = scalar_select %p652, %s35, 1
          %s654 = smul.addr %s653, 16
          %s655 = smul.addr %s654, 8
          %s656 = scalar_lea.vmem %s14, %s655
        $region76: #{transformer_decoder_pallas.1} parent=19 // pred_fallthru
          _
        // Predicated region
        $region77: #{transformer_decoder_pallas.1} parent=19 // pred_check
          %p657 = pneg %p444
        $region78: #{transformer_decoder_pallas.1} parent=19 // pred_check_branch
          %659 = sbr.rel (%p657) target = $region80
        $region79: #{transformer_decoder_pallas.1} parent=19 // pred_region
          %p660 = scmp.lt.s32.totalorder %s35, 1
          %s661 = scalar_select %p660, %s35, 1
          %s662 = scalar_lea.vmem %s15, %s661
        $region80: #{transformer_decoder_pallas.1} parent=19 // pred_fallthru
          _
        // Predicated region
        $region81: #{transformer_decoder_pallas.1} parent=19 // pred_check
          %p663 = pneg %p470
        $region82: #{transformer_decoder_pallas.1} parent=19 // pred_check_branch
          %665 = sbr.rel (%p663) target = $region84
        $region83: #{transformer_decoder_pallas.1} parent=19 // pred_region
          %p666 = scmp.lt.s32.totalorder %s35, 1
          %s667 = scalar_select %p666, %s35, 1
          %s668 = scalar_lea.vmem %s16, %s667
        $region84: #{transformer_decoder_pallas.1} parent=19 // pred_fallthru
          _
        // Predicated region
        $region85: #{transformer_decoder_pallas.1} parent=19 // pred_check
          %p669 = pneg %p496
        $region86: #{transformer_decoder_pallas.1} parent=19 // pred_check_branch
          %671 = sbr.rel (%p669) target = $region88
        $region87: #{transformer_decoder_pallas.1} parent=19 // pred_region
          %p672 = scmp.lt.s32.totalorder %s35, 1
          %s673 = scalar_select %p672, %s35, 1
          %s674 = scalar_lea.vmem %s17, %s673
        $region88: #{transformer_decoder_pallas.1} parent=19 // pred_fallthru
          _
      $region20: #{transformer_decoder_pallas.1} parent=5 // pred_fallthru
        _
      %p675 = scmp.le.s32.totalorder 1, %s27
      %p676 = scmp.lt.s32.totalorder %s27, 5
      %p677 = pnand %p675, %p676
      %p678 = pneg %p677
      // Predicated region
      $region89: #{transformer_decoder_pallas.1} parent=5 // pred_check
        _
      $region90: #{transformer_decoder_pallas.1} parent=5 // pred_check_branch
        %680 = sbr.rel (%p677) target = $region92
      $region91: #{transformer_decoder_pallas.1} parent=5 // pred_region
        %s681 = ssub.s32 %s27, 1
        %p682 = scmp.lt.s32.totalorder %s36, 1
        %s683 = scalar_select %p682, %s36, 1
        %s684 = smul.addr %s683, 8
        %s685 = scalar_lea.vmem %s0, %s684
        %p686 = pneg %p65
        %p687 = pneg %p62
        %p688 = pneg %p86
        %p689 = pneg %p83
        %p690 = scmp.lt.s32.totalorder %s36, 1
        %s691 = scalar_select %p690, %s36, 1
        %s692 = smul.addr %s691, 8
        %s693 = scalar_lea.vmem %s2, %s692
        %p694 = pneg %p112
        %p695 = pneg %p109
        %p696 = scmp.lt.s32.totalorder %s36, 1
        %s697 = scalar_select %p696, %s36, 1
        %s698 = smul.addr %s697, 8
        %s699 = scalar_lea.vmem %s3, %s698
        %p700 = pneg %p138
        %p701 = pneg %p135
        %p702 = scmp.lt.s32.totalorder %s37, 1
        %s703 = scalar_select %p702, %s37, 1
        %s704 = smul.addr %s703, 16
        %s705 = smul.addr %s704, 8
        %s706 = scalar_lea.vmem %s4, %s705
        %p707 = pneg %p164
        %p708 = pneg %p161
        %p709 = scmp.lt.s32.totalorder %s37, 1
        %s710 = scalar_select %p709, %s37, 1
        %s711 = smul.addr %s710, 16
        %s712 = smul.addr %s711, 8
        %s713 = scalar_lea.vmem %s5, %s712
        %p714 = pneg %p190
        %p715 = pneg %p187
        %p716 = scmp.lt.s32.totalorder %s37, 1
        %s717 = scalar_select %p716, %s37, 1
        %s718 = smul.addr %s717, 16
        %s719 = smul.addr %s718, 8
        %s720 = scalar_lea.vmem %s6, %s719
        %p721 = pneg %p216
        %p722 = pneg %p213
        %p723 = scmp.lt.s32.totalorder %s37, 1
        %s724 = scalar_select %p723, %s37, 1
        %s725 = smul.addr %s724, 4
        %s726 = smul.addr %s725, 8
        %s727 = scalar_lea.vmem %s7, %s726
        %p728 = pneg %p242
        %p729 = pneg %p239
        %p730 = scmp.lt.s32.totalorder %s37, 1
        %s731 = scalar_select %p730, %s37, 1
        %s732 = smul.addr %s731, 16
        %s733 = smul.addr %s732, 8
        %s734 = scalar_lea.vmem %s8, %s733
        %p735 = pneg %p268
        %p736 = pneg %p265
        %p737 = scmp.lt.s32.totalorder %s37, 1
        %s738 = scalar_select %p737, %s37, 1
        %s739 = smul.addr %s738, 16
        %s740 = smul.addr %s739, 8
        %s741 = scalar_lea.vmem %s9, %s740
        %p742 = pneg %p294
        %p743 = pneg %p291
        %p744 = scmp.lt.s32.totalorder %s37, 1
        %s745 = scalar_select %p744, %s37, 1
        %s746 = smul.addr %s745, 16
        %s747 = smul.addr %s746, 8
        %s748 = scalar_lea.vmem %s10, %s747
        %p749 = pneg %p320
        %p750 = pneg %p317
        %p751 = scmp.lt.s32.totalorder %s37, 1
        %s752 = scalar_select %p751, %s37, 1
        %s753 = smul.addr %s752, 4
        %s754 = smul.addr %s753, 8
        %s755 = scalar_lea.vmem %s11, %s754
        %p756 = pneg %p346
        %p757 = pneg %p343
        %p758 = scmp.lt.s32.totalorder %s37, 1
        %s759 = scalar_select %p758, %s37, 1
        %s760 = smul.addr %s759, 4
        %s761 = smul.addr %s760, 8
        %s762 = scalar_lea.vmem %s12, %s761
        %p763 = pneg %p372
        %p764 = pneg %p369
        %p765 = scmp.lt.s32.totalorder %s37, 1
        %s766 = scalar_select %p765, %s37, 1
        %s767 = scalar_lea.vmem %s13, %s766
        %p768 = pneg %p398
        %p769 = pneg %p395
        %p770 = scmp.lt.s32.totalorder %s37, 1
        %s771 = scalar_select %p770, %s37, 1
        %s772 = smul.addr %s771, 16
        %s773 = smul.addr %s772, 8
        %s774 = scalar_lea.vmem %s14, %s773
        %p775 = pneg %p424
        %p776 = pneg %p421
        %p777 = scmp.lt.s32.totalorder %s37, 1
        %s778 = scalar_select %p777, %s37, 1
        %s779 = scalar_lea.vmem %s15, %s778
        %p780 = pneg %p450
        %p781 = pneg %p447
        %p782 = scmp.lt.s32.totalorder %s37, 1
        %s783 = scalar_select %p782, %s37, 1
        %s784 = scalar_lea.vmem %s16, %s783
        %p785 = pneg %p476
        %p786 = pneg %p473
        %p787 = scmp.lt.s32.totalorder %s37, 1
        %s788 = scalar_select %p787, %s37, 1
        %s789 = scalar_lea.vmem %s17, %s788
        %p790 = pneg %p502
        %p791 = pneg %p499
        %p792 = pneg %p528
        %p793 = pneg %p525
        %s794 = sand.u32 %s515, 1
        %s795 = scalar_lea.sflag [#allocation4], %s794
        %s796 = sand.u32 %s515, 1
        %s797 = smul.addr %s796, 8
        %s798 = scalar_lea.vmem [#allocation3], %s797
        %p799 = scmp.lt.s32.totalorder %s36, 1
        %s800 = scalar_select %p799, %s36, 1
        %s801 = smul.addr %s800, 8
        %s802 = scalar_lea.vmem %s0, %s801
        %p803 = scmp.lt.s32.totalorder %s36, 1
        %s804 = scalar_select %p803, %s36, 1
        %s805 = smul.addr %s804, 8
        %s806 = scalar_lea.vmem %s2, %s805
        %p807 = scmp.lt.s32.totalorder %s36, 1
        %s808 = scalar_select %p807, %s36, 1
        %s809 = smul.addr %s808, 8
        %s810 = scalar_lea.vmem %s3, %s809
        %p811 = scmp.lt.s32.totalorder %s37, 1
        %s812 = scalar_select %p811, %s37, 1
        %s813 = smul.addr %s812, 16
        %s814 = smul.addr %s813, 8
        %s815 = scalar_lea.vmem %s4, %s814
        %p816 = scmp.lt.s32.totalorder %s37, 1
        %s817 = scalar_select %p816, %s37, 1
        %s818 = smul.addr %s817, 16
        %s819 = smul.addr %s818, 8
        %s820 = scalar_lea.vmem %s5, %s819
        %p821 = scmp.lt.s32.totalorder %s37, 1
        %s822 = scalar_select %p821, %s37, 1
        %s823 = smul.addr %s822, 16
        %s824 = smul.addr %s823, 8
        %s825 = scalar_lea.vmem %s6, %s824
        %p826 = scmp.lt.s32.totalorder %s37, 1
        %s827 = scalar_select %p826, %s37, 1
        %s828 = smul.addr %s827, 4
        %s829 = smul.addr %s828, 8
        %s830 = scalar_lea.vmem %s7, %s829
        %p831 = scmp.lt.s32.totalorder %s37, 1
        %s832 = scalar_select %p831, %s37, 1
        %s833 = smul.addr %s832, 16
        %s834 = smul.addr %s833, 8
        %s835 = scalar_lea.vmem %s8, %s834
        %p836 = scmp.lt.s32.totalorder %s37, 1
        %s837 = scalar_select %p836, %s37, 1
        %s838 = smul.addr %s837, 16
        %s839 = smul.addr %s838, 8
        %s840 = scalar_lea.vmem %s9, %s839
        %p841 = scmp.lt.s32.totalorder %s37, 1
        %s842 = scalar_select %p841, %s37, 1
        %s843 = smul.addr %s842, 16
        %s844 = smul.addr %s843, 8
        %s845 = scalar_lea.vmem %s10, %s844
        %p846 = scmp.lt.s32.totalorder %s37, 1
        %s847 = scalar_select %p846, %s37, 1
        %s848 = smul.addr %s847, 4
        %s849 = smul.addr %s848, 8
        %s850 = scalar_lea.vmem %s11, %s849
        %p851 = scmp.lt.s32.totalorder %s37, 1
        %s852 = scalar_select %p851, %s37, 1
        %s853 = smul.addr %s852, 4
        %s854 = smul.addr %s853, 8
        %s855 = scalar_lea.vmem %s12, %s854
        %p856 = scmp.lt.s32.totalorder %s37, 1
        %s857 = scalar_select %p856, %s37, 1
        %s858 = scalar_lea.vmem %s13, %s857
        %p859 = scmp.lt.s32.totalorder %s37, 1
        %s860 = scalar_select %p859, %s37, 1
        %s861 = smul.addr %s860, 16
        %s862 = smul.addr %s861, 8
        %s863 = scalar_lea.vmem %s14, %s862
        %p864 = scmp.lt.s32.totalorder %s37, 1
        %s865 = scalar_select %p864, %s37, 1
        %s866 = scalar_lea.vmem %s15, %s865
        %p867 = scmp.lt.s32.totalorder %s37, 1
        %s868 = scalar_select %p867, %s37, 1
        %s869 = scalar_lea.vmem %s16, %s868
        %p870 = scmp.lt.s32.totalorder %s37, 1
        %s871 = scalar_select %p870, %s37, 1
        %s872 = scalar_lea.vmem %s17, %s871
        %p873 = scmp.eq.s32.totalorder %s37, 0
        // Predicated region
        $region93: #{transformer_decoder_pallas.1} parent=91 // pred_check
          %p874 = pneg %p873
        $region94: #{transformer_decoder_pallas.1} parent=91 // pred_check_branch
          %876 = sbr.rel (%p874) target = $region96
        $region95: #{transformer_decoder_pallas.1} parent=91 // pred_region
          %v877 = vld [vmem:[%s802] sm:$0xff]
          %v878 = vld [vmem:[%s1] sm:$0xff]
          %v879 = vadd.f32 %v877, %v878
          %vm880 = vcmask 261120
          %881 = vst.msk [vmem:[#allocation2] sm:$0xff] %vm880, %v879
        $region96: #{transformer_decoder_pallas.1} parent=91 // pred_fallthru
          _
        %v882 = vld [vmem:[#allocation2] sm:$0xff]
        %v883 = vld [vmem:[%s806] sm:$0xff]
        %v884 = vld [vmem:[%s869] sm:$0x1]
        %v886 = vlaneseq
        %v887 = vshrl.u32 %v886, 7
        %v888 = vsub.s32 0, %v887
        %v889 = vrot.slane %v884, %v888
        %v891 = vld [vmem:[%s872] sm:$0x1]
        %v893 = vlaneseq
        %v894 = vshrl.u32 %v893, 7
        %v895 = vsub.s32 0, %v894
        %v896 = vrot.slane %v891, %v895
        %v898 = vlaneseq
        %v899 = vshrl.u32 %v898, 7
        %v900 = vlaneseq
        %v901 = vand.u32 %v900, 127
        %vm902 = vcmp.gt.s32.totalorder %v901, %v899
        %v903 = vld [vmem:[%s810] sm:$0xff]
        %vm904 = vcmp.ne.f32.partialorder %v903, 0.0
        %v905 = vld [vmem:[%s815] sm:$0xff]
        %v906 = vld [vmem:[%s815 + $0x8] sm:$0xff]
        %v907 = vld [vmem:[%s815 + $0x10] sm:$0xff]
        %v908 = vld [vmem:[%s815 + $0x18] sm:$0xff]
        %v909 = vld [vmem:[%s815 + $0x20] sm:$0xff]
        %v910 = vld [vmem:[%s815 + $0x28] sm:$0xff]
        %v911 = vld [vmem:[%s815 + $0x30] sm:$0xff]
        %v912 = vld [vmem:[%s815 + $0x38] sm:$0xff]
        %v913 = vld [vmem:[%s815 + $0x40] sm:$0xff]
        %v914 = vld [vmem:[%s815 + $0x48] sm:$0xff]
        %v915 = vld [vmem:[%s815 + $0x50] sm:$0xff]
        %v916 = vld [vmem:[%s815 + $0x58] sm:$0xff]
        %v917 = vld [vmem:[%s815 + $0x60] sm:$0xff]
        %v918 = vld [vmem:[%s815 + $0x68] sm:$0xff]
        %v919 = vld [vmem:[%s815 + $0x70] sm:$0xff]
        %v920 = vld [vmem:[%s815 + $0x78] sm:$0xff]
        %v921 = vld [vmem:[%s820] sm:$0xff]
        %v922 = vld [vmem:[%s820 + $0x8] sm:$0xff]
        %v923 = vld [vmem:[%s820 + $0x10] sm:$0xff]
        %v924 = vld [vmem:[%s820 + $0x18] sm:$0xff]
        %v925 = vld [vmem:[%s820 + $0x20] sm:$0xff]
        %v926 = vld [vmem:[%s820 + $0x28] sm:$0xff]
        %v927 = vld [vmem:[%s820 + $0x30] sm:$0xff]
        %v928 = vld [vmem:[%s820 + $0x38] sm:$0xff]
        %v929 = vld [vmem:[%s820 + $0x40] sm:$0xff]
        %v930 = vld [vmem:[%s820 + $0x48] sm:$0xff]
        %v931 = vld [vmem:[%s820 + $0x50] sm:$0xff]
        %v932 = vld [vmem:[%s820 + $0x58] sm:$0xff]
        %v933 = vld [vmem:[%s820 + $0x60] sm:$0xff]
        %v934 = vld [vmem:[%s820 + $0x68] sm:$0xff]
        %v935 = vld [vmem:[%s820 + $0x70] sm:$0xff]
        %v936 = vld [vmem:[%s820 + $0x78] sm:$0xff]
        %v937 = vld [vmem:[%s825] sm:$0xff]
        %v938 = vld [vmem:[%s825 + $0x8] sm:$0xff]
        %v939 = vld [vmem:[%s825 + $0x10] sm:$0xff]
        %v940 = vld [vmem:[%s825 + $0x18] sm:$0xff]
        %v941 = vld [vmem:[%s825 + $0x20] sm:$0xff]
        %v942 = vld [vmem:[%s825 + $0x28] sm:$0xff]
        %v943 = vld [vmem:[%s825 + $0x30] sm:$0xff]
        %v944 = vld [vmem:[%s825 + $0x38] sm:$0xff]
        %v945 = vld [vmem:[%s825 + $0x40] sm:$0xff]
        %v946 = vld [vmem:[%s825 + $0x48] sm:$0xff]
        %v947 = vld [vmem:[%s825 + $0x50] sm:$0xff]
        %v948 = vld [vmem:[%s825 + $0x58] sm:$0xff]
        %v949 = vld [vmem:[%s825 + $0x60] sm:$0xff]
        %v950 = vld [vmem:[%s825 + $0x68] sm:$0xff]
        %v951 = vld [vmem:[%s825 + $0x70] sm:$0xff]
        %v952 = vld [vmem:[%s825 + $0x78] sm:$0xff]
        %v953 = vld [vmem:[%s830] sm:$0xff]
        %v954 = vld [vmem:[%s830 + $0x8] sm:$0xff]
        %v955 = vld [vmem:[%s830 + $0x10] sm:$0xff]
        %v956 = vld [vmem:[%s830 + $0x18] sm:$0xff]
        %vm957 = vcmask 261120
        %v959 = vsel %vm957, %v882, 0
        %961 = vmatprep.subr.mxu0 0.0
        %962 = vmatpush1.msra.mxu0 %v905
        %963 = vmatprep.subr.mxu0 0.0
        %964 = vmatpush1.msra.mxu0 %v906
        %965 = vmatprep.subr.mxu0 0.0
        %966 = vmatpush1.msra.mxu0 %v907
        %967 = vmatprep.subr.mxu0 0.0
        %968 = vmatpush1.msra.mxu0 %v908
        %969 = vmatprep.subr.mxu0 0.0
        %970 = vmatpush1.msra.mxu0 0.0
        %971 = vmatprep.subr.mxu0 0.0
        %972 = vmatpush1.msra.mxu0 0.0
        %973 = vmatprep.subr.mxu0 0.0
        %974 = vmatpush1.msra.mxu0 0.0
        %975 = vmatprep.subr.mxu0 0.0
        %976 = vmatpush1.msra.mxu0 0.0
        %977 = vmatprep.subr.mxu0 0.0
        %978 = vmatpush1.msra.mxu0 0.0
        %979 = vmatprep.subr.mxu0 0.0
        %980 = vmatpush1.msra.mxu0 0.0
        %981 = vmatprep.subr.mxu0 0.0
        %982 = vmatpush1.msra.mxu0 0.0
        %983 = vmatprep.subr.mxu0 0.0
        %984 = vmatpush1.msra.mxu0 0.0
        %985 = vmatprep.subr.mxu0 0.0
        %986 = vmatpush1.msra.mxu0 0.0
        %987 = vmatprep.subr.mxu0 0.0
        %988 = vmatpush1.msra.mxu0 0.0
        %989 = vmatprep.subr.mxu0 0.0
        %990 = vmatpush1.msra.mxu0 0.0
        %991 = vmatprep.subr.mxu0 0.0
        %992 = vmatpush1.msra.mxu0 0.0
        %993 = vmatprep.subr.mxu0 0.0
        %994 = vmatpush1.msra.mxu0 0.0
        %995 = vmatprep.subr.mxu0 0.0
        %996 = vmatpush1.msra.mxu0 0.0
        %997 = vmatprep.subr.mxu0 0.0
        %998 = vmatpush1.msra.mxu0 0.0
        %999 = vmatprep.subr.mxu0 0.0
        %1000 = vmatpush1.msra.mxu0 0.0
        %1001 = vmatprep.subr.mxu0 0.0
        %1002 = vmatpush1.msra.mxu0 0.0
        %1003 = vmatprep.subr.mxu0 0.0
        %1004 = vmatpush1.msra.mxu0 0.0
        %1005 = vmatprep.subr.mxu0 0.0
        %1006 = vmatpush1.msra.mxu0 0.0
        %1007 = vmatprep.subr.mxu0 0.0
        %1008 = vmatpush1.msra.mxu0 0.0
        %1009 = vmatprep.subr.mxu0 0.0
        %1010 = vmatpush1.msra.mxu0 0.0
        %1011 = vmatprep.subr.mxu0 0.0
        %1012 = vmatpush1.msra.mxu0 0.0
        %1013 = vmatprep.subr.mxu0 0.0
        %1014 = vmatpush1.msra.mxu0 0.0
        %1015 = vmatprep.subr.mxu0 0.0
        %1016 = vmatpush1.msra.mxu0 0.0
        %1017 = vmatprep.subr.mxu0 0.0
        %1018 = vmatpush1.msra.mxu0 0.0
        %1019 = vmatprep.subr.mxu0 0.0
        %1020 = vmatpush1.msra.mxu0 0.0
        %1021 = vmatprep.subr.mxu0 0.0
        %1022 = vmatpush1.msra.mxu0 0.0
        %1023 = vmatprep.subr.mxu0 0.0
        %1024 = vmatpush1.msra.mxu0 0.0
        %1025 = vmatprep.mubr.f32.mxu0 0.0
        %1026 = vmatmul.mubr.f32.gmra.mrb[0].mxu0 %v959
        %v1027 = vpop.f32.mrb[0].mxu0
        %v1028 = vadd.f32 0.0, %v1027
        %v1029 = vpop.f32.mrb[0].mxu0
        %1030 = vdwg.mxu0
        %1031 = vmatprep.subr.mxu0 0.0
        %1032 = vmatpush1.msra.mxu0 %v909
        %1033 = vmatprep.subr.mxu0 0.0
        %1034 = vmatpush1.msra.mxu0 %v910
        %1035 = vmatprep.subr.mxu0 0.0
        %1036 = vmatpush1.msra.mxu0 %v911
        %1037 = vmatprep.subr.mxu0 0.0
        %1038 = vmatpush1.msra.mxu0 %v912
        %1039 = vmatprep.subr.mxu0 0.0
        %1040 = vmatpush1.msra.mxu0 0.0
        %1041 = vmatprep.subr.mxu0 0.0
        %1042 = vmatpush1.msra.mxu0 0.0
        %1043 = vmatprep.subr.mxu0 0.0
        %1044 = vmatpush1.msra.mxu0 0.0
        %1045 = vmatprep.subr.mxu0 0.0
        %1046 = vmatpush1.msra.mxu0 0.0
        %1047 = vmatprep.subr.mxu0 0.0
        %1048 = vmatpush1.msra.mxu0 0.0
        %1049 = vmatprep.subr.mxu0 0.0
        %1050 = vmatpush1.msra.mxu0 0.0
        %1051 = vmatprep.subr.mxu0 0.0
        %1052 = vmatpush1.msra.mxu0 0.0
        %1053 = vmatprep.subr.mxu0 0.0
        %1054 = vmatpush1.msra.mxu0 0.0
        %1055 = vmatprep.subr.mxu0 0.0
        %1056 = vmatpush1.msra.mxu0 0.0
        %1057 = vmatprep.subr.mxu0 0.0
        %1058 = vmatpush1.msra.mxu0 0.0
        %1059 = vmatprep.subr.mxu0 0.0
        %1060 = vmatpush1.msra.mxu0 0.0
        %1061 = vmatprep.subr.mxu0 0.0
        %1062 = vmatpush1.msra.mxu0 0.0
        %1063 = vmatprep.subr.mxu0 0.0
        %1064 = vmatpush1.msra.mxu0 0.0
        %1065 = vmatprep.subr.mxu0 0.0
        %1066 = vmatpush1.msra.mxu0 0.0
        %1067 = vmatprep.subr.mxu0 0.0
        %1068 = vmatpush1.msra.mxu0 0.0
        %1069 = vmatprep.subr.mxu0 0.0
        %1070 = vmatpush1.msra.mxu0 0.0
        %1071 = vmatprep.subr.mxu0 0.0
        %1072 = vmatpush1.msra.mxu0 0.0
        %1073 = vmatprep.subr.mxu0 0.0
        %1074 = vmatpush1.msra.mxu0 0.0
        %1075 = vmatprep.subr.mxu0 0.0
        %1076 = vmatpush1.msra.mxu0 0.0
        %1077 = vmatprep.subr.mxu0 0.0
        %1078 = vmatpush1.msra.mxu0 0.0
        %1079 = vmatprep.subr.mxu0 0.0
        %1080 = vmatpush1.msra.mxu0 0.0
        %1081 = vmatprep.subr.mxu0 0.0
        %1082 = vmatpush1.msra.mxu0 0.0
        %1083 = vmatprep.subr.mxu0 0.0
        %1084 = vmatpush1.msra.mxu0 0.0
        %1085 = vmatprep.subr.mxu0 0.0
        %1086 = vmatpush1.msra.mxu0 0.0
        %1087 = vmatprep.subr.mxu0 0.0
        %1088 = vmatpush1.msra.mxu0 0.0
        %1089 = vmatprep.subr.mxu0 0.0
        %1090 = vmatpush1.msra.mxu0 0.0
        %1091 = vmatprep.subr.mxu0 0.0
        %1092 = vmatpush1.msra.mxu0 0.0
        %1093 = vmatprep.subr.mxu0 0.0
        %1094 = vmatpush1.msra.mxu0 0.0
        %1095 = vmatprep.mubr.f32.mxu0 0.0
        %1096 = vmatmul.mubr.f32.gmra.mrb[0].mxu0 %v959
        %v1097 = vpop.f32.mrb[0].mxu0
        %v1098 = vadd.f32 0.0, %v1097
        %v1099 = vpop.f32.mrb[0].mxu0
        %1100 = vdwg.mxu0
        %1101 = vmatprep.subr.mxu0 0.0
        %1102 = vmatpush1.msra.mxu0 %v913
        %1103 = vmatprep.subr.mxu0 0.0
        %1104 = vmatpush1.msra.mxu0 %v914
        %1105 = vmatprep.subr.mxu0 0.0
        %1106 = vmatpush1.msra.mxu0 %v915
        %1107 = vmatprep.subr.mxu0 0.0
        %1108 = vmatpush1.msra.mxu0 %v916
        %1109 = vmatprep.subr.mxu0 0.0
        %1110 = vmatpush1.msra.mxu0 0.0
        %1111 = vmatprep.subr.mxu0 0.0
        %1112 = vmatpush1.msra.mxu0 0.0
        %1113 = vmatprep.subr.mxu0 0.0
        %1114 = vmatpush1.msra.mxu0 0.0
        %1115 = vmatprep.subr.mxu0 0.0
        %1116 = vmatpush1.msra.mxu0 0.0
        %1117 = vmatprep.subr.mxu0 0.0
        %1118 = vmatpush1.msra.mxu0 0.0
        %1119 = vmatprep.subr.mxu0 0.0
        %1120 = vmatpush1.msra.mxu0 0.0
        %1121 = vmatprep.subr.mxu0 0.0
        %1122 = vmatpush1.msra.mxu0 0.0
        %1123 = vmatprep.subr.mxu0 0.0
        %1124 = vmatpush1.msra.mxu0 0.0
        %1125 = vmatprep.subr.mxu0 0.0
        %1126 = vmatpush1.msra.mxu0 0.0
        %1127 = vmatprep.subr.mxu0 0.0
        %1128 = vmatpush1.msra.mxu0 0.0
        %1129 = vmatprep.subr.mxu0 0.0
        %1130 = vmatpush1.msra.mxu0 0.0
        %1131 = vmatprep.subr.mxu0 0.0
        %1132 = vmatpush1.msra.mxu0 0.0
        %1133 = vmatprep.subr.mxu0 0.0
        %1134 = vmatpush1.msra.mxu0 0.0
        %1135 = vmatprep.subr.mxu0 0.0
        %1136 = vmatpush1.msra.mxu0 0.0
        %1137 = vmatprep.subr.mxu0 0.0
        %1138 = vmatpush1.msra.mxu0 0.0
        %1139 = vmatprep.subr.mxu0 0.0
        %1140 = vmatpush1.msra.mxu0 0.0
        %1141 = vmatprep.subr.mxu0 0.0
        %1142 = vmatpush1.msra.mxu0 0.0
        %1143 = vmatprep.subr.mxu0 0.0
        %1144 = vmatpush1.msra.mxu0 0.0
        %1145 = vmatprep.subr.mxu0 0.0
        %1146 = vmatpush1.msra.mxu0 0.0
        %1147 = vmatprep.subr.mxu0 0.0
        %1148 = vmatpush1.msra.mxu0 0.0
        %1149 = vmatprep.subr.mxu0 0.0
        %1150 = vmatpush1.msra.mxu0 0.0
        %1151 = vmatprep.subr.mxu0 0.0
        %1152 = vmatpush1.msra.mxu0 0.0
        %1153 = vmatprep.subr.mxu0 0.0
        %1154 = vmatpush1.msra.mxu0 0.0
        %1155 = vmatprep.subr.mxu0 0.0
        %1156 = vmatpush1.msra.mxu0 0.0
        %1157 = vmatprep.subr.mxu0 0.0
        %1158 = vmatpush1.msra.mxu0 0.0
        %1159 = vmatprep.subr.mxu0 0.0
        %1160 = vmatpush1.msra.mxu0 0.0
        %1161 = vmatprep.subr.mxu0 0.0
        %1162 = vmatpush1.msra.mxu0 0.0
        %1163 = vmatprep.subr.mxu0 0.0
        %1164 = vmatpush1.msra.mxu0 0.0
        %1165 = vmatprep.mubr.f32.mxu0 0.0
        %1166 = vmatmul.mubr.f32.gmra.mrb[0].mxu0 %v959
        %v1167 = vpop.f32.mrb[0].mxu0
        %v1168 = vadd.f32 0.0, %v1167
        %v1169 = vpop.f32.mrb[0].mxu0
        %1170 = vdwg.mxu0
        %1171 = vmatprep.subr.mxu0 0.0
        %1172 = vmatpush1.msra.mxu0 %v917
        %1173 = vmatprep.subr.mxu0 0.0
        %1174 = vmatpush1.msra.mxu0 %v918
        %1175 = vmatprep.subr.mxu0 0.0
        %1176 = vmatpush1.msra.mxu0 %v919
        %1177 = vmatprep.subr.mxu0 0.0
        %1178 = vmatpush1.msra.mxu0 %v920
        %1179 = vmatprep.subr.mxu0 0.0
        %1180 = vmatpush1.msra.mxu0 0.0
        %1181 = vmatprep.subr.mxu0 0.0
        %1182 = vmatpush1.msra.mxu0 0.0
        %1183 = vmatprep.subr.mxu0 0.0
        %1184 = vmatpush1.msra.mxu0 0.0
        %1185 = vmatprep.subr.mxu0 0.0
        %1186 = vmatpush1.msra.mxu0 0.0
        %1187 = vmatprep.subr.mxu0 0.0
        %1188 = vmatpush1.msra.mxu0 0.0
        %1189 = vmatprep.subr.mxu0 0.0
        %1190 = vmatpush1.msra.mxu0 0.0
        %1191 = vmatprep.subr.mxu0 0.0
        %1192 = vmatpush1.msra.mxu0 0.0
        %1193 = vmatprep.subr.mxu0 0.0
        %1194 = vmatpush1.msra.mxu0 0.0
        %1195 = vmatprep.subr.mxu0 0.0
        %1196 = vmatpush1.msra.mxu0 0.0
        %1197 = vmatprep.subr.mxu0 0.0
        %1198 = vmatpush1.msra.mxu0 0.0
        %1199 = vmatprep.subr.mxu0 0.0
        %1200 = vmatpush1.msra.mxu0 0.0
        %1201 = vmatprep.subr.mxu0 0.0
        %1202 = vmatpush1.msra.mxu0 0.0
        %1203 = vmatprep.subr.mxu0 0.0
        %1204 = vmatpush1.msra.mxu0 0.0
        %1205 = vmatprep.subr.mxu0 0.0
        %1206 = vmatpush1.msra.mxu0 0.0
        %1207 = vmatprep.subr.mxu0 0.0
        %1208 = vmatpush1.msra.mxu0 0.0
        %1209 = vmatprep.subr.mxu0 0.0
        %1210 = vmatpush1.msra.mxu0 0.0
        %1211 = vmatprep.subr.mxu0 0.0
        %1212 = vmatpush1.msra.mxu0 0.0
        %1213 = vmatprep.subr.mxu0 0.0
        %1214 = vmatpush1.msra.mxu0 0.0
        %1215 = vmatprep.subr.mxu0 0.0
        %1216 = vmatpush1.msra.mxu0 0.0
        %1217 = vmatprep.subr.mxu0 0.0
        %1218 = vmatpush1.msra.mxu0 0.0
        %1219 = vmatprep.subr.mxu0 0.0
        %1220 = vmatpush1.msra.mxu0 0.0
        %1221 = vmatprep.subr.mxu0 0.0
        %1222 = vmatpush1.msra.mxu0 0.0
        %1223 = vmatprep.subr.mxu0 0.0
        %1224 = vmatpush1.msra.mxu0 0.0
        %1225 = vmatprep.subr.mxu0 0.0
        %1226 = vmatpush1.msra.mxu0 0.0
        %1227 = vmatprep.subr.mxu0 0.0
        %1228 = vmatpush1.msra.mxu0 0.0
        %1229 = vmatprep.subr.mxu0 0.0
        %1230 = vmatpush1.msra.mxu0 0.0
        %1231 = vmatprep.subr.mxu0 0.0
        %1232 = vmatpush1.msra.mxu0 0.0
        %1233 = vmatprep.subr.mxu0 0.0
        %1234 = vmatpush1.msra.mxu0 0.0
        %1235 = vmatprep.mubr.f32.mxu0 0.0
        %1236 = vmatmul.mubr.f32.gmra.mrb[0].mxu0 %v959
        %v1237 = vpop.f32.mrb[0].mxu0
        %v1238 = vadd.f32 0.0, %v1237
        %v1239 = vpop.f32.mrb[0].mxu0
        %1240 = vdwg.mxu0
        %1241 = vmatprep.subr.mxu0 0.0
        %1242 = vmatpush1.msra.mxu0 %v921
        %1243 = vmatprep.subr.mxu0 0.0
        %1244 = vmatpush1.msra.mxu0 %v922
        %1245 = vmatprep.subr.mxu0 0.0
        %1246 = vmatpush1.msra.mxu0 %v923
        %1247 = vmatprep.subr.mxu0 0.0
        %1248 = vmatpush1.msra.mxu0 %v924
        %1249 = vmatprep.subr.mxu0 0.0
        %1250 = vmatpush1.msra.mxu0 0.0
        %1251 = vmatprep.subr.mxu0 0.0
        %1252 = vmatpush1.msra.mxu0 0.0
        %1253 = vmatprep.subr.mxu0 0.0
        %1254 = vmatpush1.msra.mxu0 0.0
        %1255 = vmatprep.subr.mxu0 0.0
        %1256 = vmatpush1.msra.mxu0 0.0
        %1257 = vmatprep.subr.mxu0 0.0
        %1258 = vmatpush1.msra.mxu0 0.0
        %1259 = vmatprep.subr.mxu0 0.0
        %1260 = vmatpush1.msra.mxu0 0.0
        %1261 = vmatprep.subr.mxu0 0.0
        %1262 = vmatpush1.msra.mxu0 0.0
        %1263 = vmatprep.subr.mxu0 0.0
        %1264 = vmatpush1.msra.mxu0 0.0
        %1265 = vmatprep.subr.mxu0 0.0
        %1266 = vmatpush1.msra.mxu0 0.0
        %1267 = vmatprep.subr.mxu0 0.0
        %1268 = vmatpush1.msra.mxu0 0.0
        %1269 = vmatprep.subr.mxu0 0.0
        %1270 = vmatpush1.msra.mxu0 0.0
        %1271 = vmatprep.subr.mxu0 0.0
        %1272 = vmatpush1.msra.mxu0 0.0
        %1273 = vmatprep.subr.mxu0 0.0
        %1274 = vmatpush1.msra.mxu0 0.0
        %1275 = vmatprep.subr.mxu0 0.0
        %1276 = vmatpush1.msra.mxu0 0.0
        %1277 = vmatprep.subr.mxu0 0.0
        %1278 = vmatpush1.msra.mxu0 0.0
        %1279 = vmatprep.subr.mxu0 0.0
        %1280 = vmatpush1.msra.mxu0 0.0
        %1281 = vmatprep.subr.mxu0 0.0
        %1282 = vmatpush1.msra.mxu0 0.0
        %1283 = vmatprep.subr.mxu0 0.0
        %1284 = vmatpush1.msra.mxu0 0.0
        %1285 = vmatprep.subr.mxu0 0.0
        %1286 = vmatpush1.msra.mxu0 0.0
        %1287 = vmatprep.subr.mxu0 0.0
        %1288 = vmatpush1.msra.mxu0 0.0
        %1289 = vmatprep.subr.mxu0 0.0
        %1290 = vmatpush1.msra.mxu0 0.0
        %1291 = vmatprep.subr.mxu0 0.0
        %1292 = vmatpush1.msra.mxu0 0.0
        %1293 = vmatprep.subr.mxu0 0.0
        %1294 = vmatpush1.msra.mxu0 0.0
        %1295 = vmatprep.subr.mxu0 0.0
        %1296 = vmatpush1.msra.mxu0 0.0
        %1297 = vmatprep.subr.mxu0 0.0
        %1298 = vmatpush1.msra.mxu0 0.0
        %1299 = vmatprep.subr.mxu0 0.0
        %1300 = vmatpush1.msra.mxu0 0.0
        %1301 = vmatprep.subr.mxu0 0.0
        %1302 = vmatpush1.msra.mxu0 0.0
        %1303 = vmatprep.subr.mxu0 0.0
        %1304 = vmatpush1.msra.mxu0 0.0
        %1305 = vmatprep.mubr.f32.mxu0 0.0
        %1306 = vmatmul.mubr.f32.gmra.mrb[0].mxu0 %v959
        %v1307 = vpop.f32.mrb[0].mxu0
        %v1308 = vadd.f32 0.0, %v1307
        %v1309 = vpop.f32.mrb[0].mxu0
        %1310 = vdwg.mxu0
        %1311 = vmatprep.subr.mxu0 0.0
        %1312 = vmatpush1.msra.mxu0 %v925
        %1313 = vmatprep.subr.mxu0 0.0
        %1314 = vmatpush1.msra.mxu0 %v926
        %1315 = vmatprep.subr.mxu0 0.0
        %1316 = vmatpush1.msra.mxu0 %v927
        %1317 = vmatprep.subr.mxu0 0.0
        %1318 = vmatpush1.msra.mxu0 %v928
        %1319 = vmatprep.subr.mxu0 0.0
        %1320 = vmatpush1.msra.mxu0 0.0
        %1321 = vmatprep.subr.mxu0 0.0
        %1322 = vmatpush1.msra.mxu0 0.0
        %1323 = vmatprep.subr.mxu0 0.0
        %1324 = vmatpush1.msra.mxu0 0.0
        %1325 = vmatprep.subr.mxu0 0.0
        %1326 = vmatpush1.msra.mxu0 0.0
        %1327 = vmatprep.subr.mxu0 0.0
        %1328 = vmatpush1.msra.mxu0 0.0
        %1329 = vmatprep.subr.mxu0 0.0
        %1330 = vmatpush1.msra.mxu0 0.0
        %1331 = vmatprep.subr.mxu0 0.0
        %1332 = vmatpush1.msra.mxu0 0.0
        %1333 = vmatprep.subr.mxu0 0.0
        %1334 = vmatpush1.msra.mxu0 0.0
        %1335 = vmatprep.subr.mxu0 0.0
        %1336 = vmatpush1.msra.mxu0 0.0
        %1337 = vmatprep.subr.mxu0 0.0
        %1338 = vmatpush1.msra.mxu0 0.0
        %1339 = vmatprep.subr.mxu0 0.0
        %1340 = vmatpush1.msra.mxu0 0.0
        %1341 = vmatprep.subr.mxu0 0.0
        %1342 = vmatpush1.msra.mxu0 0.0
        %1343 = vmatprep.subr.mxu0 0.0
        %1344 = vmatpush1.msra.mxu0 0.0
        %1345 = vmatprep.subr.mxu0 0.0
        %1346 = vmatpush1.msra.mxu0 0.0
        %1347 = vmatprep.subr.mxu0 0.0
        %1348 = vmatpush1.msra.mxu0 0.0
        %1349 = vmatprep.subr.mxu0 0.0
        %1350 = vmatpush1.msra.mxu0 0.0
        %1351 = vmatprep.subr.mxu0 0.0
        %1352 = vmatpush1.msra.mxu0 0.0
        %1353 = vmatprep.subr.mxu0 0.0
        %1354 = vmatpush1.msra.mxu0 0.0
        %1355 = vmatprep.subr.mxu0 0.0
        %1356 = vmatpush1.msra.mxu0 0.0
        %1357 = vmatprep.subr.mxu0 0.0
        %1358 = vmatpush1.msra.mxu0 0.0
        %1359 = vmatprep.subr.mxu0 0.0
        %1360 = vmatpush1.msra.mxu0 0.0
        %1361 = vmatprep.subr.mxu0 0.0
        %1362 = vmatpush1.msra.mxu0 0.0
        %1363 = vmatprep.subr.mxu0 0.0
        %1364 = vmatpush1.msra.mxu0 0.0
        %1365 = vmatprep.subr.mxu0 0.0
        %1366 = vmatpush1.msra.mxu0 0.0
        %1367 = vmatprep.subr.mxu0 0.0
        %1368 = vmatpush1.msra.mxu0 0.0
        %1369 = vmatprep.subr.mxu0 0.0
        %1370 = vmatpush1.msra.mxu0 0.0
        %1371 = vmatprep.subr.mxu0 0.0
        %1372 = vmatpush1.msra.mxu0 0.0
        %1373 = vmatprep.subr.mxu0 0.0
        %1374 = vmatpush1.msra.mxu0 0.0
        %1375 = vmatprep.mubr.f32.mxu0 0.0
        %1376 = vmatmul.mubr.f32.gmra.mrb[0].mxu0 %v959
        %v1377 = vpop.f32.mrb[0].mxu0
        %v1378 = vadd.f32 0.0, %v1377
        %v1379 = vpop.f32.mrb[0].mxu0
        %1380 = vdwg.mxu0
        %1381 = vmatprep.subr.mxu0 0.0
        %1382 = vmatpush1.msra.mxu0 %v929
        %1383 = vmatprep.subr.mxu0 0.0
        %1384 = vmatpush1.msra.mxu0 %v930
        %1385 = vmatprep.subr.mxu0 0.0
        %1386 = vmatpush1.msra.mxu0 %v931
        %1387 = vmatprep.subr.mxu0 0.0
        %1388 = vmatpush1.msra.mxu0 %v932
        %1389 = vmatprep.subr.mxu0 0.0
        %1390 = vmatpush1.msra.mxu0 0.0
        %1391 = vmatprep.subr.mxu0 0.0
        %1392 = vmatpush1.msra.mxu0 0.0
        %1393 = vmatprep.subr.mxu0 0.0
        %1394 = vmatpush1.msra.mxu0 0.0
        %1395 = vmatprep.subr.mxu0 0.0
        %1396 = vmatpush1.msra.mxu0 0.0
        %1397 = vmatprep.subr.mxu0 0.0
        %1398 = vmatpush1.msra.mxu0 0.0
        %1399 = vmatprep.subr.mxu0 0.0
        %1400 = vmatpush1.msra.mxu0 0.0
        %1401 = vmatprep.subr.mxu0 0.0
        %1402 = vmatpush1.msra.mxu0 0.0
        %1403 = vmatprep.subr.mxu0 0.0
        %1404 = vmatpush1.msra.mxu0 0.0
        %1405 = vmatprep.subr.mxu0 0.0
        %1406 = vmatpush1.msra.mxu0 0.0
        %1407 = vmatprep.subr.mxu0 0.0
        %1408 = vmatpush1.msra.mxu0 0.0
        %1409 = vmatprep.subr.mxu0 0.0
        %1410 = vmatpush1.msra.mxu0 0.0
        %1411 = vmatprep.subr.mxu0 0.0
        %1412 = vmatpush1.msra.mxu0 0.0
        %1413 = vmatprep.subr.mxu0 0.0
        %1414 = vmatpush1.msra.mxu0 0.0
        %1415 = vmatprep.subr.mxu0 0.0
        %1416 = vmatpush1.msra.mxu0 0.0
        %1417 = vmatprep.subr.mxu0 0.0
        %1418 = vmatpush1.msra.mxu0 0.0
        %1419 = vmatprep.subr.mxu0 0.0
        %1420 = vmatpush1.msra.mxu0 0.0
        %1421 = vmatprep.subr.mxu0 0.0
        %1422 = vmatpush1.msra.mxu0 0.0
        %1423 = vmatprep.subr.mxu0 0.0
        %1424 = vmatpush1.msra.mxu0 0.0
        %1425 = vmatprep.subr.mxu0 0.0
        %1426 = vmatpush1.msra.mxu0 0.0
        %1427 = vmatprep.subr.mxu0 0.0
        %1428 = vmatpush1.msra.mxu0 0.0
        %1429 = vmatprep.subr.mxu0 0.0
        %1430 = vmatpush1.msra.mxu0 0.0
        %1431 = vmatprep.subr.mxu0 0.0
        %1432 = vmatpush1.msra.mxu0 0.0
        %1433 = vmatprep.subr.mxu0 0.0
        %1434 = vmatpush1.msra.mxu0 0.0
        %1435 = vmatprep.subr.mxu0 0.0
        %1436 = vmatpush1.msra.mxu0 0.0
        %1437 = vmatprep.subr.mxu0 0.0
        %1438 = vmatpush1.msra.mxu0 0.0
        %1439 = vmatprep.subr.mxu0 0.0
        %1440 = vmatpush1.msra.mxu0 0.0
        %1441 = vmatprep.subr.mxu0 0.0
        %1442 = vmatpush1.msra.mxu0 0.0
        %1443 = vmatprep.subr.mxu0 0.0
        %1444 = vmatpush1.msra.mxu0 0.0
        %1445 = vmatprep.mubr.f32.mxu0 0.0
        %1446 = vmatmul.mubr.f32.gmra.mrb[0].mxu0 %v959
        %v1447 = vpop.f32.mrb[0].mxu0
        %v1448 = vadd.f32 0.0, %v1447
        %v1449 = vpop.f32.mrb[0].mxu0
        %1450 = vdwg.mxu0
        %1451 = vmatprep.subr.mxu0 0.0
        %1452 = vmatpush1.msra.mxu0 %v933
        %1453 = vmatprep.subr.mxu0 0.0
        %1454 = vmatpush1.msra.mxu0 %v934
        %1455 = vmatprep.subr.mxu0 0.0
        %1456 = vmatpush1.msra.mxu0 %v935
        %1457 = vmatprep.subr.mxu0 0.0
        %1458 = vmatpush1.msra.mxu0 %v936
        %1459 = vmatprep.subr.mxu0 0.0
        %1460 = vmatpush1.msra.mxu0 0.0
        %1461 = vmatprep.subr.mxu0 0.0
        %1462 = vmatpush1.msra.mxu0 0.0
        %1463 = vmatprep.subr.mxu0 0.0
        %1464 = vmatpush1.msra.mxu0 0.0
        %1465 = vmatprep.subr.mxu0 0.0
        %1466 = vmatpush1.msra.mxu0 0.0
        %1467 = vmatprep.subr.mxu0 0.0
        %1468 = vmatpush1.msra.mxu0 0.0
        %1469 = vmatprep.subr.mxu0 0.0
        %1470 = vmatpush1.msra.mxu0 0.0
        %1471 = vmatprep.subr.mxu0 0.0
        %1472 = vmatpush1.msra.mxu0 0.0
        %1473 = vmatprep.subr.mxu0 0.0
        %1474 = vmatpush1.msra.mxu0 0.0
        %1475 = vmatprep.subr.mxu0 0.0
        %1476 = vmatpush1.msra.mxu0 0.0
        %1477 = vmatprep.subr.mxu0 0.0
        %1478 = vmatpush1.msra.mxu0 0.0
        %1479 = vmatprep.subr.mxu0 0.0
        %1480 = vmatpush1.msra.mxu0 0.0
        %1481 = vmatprep.subr.mxu0 0.0
        %1482 = vmatpush1.msra.mxu0 0.0
        %1483 = vmatprep.subr.mxu0 0.0
        %1484 = vmatpush1.msra.mxu0 0.0
        %1485 = vmatprep.subr.mxu0 0.0
        %1486 = vmatpush1.msra.mxu0 0.0
        %1487 = vmatprep.subr.mxu0 0.0
        %1488 = vmatpush1.msra.mxu0 0.0
        %1489 = vmatprep.subr.mxu0 0.0
        %1490 = vmatpush1.msra.mxu0 0.0
        %1491 = vmatprep.subr.mxu0 0.0
        %1492 = vmatpush1.msra.mxu0 0.0
        %1493 = vmatprep.subr.mxu0 0.0
        %1494 = vmatpush1.msra.mxu0 0.0
        %1495 = vmatprep.subr.mxu0 0.0
        %1496 = vmatpush1.msra.mxu0 0.0
        %1497 = vmatprep.subr.mxu0 0.0
        %1498 = vmatpush1.msra.mxu0 0.0
        %1499 = vmatprep.subr.mxu0 0.0
        %1500 = vmatpush1.msra.mxu0 0.0
        %1501 = vmatprep.subr.mxu0 0.0
        %1502 = vmatpush1.msra.mxu0 0.0
        %1503 = vmatprep.subr.mxu0 0.0
        %1504 = vmatpush1.msra.mxu0 0.0
        %1505 = vmatprep.subr.mxu0 0.0
        %1506 = vmatpush1.msra.mxu0 0.0
        %1507 = vmatprep.subr.mxu0 0.0
        %1508 = vmatpush1.msra.mxu0 0.0
        %1509 = vmatprep.subr.mxu0 0.0
        %1510 = vmatpush1.msra.mxu0 0.0
        %1511 = vmatprep.subr.mxu0 0.0
        %1512 = vmatpush1.msra.mxu0 0.0
        %1513 = vmatprep.subr.mxu0 0.0
        %1514 = vmatpush1.msra.mxu0 0.0
        %1515 = vmatprep.mubr.f32.mxu0 0.0
        %1516 = vmatmul.mubr.f32.gmra.mrb[0].mxu0 %v959
        %v1517 = vpop.f32.mrb[0].mxu0
        %v1518 = vadd.f32 0.0, %v1517
        %v1519 = vpop.f32.mrb[0].mxu0
        %1520 = vdwg.mxu0
        %1521 = vmatprep.subr.mxu0 0.0
        %1522 = vmatpush1.msra.mxu0 %v937
        %1523 = vmatprep.subr.mxu0 0.0
        %1524 = vmatpush1.msra.mxu0 %v938
        %1525 = vmatprep.subr.mxu0 0.0
        %1526 = vmatpush1.msra.mxu0 %v939
        %1527 = vmatprep.subr.mxu0 0.0
        %1528 = vmatpush1.msra.mxu0 %v940
        %1529 = vmatprep.subr.mxu0 0.0
        %1530 = vmatpush1.msra.mxu0 0.0
        %1531 = vmatprep.subr.mxu0 0.0
        %1532 = vmatpush1.msra.mxu0 0.0
        %1533 = vmatprep.subr.mxu0 0.0
        %1534 = vmatpush1.msra.mxu0 0.0
        %1535 = vmatprep.subr.mxu0 0.0
        %1536 = vmatpush1.msra.mxu0 0.0
        %1537 = vmatprep.subr.mxu0 0.0
        %1538 = vmatpush1.msra.mxu0 0.0
        %1539 = vmatprep.subr.mxu0 0.0
        %1540 = vmatpush1.msra.mxu0 0.0
        %1541 = vmatprep.subr.mxu0 0.0
        %1542 = vmatpush1.msra.mxu0 0.0
        %1543 = vmatprep.subr.mxu0 0.0
        %1544 = vmatpush1.msra.mxu0 0.0
        %1545 = vmatprep.subr.mxu0 0.0
        %1546 = vmatpush1.msra.mxu0 0.0
        %1547 = vmatprep.subr.mxu0 0.0
        %1548 = vmatpush1.msra.mxu0 0.0
        %1549 = vmatprep.subr.mxu0 0.0
        %1550 = vmatpush1.msra.mxu0 0.0
        %1551 = vmatprep.subr.mxu0 0.0
        %1552 = vmatpush1.msra.mxu0 0.0
        %1553 = vmatprep.subr.mxu0 0.0
        %1554 = vmatpush1.msra.mxu0 0.0
        %1555 = vmatprep.subr.mxu0 0.0
        %1556 = vmatpush1.msra.mxu0 0.0
        %1557 = vmatprep.subr.mxu0 0.0
        %1558 = vmatpush1.msra.mxu0 0.0
        %1559 = vmatprep.subr.mxu0 0.0
        %1560 = vmatpush1.msra.mxu0 0.0
        %1561 = vmatprep.subr.mxu0 0.0
        %1562 = vmatpush1.msra.mxu0 0.0
        %1563 = vmatprep.subr.mxu0 0.0
        %1564 = vmatpush1.msra.mxu0 0.0
        %1565 = vmatprep.subr.mxu0 0.0
        %1566 = vmatpush1.msra.mxu0 0.0
        %1567 = vmatprep.subr.mxu0 0.0
        %1568 = vmatpush1.msra.mxu0 0.0
        %1569 = vmatprep.subr.mxu0 0.0
        %1570 = vmatpush1.msra.mxu0 0.0
        %1571 = vmatprep.subr.mxu0 0.0
        %1572 = vmatpush1.msra.mxu0 0.0
        %1573 = vmatprep.subr.mxu0 0.0
        %1574 = vmatpush1.msra.mxu0 0.0
        %1575 = vmatprep.subr.mxu0 0.0
        %1576 = vmatpush1.msra.mxu0 0.0
        %1577 = vmatprep.subr.mxu0 0.0
        %1578 = vmatpush1.msra.mxu0 0.0
        %1579 = vmatprep.subr.mxu0 0.0
        %1580 = vmatpush1.msra.mxu0 0.0
        %1581 = vmatprep.subr.mxu0 0.0
        %1582 = vmatpush1.msra.mxu0 0.0
        %1583 = vmatprep.subr.mxu0 0.0
        %1584 = vmatpush1.msra.mxu0 0.0
        %1585 = vmatprep.mubr.f32.mxu0 0.0
        %1586 = vmatmul.mubr.f32.gmra.mrb[0].mxu0 %v959
        %v1587 = vpop.f32.mrb[0].mxu0
        %v1588 = vadd.f32 0.0, %v1587
        %v1589 = vpop.f32.mrb[0].mxu0
        %1590 = vdwg.mxu0
        %1591 = vmatprep.subr.mxu0 0.0
        %1592 = vmatpush1.msra.mxu0 %v941
        %1593 = vmatprep.subr.mxu0 0.0
        %1594 = vmatpush1.msra.mxu0 %v942
        %1595 = vmatprep.subr.mxu0 0.0
        %1596 = vmatpush1.msra.mxu0 %v943
        %1597 = vmatprep.subr.mxu0 0.0
        %1598 = vmatpush1.msra.mxu0 %v944
        %1599 = vmatprep.subr.mxu0 0.0
        %1600 = vmatpush1.msra.mxu0 0.0
        %1601 = vmatprep.subr.mxu0 0.0
        %1602 = vmatpush1.msra.mxu0 0.0
        %1603 = vmatprep.subr.mxu0 0.0
        %1604 = vmatpush1.msra.mxu0 0.0
        %1605 = vmatprep.subr.mxu0 0.0
        %1606 = vmatpush1.msra.mxu0 0.0
        %1607 = vmatprep.subr.mxu0 0.0
        %1608 = vmatpush1.msra.mxu0 0.0
        %1609 = vmatprep.subr.mxu0 0.0
        %1610 = vmatpush1.msra.mxu0 0.0
        %1611 = vmatprep.subr.mxu0 0.0
        %1612 = vmatpush1.msra.mxu0 0.0
        %1613 = vmatprep.subr.mxu0 0.0
        %1614 = vmatpush1.msra.mxu0 0.0
        %1615 = vmatprep.subr.mxu0 0.0
        %1616 = vmatpush1.msra.mxu0 0.0
        %1617 = vmatprep.subr.mxu0 0.0
        %1618 = vmatpush1.msra.mxu0 0.0
        %1619 = vmatprep.subr.mxu0 0.0
        %1620 = vmatpush1.msra.mxu0 0.0
        %1621 = vmatprep.subr.mxu0 0.0
        %1622 = vmatpush1.msra.mxu0 0.0
        %1623 = vmatprep.subr.mxu0 0.0
        %1624 = vmatpush1.msra.mxu0 0.0
        %1625 = vmatprep.subr.mxu0 0.0
        %1626 = vmatpush1.msra.mxu0 0.0
        %1627 = vmatprep.subr.mxu0 0.0
        %1628 = vmatpush1.msra.mxu0 0.0
        %1629 = vmatprep.subr.mxu0 0.0
        %1630 = vmatpush1.msra.mxu0 0.0
        %1631 = vmatprep.subr.mxu0 0.0
        %1632 = vmatpush1.msra.mxu0 0.0
        %1633 = vmatprep.subr.mxu0 0.0
        %1634 = vmatpush1.msra.mxu0 0.0
        %1635 = vmatprep.subr.mxu0 0.0
        %1636 = vmatpush1.msra.mxu0 0.0
        %1637 = vmatprep.subr.mxu0 0.0
        %1638 = vmatpush1.msra.mxu0 0.0
        %1639 = vmatprep.subr.mxu0 0.0
        %1640 = vmatpush1.msra.mxu0 0.0
        %1641 = vmatprep.subr.mxu0 0.0
        %1642 = vmatpush1.msra.mxu0 0.0
        %1643 = vmatprep.subr.mxu0 0.0
        %1644 = vmatpush1.msra.mxu0 0.0
        %1645 = vmatprep.subr.mxu0 0.0
        %1646 = vmatpush1.msra.mxu0 0.0
        %1647 = vmatprep.subr.mxu0 0.0
        %1648 = vmatpush1.msra.mxu0 0.0
        %1649 = vmatprep.subr.mxu0 0.0
        %1650 = vmatpush1.msra.mxu0 0.0
        %1651 = vmatprep.subr.mxu0 0.0
        %1652 = vmatpush1.msra.mxu0 0.0
        %1653 = vmatprep.subr.mxu0 0.0
        %1654 = vmatpush1.msra.mxu0 0.0
        %1655 = vmatprep.mubr.f32.mxu0 0.0
        %1656 = vmatmul.mubr.f32.gmra.mrb[0].mxu0 %v959
        %v1657 = vpop.f32.mrb[0].mxu0
        %v1658 = vadd.f32 0.0, %v1657
        %v1659 = vpop.f32.mrb[0].mxu0
        %1660 = vdwg.mxu0
        %1661 = vmatprep.subr.mxu0 0.0
        %1662 = vmatpush1.msra.mxu0 %v945
        %1663 = vmatprep.subr.mxu0 0.0
        %1664 = vmatpush1.msra.mxu0 %v946
        %1665 = vmatprep.subr.mxu0 0.0
        %1666 = vmatpush1.msra.mxu0 %v947
        %1667 = vmatprep.subr.mxu0 0.0
        %1668 = vmatpush1.msra.mxu0 %v948
        %1669 = vmatprep.subr.mxu0 0.0
        %1670 = vmatpush1.msra.mxu0 0.0
        %1671 = vmatprep.subr.mxu0 0.0
        %1672 = vmatpush1.msra.mxu0 0.0
        %1673 = vmatprep.subr.mxu0 0.0
        %1674 = vmatpush1.msra.mxu0 0.0
        %1675 = vmatprep.subr.mxu0 0.0
        %1676 = vmatpush1.msra.mxu0 0.0
        %1677 = vmatprep.subr.mxu0 0.0
        %1678 = vmatpush1.msra.mxu0 0.0
        %1679 = vmatprep.subr.mxu0 0.0
        %1680 = vmatpush1.msra.mxu0 0.0
        %1681 = vmatprep.subr.mxu0 0.0
        %1682 = vmatpush1.msra.mxu0 0.0
        %1683 = vmatprep.subr.mxu0 0.0
        %1684 = vmatpush1.msra.mxu0 0.0
        %1685 = vmatprep.subr.mxu0 0.0
        %1686 = vmatpush1.msra.mxu0 0.0
        %1687 = vmatprep.subr.mxu0 0.0
        %1688 = vmatpush1.msra.mxu0 0.0
        %1689 = vmatprep.subr.mxu0 0.0
        %1690 = vmatpush1.msra.mxu0 0.0
        %1691 = vmatprep.subr.mxu0 0.0
        %1692 = vmatpush1.msra.mxu0 0.0
        %1693 = vmatprep.subr.mxu0 0.0
        %1694 = vmatpush1.msra.mxu0 0.0
        %1695 = vmatprep.subr.mxu0 0.0
        %1696 = vmatpush1.msra.mxu0 0.0
        %1697 = vmatprep.subr.mxu0 0.0
        %1698 = vmatpush1.msra.mxu0 0.0
        %1699 = vmatprep.subr.mxu0 0.0
        %1700 = vmatpush1.msra.mxu0 0.0
        %1701 = vmatprep.subr.mxu0 0.0
        %1702 = vmatpush1.msra.mxu0 0.0
        %1703 = vmatprep.subr.mxu0 0.0
        %1704 = vmatpush1.msra.mxu0 0.0
        %1705 = vmatprep.subr.mxu0 0.0
        %1706 = vmatpush1.msra.mxu0 0.0
        %1707 = vmatprep.subr.mxu0 0.0
        %1708 = vmatpush1.msra.mxu0 0.0
        %1709 = vmatprep.subr.mxu0 0.0
        %1710 = vmatpush1.msra.mxu0 0.0
        %1711 = vmatprep.subr.mxu0 0.0
        %1712 = vmatpush1.msra.mxu0 0.0
        %1713 = vmatprep.subr.mxu0 0.0
        %1714 = vmatpush1.msra.mxu0 0.0
        %1715 = vmatprep.subr.mxu0 0.0
        %1716 = vmatpush1.msra.mxu0 0.0
        %1717 = vmatprep.subr.mxu0 0.0
        %1718 = vmatpush1.msra.mxu0 0.0
        %1719 = vmatprep.subr.mxu0 0.0
        %1720 = vmatpush1.msra.mxu0 0.0
        %1721 = vmatprep.subr.mxu0 0.0
        %1722 = vmatpush1.msra.mxu0 0.0
        %1723 = vmatprep.subr.mxu0 0.0
        %1724 = vmatpush1.msra.mxu0 0.0
        %1725 = vmatprep.mubr.f32.mxu0 0.0
        %1726 = vmatmul.mubr.f32.gmra.mrb[0].mxu0 %v959
        %v1727 = vpop.f32.mrb[0].mxu0
        %v1728 = vadd.f32 0.0, %v1727
        %v1729 = vpop.f32.mrb[0].mxu0
        %1730 = vdwg.mxu0
        %1731 = vmatprep.subr.mxu0 0.0
        %1732 = vmatpush1.msra.mxu0 %v949
        %1733 = vmatprep.subr.mxu0 0.0
        %1734 = vmatpush1.msra.mxu0 %v950
        %1735 = vmatprep.subr.mxu0 0.0
        %1736 = vmatpush1.msra.mxu0 %v951
        %1737 = vmatprep.subr.mxu0 0.0
        %1738 = vmatpush1.msra.mxu0 %v952
        %1739 = vmatprep.subr.mxu0 0.0
        %1740 = vmatpush1.msra.mxu0 0.0
        %1741 = vmatprep.subr.mxu0 0.0
        %1742 = vmatpush1.msra.mxu0 0.0
        %1743 = vmatprep.subr.mxu0 0.0
        %1744 = vmatpush1.msra.mxu0 0.0
        %1745 = vmatprep.subr.mxu0 0.0
        %1746 = vmatpush1.msra.mxu0 0.0
        %1747 = vmatprep.subr.mxu0 0.0
        %1748 = vmatpush1.msra.mxu0 0.0
        %1749 = vmatprep.subr.mxu0 0.0
        %1750 = vmatpush1.msra.mxu0 0.0
        %1751 = vmatprep.subr.mxu0 0.0
        %1752 = vmatpush1.msra.mxu0 0.0
        %1753 = vmatprep.subr.mxu0 0.0
        %1754 = vmatpush1.msra.mxu0 0.0
        %1755 = vmatprep.subr.mxu0 0.0
        %1756 = vmatpush1.msra.mxu0 0.0
        %1757 = vmatprep.subr.mxu0 0.0
        %1758 = vmatpush1.msra.mxu0 0.0
        %1759 = vmatprep.subr.mxu0 0.0
        %1760 = vmatpush1.msra.mxu0 0.0
        %1761 = vmatprep.subr.mxu0 0.0
        %1762 = vmatpush1.msra.mxu0 0.0
        %1763 = vmatprep.subr.mxu0 0.0
        %1764 = vmatpush1.msra.mxu0 0.0
        %1765 = vmatprep.subr.mxu0 0.0
        %1766 = vmatpush1.msra.mxu0 0.0
        %1767 = vmatprep.subr.mxu0 0.0
        %1768 = vmatpush1.msra.mxu0 0.0
        %1769 = vmatprep.subr.mxu0 0.0
        %1770 = vmatpush1.msra.mxu0 0.0
        %1771 = vmatprep.subr.mxu0 0.0
        %1772 = vmatpush1.msra.mxu0 0.0
        %1773 = vmatprep.subr.mxu0 0.0
        %1774 = vmatpush1.msra.mxu0 0.0
        %1775 = vmatprep.subr.mxu0 0.0
        %1776 = vmatpush1.msra.mxu0 0.0
        %1777 = vmatprep.subr.mxu0 0.0
        %1778 = vmatpush1.msra.mxu0 0.0
        %1779 = vmatprep.subr.mxu0 0.0
        %1780 = vmatpush1.msra.mxu0 0.0
        %1781 = vmatprep.subr.mxu0 0.0
        %1782 = vmatpush1.msra.mxu0 0.0
        %1783 = vmatprep.subr.mxu0 0.0
        %1784 = vmatpush1.msra.mxu0 0.0
        %1785 = vmatprep.subr.mxu0 0.0
        %1786 = vmatpush1.msra.mxu0 0.0
        %1787 = vmatprep.subr.mxu0 0.0
        %1788 = vmatpush1.msra.mxu0 0.0
        %1789 = vmatprep.subr.mxu0 0.0
        %1790 = vmatpush1.msra.mxu0 0.0
        %1791 = vmatprep.subr.mxu0 0.0
        %1792 = vmatpush1.msra.mxu0 0.0
        %1793 = vmatprep.subr.mxu0 0.0
        %1794 = vmatpush1.msra.mxu0 0.0
        %1795 = vmatprep.mubr.f32.mxu0 0.0
        %1796 = vmatmul.mubr.f32.gmra.mrb[0].mxu0 %v959
        %v1797 = vpop.f32.mrb[0].mxu0
        %v1798 = vadd.f32 0.0, %v1797
        %v1799 = vpop.f32.mrb[0].mxu0
        %1800 = vdwg.mxu0
        %vm1801 = vcmask 64512
        %v1803 = vsel %vm1801, %v1028, 0
        %v1806 = vsel %vm1801, %v1308, 0
        %1808 = vmatprep.subr.mxu0 0.0
        %1809 = vmatpush1.xpose.msra.mxu0 %v1806
        %1810 = vmatprep.subr.mxu0 0.0
        %1811 = vmatpush1.xpose.msra.mxu0 0.0
        %1812 = vmatprep.subr.mxu0 0.0
        %1813 = vmatpush1.xpose.msra.mxu0 0.0
        %1814 = vmatprep.subr.mxu0 0.0
        %1815 = vmatpush1.xpose.msra.mxu0 0.0
        %1816 = vmatprep.subr.mxu0 0.0
        %1817 = vmatpush1.xpose.msra.mxu0 0.0
        %1818 = vmatprep.subr.mxu0 0.0
        %1819 = vmatpush1.xpose.msra.mxu0 0.0
        %1820 = vmatprep.subr.mxu0 0.0
        %1821 = vmatpush1.xpose.msra.mxu0 0.0
        %1822 = vmatprep.subr.mxu0 0.0
        %1823 = vmatpush1.xpose.msra.mxu0 0.0
        %1824 = vmatprep.subr.mxu0 0.0
        %1825 = vmatpush1.xpose.msra.mxu0 0.0
        %1826 = vmatprep.subr.mxu0 0.0
        %1827 = vmatpush1.xpose.msra.mxu0 0.0
        %1828 = vmatprep.subr.mxu0 0.0
        %1829 = vmatpush1.xpose.msra.mxu0 0.0
        %1830 = vmatprep.subr.mxu0 0.0
        %1831 = vmatpush1.xpose.msra.mxu0 0.0
        %1832 = vmatprep.subr.mxu0 0.0
        %1833 = vmatpush1.xpose.msra.mxu0 0.0
        %1834 = vmatprep.subr.mxu0 0.0
        %1835 = vmatpush1.xpose.msra.mxu0 0.0
        %1836 = vmatprep.subr.mxu0 0.0
        %1837 = vmatpush1.xpose.msra.mxu0 0.0
        %1838 = vmatprep.subr.mxu0 0.0
        %1839 = vmatpush1.xpose.msra.mxu0 0.0
        %1840 = vmatprep.subr.mxu0 0.0
        %1841 = vmatpush1.xpose.msra.mxu0 0.0
        %1842 = vmatprep.subr.mxu0 0.0
        %1843 = vmatpush1.xpose.msra.mxu0 0.0
        %1844 = vmatprep.subr.mxu0 0.0
        %1845 = vmatpush1.xpose.msra.mxu0 0.0
        %1846 = vmatprep.subr.mxu0 0.0
        %1847 = vmatpush1.xpose.msra.mxu0 0.0
        %1848 = vmatprep.subr.mxu0 0.0
        %1849 = vmatpush1.xpose.msra.mxu0 0.0
        %1850 = vmatprep.subr.mxu0 0.0
        %1851 = vmatpush1.xpose.msra.mxu0 0.0
        %1852 = vmatprep.subr.mxu0 0.0
        %1853 = vmatpush1.xpose.msra.mxu0 0.0
        %1854 = vmatprep.subr.mxu0 0.0
        %1855 = vmatpush1.xpose.msra.mxu0 0.0
        %1856 = vmatprep.subr.mxu0 0.0
        %1857 = vmatpush1.xpose.msra.mxu0 0.0
        %1858 = vmatprep.subr.mxu0 0.0
        %1859 = vmatpush1.xpose.msra.mxu0 0.0
        %1860 = vmatprep.subr.mxu0 0.0
        %1861 = vmatpush1.xpose.msra.mxu0 0.0
        %1862 = vmatprep.subr.mxu0 0.0
        %1863 = vmatpush1.xpose.msra.mxu0 0.0
        %1864 = vmatprep.subr.mxu0 0.0
        %1865 = vmatpush1.xpose.msra.mxu0 0.0
        %1866 = vmatprep.subr.mxu0 0.0
        %1867 = vmatpush1.xpose.msra.mxu0 0.0
        %1868 = vmatprep.subr.mxu0 0.0
        %1869 = vmatpush1.xpose.msra.mxu0 0.0
        %1870 = vmatprep.subr.mxu0 0.0
        %1871 = vmatpush1.xpose.msra.mxu0 0.0
        %1872 = vmatprep.mubr.f32.mxu0 0.0
        %1873 = vmatmul.mubr.f32.gmra.mrb[0].mxu0 %v1803
        %v1874 = vpop.f32.mrb[0].mxu0
        %v1875 = vadd.f32 0.0, %v1874
        %v1876 = vpop.f32.mrb[0].mxu0
        %1877 = vdwg.mxu0
        %v1879 = vsel %vm1801, %v1098, 0
        %v1882 = vsel %vm1801, %v1378, 0
        %1884 = vmatprep.subr.mxu0 0.0
        %1885 = vmatpush1.xpose.msra.mxu0 %v1882
        %1886 = vmatprep.subr.mxu0 0.0
        %1887 = vmatpush1.xpose.msra.mxu0 0.0
        %1888 = vmatprep.subr.mxu0 0.0
        %1889 = vmatpush1.xpose.msra.mxu0 0.0
        %1890 = vmatprep.subr.mxu0 0.0
        %1891 = vmatpush1.xpose.msra.mxu0 0.0
        %1892 = vmatprep.subr.mxu0 0.0
        %1893 = vmatpush1.xpose.msra.mxu0 0.0
        %1894 = vmatprep.subr.mxu0 0.0
        %1895 = vmatpush1.xpose.msra.mxu0 0.0
        %1896 = vmatprep.subr.mxu0 0.0
        %1897 = vmatpush1.xpose.msra.mxu0 0.0
        %1898 = vmatprep.subr.mxu0 0.0
        %1899 = vmatpush1.xpose.msra.mxu0 0.0
        %1900 = vmatprep.subr.mxu0 0.0
        %1901 = vmatpush1.xpose.msra.mxu0 0.0
        %1902 = vmatprep.subr.mxu0 0.0
        %1903 = vmatpush1.xpose.msra.mxu0 0.0
        %1904 = vmatprep.subr.mxu0 0.0
        %1905 = vmatpush1.xpose.msra.mxu0 0.0
        %1906 = vmatprep.subr.mxu0 0.0
        %1907 = vmatpush1.xpose.msra.mxu0 0.0
        %1908 = vmatprep.subr.mxu0 0.0
        %1909 = vmatpush1.xpose.msra.mxu0 0.0
        %1910 = vmatprep.subr.mxu0 0.0
        %1911 = vmatpush1.xpose.msra.mxu0 0.0
        %1912 = vmatprep.subr.mxu0 0.0
        %1913 = vmatpush1.xpose.msra.mxu0 0.0
        %1914 = vmatprep.subr.mxu0 0.0
        %1915 = vmatpush1.xpose.msra.mxu0 0.0
        %1916 = vmatprep.subr.mxu0 0.0
        %1917 = vmatpush1.xpose.msra.mxu0 0.0
        %1918 = vmatprep.subr.mxu0 0.0
        %1919 = vmatpush1.xpose.msra.mxu0 0.0
        %1920 = vmatprep.subr.mxu0 0.0
        %1921 = vmatpush1.xpose.msra.mxu0 0.0
        %1922 = vmatprep.subr.mxu0 0.0
        %1923 = vmatpush1.xpose.msra.mxu0 0.0
        %1924 = vmatprep.subr.mxu0 0.0
        %1925 = vmatpush1.xpose.msra.mxu0 0.0
        %1926 = vmatprep.subr.mxu0 0.0
        %1927 = vmatpush1.xpose.msra.mxu0 0.0
        %1928 = vmatprep.subr.mxu0 0.0
        %1929 = vmatpush1.xpose.msra.mxu0 0.0
        %1930 = vmatprep.subr.mxu0 0.0
        %1931 = vmatpush1.xpose.msra.mxu0 0.0
        %1932 = vmatprep.subr.mxu0 0.0
        %1933 = vmatpush1.xpose.msra.mxu0 0.0
        %1934 = vmatprep.subr.mxu0 0.0
        %1935 = vmatpush1.xpose.msra.mxu0 0.0
        %1936 = vmatprep.subr.mxu0 0.0
        %1937 = vmatpush1.xpose.msra.mxu0 0.0
        %1938 = vmatprep.subr.mxu0 0.0
        %1939 = vmatpush1.xpose.msra.mxu0 0.0
        %1940 = vmatprep.subr.mxu0 0.0
        %1941 = vmatpush1.xpose.msra.mxu0 0.0
        %1942 = vmatprep.subr.mxu0 0.0
        %1943 = vmatpush1.xpose.msra.mxu0 0.0
        %1944 = vmatprep.subr.mxu0 0.0
        %1945 = vmatpush1.xpose.msra.mxu0 0.0
        %1946 = vmatprep.subr.mxu0 0.0
        %1947 = vmatpush1.xpose.msra.mxu0 0.0
        %1948 = vmatprep.mubr.f32.mxu0 0.0
        %1949 = vmatmul.mubr.f32.gmra.mrb[0].mxu0 %v1879
        %v1950 = vpop.f32.mrb[0].mxu0
        %v1951 = vadd.f32 0.0, %v1950
        %v1952 = vpop.f32.mrb[0].mxu0
        %1953 = vdwg.mxu0
        %v1955 = vsel %vm1801, %v1168, 0
        %v1958 = vsel %vm1801, %v1448, 0
        %1960 = vmatprep.subr.mxu0 0.0
        %1961 = vmatpush1.xpose.msra.mxu0 %v1958
        %1962 = vmatprep.subr.mxu0 0.0
        %1963 = vmatpush1.xpose.msra.mxu0 0.0
        %1964 = vmatprep.subr.mxu0 0.0
        %1965 = vmatpush1.xpose.msra.mxu0 0.0
        %1966 = vmatprep.subr.mxu0 0.0
        %1967 = vmatpush1.xpose.msra.mxu0 0.0
        %1968 = vmatprep.subr.mxu0 0.0
        %1969 = vmatpush1.xpose.msra.mxu0 0.0
        %1970 = vmatprep.subr.mxu0 0.0
        %1971 = vmatpush1.xpose.msra.mxu0 0.0
        %1972 = vmatprep.subr.mxu0 0.0
        %1973 = vmatpush1.xpose.msra.mxu0 0.0
        %1974 = vmatprep.subr.mxu0 0.0
        %1975 = vmatpush1.xpose.msra.mxu0 0.0
        %1976 = vmatprep.subr.mxu0 0.0
        %1977 = vmatpush1.xpose.msra.mxu0 0.0
        %1978 = vmatprep.subr.mxu0 0.0
        %1979 = vmatpush1.xpose.msra.mxu0 0.0
        %1980 = vmatprep.subr.mxu0 0.0
        %1981 = vmatpush1.xpose.msra.mxu0 0.0
        %1982 = vmatprep.subr.mxu0 0.0
        %1983 = vmatpush1.xpose.msra.mxu0 0.0
        %1984 = vmatprep.subr.mxu0 0.0
        %1985 = vmatpush1.xpose.msra.mxu0 0.0
        %1986 = vmatprep.subr.mxu0 0.0
        %1987 = vmatpush1.xpose.msra.mxu0 0.0
        %1988 = vmatprep.subr.mxu0 0.0
        %1989 = vmatpush1.xpose.msra.mxu0 0.0
        %1990 = vmatprep.subr.mxu0 0.0
        %1991 = vmatpush1.xpose.msra.mxu0 0.0
        %1992 = vmatprep.subr.mxu0 0.0
        %1993 = vmatpush1.xpose.msra.mxu0 0.0
        %1994 = vmatprep.subr.mxu0 0.0
        %1995 = vmatpush1.xpose.msra.mxu0 0.0
        %1996 = vmatprep.subr.mxu0 0.0
        %1997 = vmatpush1.xpose.msra.mxu0 0.0
        %1998 = vmatprep.subr.mxu0 0.0
        %1999 = vmatpush1.xpose.msra.mxu0 0.0
        %2000 = vmatprep.subr.mxu0 0.0
        %2001 = vmatpush1.xpose.msra.mxu0 0.0
        %2002 = vmatprep.subr.mxu0 0.0
        %2003 = vmatpush1.xpose.msra.mxu0 0.0
        %2004 = vmatprep.subr.mxu0 0.0
        %2005 = vmatpush1.xpose.msra.mxu0 0.0
        %2006 = vmatprep.subr.mxu0 0.0
        %2007 = vmatpush1.xpose.msra.mxu0 0.0
        %2008 = vmatprep.subr.mxu0 0.0
        %2009 = vmatpush1.xpose.msra.mxu0 0.0
        %2010 = vmatprep.subr.mxu0 0.0
        %2011 = vmatpush1.xpose.msra.mxu0 0.0
        %2012 = vmatprep.subr.mxu0 0.0
        %2013 = vmatpush1.xpose.msra.mxu0 0.0
        %2014 = vmatprep.subr.mxu0 0.0
        %2015 = vmatpush1.xpose.msra.mxu0 0.0
        %2016 = vmatprep.subr.mxu0 0.0
        %2017 = vmatpush1.xpose.msra.mxu0 0.0
        %2018 = vmatprep.subr.mxu0 0.0
        %2019 = vmatpush1.xpose.msra.mxu0 0.0
        %2020 = vmatprep.subr.mxu0 0.0
        %2021 = vmatpush1.xpose.msra.mxu0 0.0
        %2022 = vmatprep.subr.mxu0 0.0
        %2023 = vmatpush1.xpose.msra.mxu0 0.0
        %2024 = vmatprep.mubr.f32.mxu0 0.0
        %2025 = vmatmul.mubr.f32.gmra.mrb[0].mxu0 %v1955
        %v2026 = vpop.f32.mrb[0].mxu0
        %v2027 = vadd.f32 0.0, %v2026
        %v2028 = vpop.f32.mrb[0].mxu0
        %2029 = vdwg.mxu0
        %v2031 = vsel %vm1801, %v1238, 0
        %v2034 = vsel %vm1801, %v1518, 0
        %2036 = vmatprep.subr.mxu0 0.0
        %2037 = vmatpush1.xpose.msra.mxu0 %v2034
        %2038 = vmatprep.subr.mxu0 0.0
        %2039 = vmatpush1.xpose.msra.mxu0 0.0
        %2040 = vmatprep.subr.mxu0 0.0
        %2041 = vmatpush1.xpose.msra.mxu0 0.0
        %2042 = vmatprep.subr.mxu0 0.0
        %2043 = vmatpush1.xpose.msra.mxu0 0.0
        %2044 = vmatprep.subr.mxu0 0.0
        %2045 = vmatpush1.xpose.msra.mxu0 0.0
        %2046 = vmatprep.subr.mxu0 0.0
        %2047 = vmatpush1.xpose.msra.mxu0 0.0
        %2048 = vmatprep.subr.mxu0 0.0
        %2049 = vmatpush1.xpose.msra.mxu0 0.0
        %2050 = vmatprep.subr.mxu0 0.0
        %2051 = vmatpush1.xpose.msra.mxu0 0.0
        %2052 = vmatprep.subr.mxu0 0.0
        %2053 = vmatpush1.xpose.msra.mxu0 0.0
        %2054 = vmatprep.subr.mxu0 0.0
        %2055 = vmatpush1.xpose.msra.mxu0 0.0
        %2056 = vmatprep.subr.mxu0 0.0
        %2057 = vmatpush1.xpose.msra.mxu0 0.0
        %2058 = vmatprep.subr.mxu0 0.0
        %2059 = vmatpush1.xpose.msra.mxu0 0.0
        %2060 = vmatprep.subr.mxu0 0.0
        %2061 = vmatpush1.xpose.msra.mxu0 0.0
        %2062 = vmatprep.subr.mxu0 0.0
        %2063 = vmatpush1.xpose.msra.mxu0 0.0
        %2064 = vmatprep.subr.mxu0 0.0
        %2065 = vmatpush1.xpose.msra.mxu0 0.0
        %2066 = vmatprep.subr.mxu0 0.0
        %2067 = vmatpush1.xpose.msra.mxu0 0.0
        %2068 = vmatprep.subr.mxu0 0.0
        %2069 = vmatpush1.xpose.msra.mxu0 0.0
        %2070 = vmatprep.subr.mxu0 0.0
        %2071 = vmatpush1.xpose.msra.mxu0 0.0
        %2072 = vmatprep.subr.mxu0 0.0
        %2073 = vmatpush1.xpose.msra.mxu0 0.0
        %2074 = vmatprep.subr.mxu0 0.0
        %2075 = vmatpush1.xpose.msra.mxu0 0.0
        %2076 = vmatprep.subr.mxu0 0.0
        %2077 = vmatpush1.xpose.msra.mxu0 0.0
        %2078 = vmatprep.subr.mxu0 0.0
        %2079 = vmatpush1.xpose.msra.mxu0 0.0
        %2080 = vmatprep.subr.mxu0 0.0
        %2081 = vmatpush1.xpose.msra.mxu0 0.0
        %2082 = vmatprep.subr.mxu0 0.0
        %2083 = vmatpush1.xpose.msra.mxu0 0.0
        %2084 = vmatprep.subr.mxu0 0.0
        %2085 = vmatpush1.xpose.msra.mxu0 0.0
        %2086 = vmatprep.subr.mxu0 0.0
        %2087 = vmatpush1.xpose.msra.mxu0 0.0
        %2088 = vmatprep.subr.mxu0 0.0
        %2089 = vmatpush1.xpose.msra.mxu0 0.0
        %2090 = vmatprep.subr.mxu0 0.0
        %2091 = vmatpush1.xpose.msra.mxu0 0.0
        %2092 = vmatprep.subr.mxu0 0.0
        %2093 = vmatpush1.xpose.msra.mxu0 0.0
        %2094 = vmatprep.subr.mxu0 0.0
        %2095 = vmatpush1.xpose.msra.mxu0 0.0
        %2096 = vmatprep.subr.mxu0 0.0
        %2097 = vmatpush1.xpose.msra.mxu0 0.0
        %2098 = vmatprep.subr.mxu0 0.0
        %2099 = vmatpush1.xpose.msra.mxu0 0.0
        %2100 = vmatprep.mubr.f32.mxu0 0.0
        %2101 = vmatmul.mubr.f32.gmra.mrb[0].mxu0 %v2031
        %v2102 = vpop.f32.mrb[0].mxu0
        %v2103 = vadd.f32 0.0, %v2102
        %v2104 = vpop.f32.mrb[0].mxu0
        %2105 = vdwg.mxu0
        %v2106 = vsel %vm902, 1, 0
        %vm2107 = vcmp.eq.s32.totalorder %v2106, 1
        %v2108 = vsel %vm2107, -1e+09, %v1875
        %v2109 = vsel %vm2107, -1e+09, %v1951
        %v2110 = vsel %vm2107, -1e+09, %v2027
        %v2111 = vsel %vm2107, -1e+09, %v2103
        %v2112 = vsel %vm1801, %v2108, -inf
        %2113 = vmax.xlane.f32.xlu0 %v2112
        %v2114 = vpop.xlane.xlu0 %2113
        %v2115 = vsel %vm1801, %v2109, -inf
        %2116 = vmax.xlane.f32.xlu0 %v2115
        %v2117 = vpop.xlane.xlu0 %2116
        %v2118 = vsel %vm1801, %v2110, -inf
        %2119 = vmax.xlane.f32.xlu0 %v2118
        %v2120 = vpop.xlane.xlu0 %2119
        %v2121 = vsel %vm1801, %v2111, -inf
        %2122 = vmax.xlane.f32.xlu0 %v2121
        %v2123 = vpop.xlane.xlu0 %2122
        %v2124 = vsub.f32 %v2108, %v2114
        %v2125 = vsub.f32 %v2109, %v2117
        %v2126 = vsub.f32 %v2110, %v2120
        %v2127 = vsub.f32 %v2111, %v2123
        %v2128 = vmul.f32 %v2124, 1.442695
        %v2129 = vpow.pop %v2128
        %v2130 = vmul.f32 %v2125, 1.442695
        %v2131 = vpow.pop %v2130
        %v2132 = vmul.f32 %v2126, 1.442695
        %v2133 = vpow.pop %v2132
        %v2134 = vmul.f32 %v2127, 1.442695
        %v2135 = vpow.pop %v2134
        %v2136 = vsel %vm1801, %v2129, 0.0
        %2137 = vadd.xlane.f32.xlu0 %v2136
        %v2138 = vpop.xlane.xlu0 %2137
        %v2139 = vsel %vm1801, %v2131, 0.0
        %2140 = vadd.xlane.f32.xlu0 %v2139
        %v2141 = vpop.xlane.xlu0 %2140
        %v2142 = vsel %vm1801, %v2133, 0.0
        %2143 = vadd.xlane.f32.xlu0 %v2142
        %v2144 = vpop.xlane.xlu0 %2143
        %v2145 = vsel %vm1801, %v2135, 0.0
        %2146 = vadd.xlane.f32.xlu0 %v2145
        %v2147 = vpop.xlane.xlu0 %2146
        %v2148 = vrcp.pop %v2138
        %v2149 = vrcp.pop %v2141
        %v2150 = vrcp.pop %v2144
        %v2151 = vrcp.pop %v2147
        %v2152 = vmul.f32 %v2129, %v2148
        %v2153 = vmul.f32 %v2131, %v2149
        %v2154 = vmul.f32 %v2133, %v2150
        %v2155 = vmul.f32 %v2135, %v2151
        %v2157 = vsel %vm1801, %v2152, 0
        %2159 = vmatprep.subr.mxu0 0.0
        %2160 = vmatpush1.msra.mxu0 %v1588
        %2161 = vmatprep.subr.mxu0 0.0
        %2162 = vmatpush1.msra.mxu0 0.0
        %2163 = vmatprep.subr.mxu0 0.0
        %2164 = vmatpush1.msra.mxu0 0.0
        %2165 = vmatprep.subr.mxu0 0.0
        %2166 = vmatpush1.msra.mxu0 0.0
        %2167 = vmatprep.subr.mxu0 0.0
        %2168 = vmatpush1.msra.mxu0 0.0
        %2169 = vmatprep.subr.mxu0 0.0
        %2170 = vmatpush1.msra.mxu0 0.0
        %2171 = vmatprep.subr.mxu0 0.0
        %2172 = vmatpush1.msra.mxu0 0.0
        %2173 = vmatprep.subr.mxu0 0.0
        %2174 = vmatpush1.msra.mxu0 0.0
        %2175 = vmatprep.subr.mxu0 0.0
        %2176 = vmatpush1.msra.mxu0 0.0
        %2177 = vmatprep.subr.mxu0 0.0
        %2178 = vmatpush1.msra.mxu0 0.0
        %2179 = vmatprep.subr.mxu0 0.0
        %2180 = vmatpush1.msra.mxu0 0.0
        %2181 = vmatprep.subr.mxu0 0.0
        %2182 = vmatpush1.msra.mxu0 0.0
        %2183 = vmatprep.subr.mxu0 0.0
        %2184 = vmatpush1.msra.mxu0 0.0
        %2185 = vmatprep.subr.mxu0 0.0
        %2186 = vmatpush1.msra.mxu0 0.0
        %2187 = vmatprep.subr.mxu0 0.0
        %2188 = vmatpush1.msra.mxu0 0.0
        %2189 = vmatprep.subr.mxu0 0.0
        %2190 = vmatpush1.msra.mxu0 0.0
        %2191 = vmatprep.subr.mxu0 0.0
        %2192 = vmatpush1.msra.mxu0 0.0
        %2193 = vmatprep.subr.mxu0 0.0
        %2194 = vmatpush1.msra.mxu0 0.0
        %2195 = vmatprep.subr.mxu0 0.0
        %2196 = vmatpush1.msra.mxu0 0.0
        %2197 = vmatprep.subr.mxu0 0.0
        %2198 = vmatpush1.msra.mxu0 0.0
        %2199 = vmatprep.subr.mxu0 0.0
        %2200 = vmatpush1.msra.mxu0 0.0
        %2201 = vmatprep.subr.mxu0 0.0
        %2202 = vmatpush1.msra.mxu0 0.0
        %2203 = vmatprep.subr.mxu0 0.0
        %2204 = vmatpush1.msra.mxu0 0.0
        %2205 = vmatprep.subr.mxu0 0.0
        %2206 = vmatpush1.msra.mxu0 0.0
        %2207 = vmatprep.subr.mxu0 0.0
        %2208 = vmatpush1.msra.mxu0 0.0
        %2209 = vmatprep.subr.mxu0 0.0
        %2210 = vmatpush1.msra.mxu0 0.0
        %2211 = vmatprep.subr.mxu0 0.0
        %2212 = vmatpush1.msra.mxu0 0.0
        %2213 = vmatprep.subr.mxu0 0.0
        %2214 = vmatpush1.msra.mxu0 0.0
        %2215 = vmatprep.subr.mxu0 0.0
        %2216 = vmatpush1.msra.mxu0 0.0
        %2217 = vmatprep.subr.mxu0 0.0
        %2218 = vmatpush1.msra.mxu0 0.0
        %2219 = vmatprep.subr.mxu0 0.0
        %2220 = vmatpush1.msra.mxu0 0.0
        %2221 = vmatprep.subr.mxu0 0.0
        %2222 = vmatpush1.msra.mxu0 0.0
        %2223 = vmatprep.mubr.f32.mxu0 0.0
        %2224 = vmatmul.mubr.f32.gmra.mrb[0].mxu0 %v2157
        %v2225 = vpop.f32.mrb[0].mxu0
        %v2226 = vadd.f32 0.0, %v2225
        %v2227 = vpop.f32.mrb[0].mxu0
        %2228 = vdwg.mxu0
        %v2230 = vsel %vm1801, %v2153, 0
        %2232 = vmatprep.subr.mxu0 0.0
        %2233 = vmatpush1.msra.mxu0 %v1658
        %2234 = vmatprep.subr.mxu0 0.0
        %2235 = vmatpush1.msra.mxu0 0.0
        %2236 = vmatprep.subr.mxu0 0.0
        %2237 = vmatpush1.msra.mxu0 0.0
        %2238 = vmatprep.subr.mxu0 0.0
        %2239 = vmatpush1.msra.mxu0 0.0
        %2240 = vmatprep.subr.mxu0 0.0
        %2241 = vmatpush1.msra.mxu0 0.0
        %2242 = vmatprep.subr.mxu0 0.0
        %2243 = vmatpush1.msra.mxu0 0.0
        %2244 = vmatprep.subr.mxu0 0.0
        %2245 = vmatpush1.msra.mxu0 0.0
        %2246 = vmatprep.subr.mxu0 0.0
        %2247 = vmatpush1.msra.mxu0 0.0
        %2248 = vmatprep.subr.mxu0 0.0
        %2249 = vmatpush1.msra.mxu0 0.0
        %2250 = vmatprep.subr.mxu0 0.0
        %2251 = vmatpush1.msra.mxu0 0.0
        %2252 = vmatprep.subr.mxu0 0.0
        %2253 = vmatpush1.msra.mxu0 0.0
        %2254 = vmatprep.subr.mxu0 0.0
        %2255 = vmatpush1.msra.mxu0 0.0
        %2256 = vmatprep.subr.mxu0 0.0
        %2257 = vmatpush1.msra.mxu0 0.0
        %2258 = vmatprep.subr.mxu0 0.0
        %2259 = vmatpush1.msra.mxu0 0.0
        %2260 = vmatprep.subr.mxu0 0.0
        %2261 = vmatpush1.msra.mxu0 0.0
        %2262 = vmatprep.subr.mxu0 0.0
        %2263 = vmatpush1.msra.mxu0 0.0
        %2264 = vmatprep.subr.mxu0 0.0
        %2265 = vmatpush1.msra.mxu0 0.0
        %2266 = vmatprep.subr.mxu0 0.0
        %2267 = vmatpush1.msra.mxu0 0.0
        %2268 = vmatprep.subr.mxu0 0.0
        %2269 = vmatpush1.msra.mxu0 0.0
        %2270 = vmatprep.subr.mxu0 0.0
        %2271 = vmatpush1.msra.mxu0 0.0
        %2272 = vmatprep.subr.mxu0 0.0
        %2273 = vmatpush1.msra.mxu0 0.0
        %2274 = vmatprep.subr.mxu0 0.0
        %2275 = vmatpush1.msra.mxu0 0.0
        %2276 = vmatprep.subr.mxu0 0.0
        %2277 = vmatpush1.msra.mxu0 0.0
        %2278 = vmatprep.subr.mxu0 0.0
        %2279 = vmatpush1.msra.mxu0 0.0
        %2280 = vmatprep.subr.mxu0 0.0
        %2281 = vmatpush1.msra.mxu0 0.0
        %2282 = vmatprep.subr.mxu0 0.0
        %2283 = vmatpush1.msra.mxu0 0.0
        %2284 = vmatprep.subr.mxu0 0.0
        %2285 = vmatpush1.msra.mxu0 0.0
        %2286 = vmatprep.subr.mxu0 0.0
        %2287 = vmatpush1.msra.mxu0 0.0
        %2288 = vmatprep.subr.mxu0 0.0
        %2289 = vmatpush1.msra.mxu0 0.0
        %2290 = vmatprep.subr.mxu0 0.0
        %2291 = vmatpush1.msra.mxu0 0.0
        %2292 = vmatprep.subr.mxu0 0.0
        %2293 = vmatpush1.msra.mxu0 0.0
        %2294 = vmatprep.subr.mxu0 0.0
        %2295 = vmatpush1.msra.mxu0 0.0
        %2296 = vmatprep.mubr.f32.mxu0 0.0
        %2297 = vmatmul.mubr.f32.gmra.mrb[0].mxu0 %v2230
        %v2298 = vpop.f32.mrb[0].mxu0
        %v2299 = vadd.f32 0.0, %v2298
        %v2300 = vpop.f32.mrb[0].mxu0
        %2301 = vdwg.mxu0
        %v2303 = vsel %vm1801, %v2154, 0
        %2305 = vmatprep.subr.mxu0 0.0
        %2306 = vmatpush1.msra.mxu0 %v1728
        %2307 = vmatprep.subr.mxu0 0.0
        %2308 = vmatpush1.msra.mxu0 0.0
        %2309 = vmatprep.subr.mxu0 0.0
        %2310 = vmatpush1.msra.mxu0 0.0
        %2311 = vmatprep.subr.mxu0 0.0
        %2312 = vmatpush1.msra.mxu0 0.0
        %2313 = vmatprep.subr.mxu0 0.0
        %2314 = vmatpush1.msra.mxu0 0.0
        %2315 = vmatprep.subr.mxu0 0.0
        %2316 = vmatpush1.msra.mxu0 0.0
        %2317 = vmatprep.subr.mxu0 0.0
        %2318 = vmatpush1.msra.mxu0 0.0
        %2319 = vmatprep.subr.mxu0 0.0
        %2320 = vmatpush1.msra.mxu0 0.0
        %2321 = vmatprep.subr.mxu0 0.0
        %2322 = vmatpush1.msra.mxu0 0.0
        %2323 = vmatprep.subr.mxu0 0.0
        %2324 = vmatpush1.msra.mxu0 0.0
        %2325 = vmatprep.subr.mxu0 0.0
        %2326 = vmatpush1.msra.mxu0 0.0
        %2327 = vmatprep.subr.mxu0 0.0
        %2328 = vmatpush1.msra.mxu0 0.0
        %2329 = vmatprep.subr.mxu0 0.0
        %2330 = vmatpush1.msra.mxu0 0.0
        %2331 = vmatprep.subr.mxu0 0.0
        %2332 = vmatpush1.msra.mxu0 0.0
        %2333 = vmatprep.subr.mxu0 0.0
        %2334 = vmatpush1.msra.mxu0 0.0
        %2335 = vmatprep.subr.mxu0 0.0
        %2336 = vmatpush1.msra.mxu0 0.0
        %2337 = vmatprep.subr.mxu0 0.0
        %2338 = vmatpush1.msra.mxu0 0.0
        %2339 = vmatprep.subr.mxu0 0.0
        %2340 = vmatpush1.msra.mxu0 0.0
        %2341 = vmatprep.subr.mxu0 0.0
        %2342 = vmatpush1.msra.mxu0 0.0
        %2343 = vmatprep.subr.mxu0 0.0
        %2344 = vmatpush1.msra.mxu0 0.0
        %2345 = vmatprep.subr.mxu0 0.0
        %2346 = vmatpush1.msra.mxu0 0.0
        %2347 = vmatprep.subr.mxu0 0.0
        %2348 = vmatpush1.msra.mxu0 0.0
        %2349 = vmatprep.subr.mxu0 0.0
        %2350 = vmatpush1.msra.mxu0 0.0
        %2351 = vmatprep.subr.mxu0 0.0
        %2352 = vmatpush1.msra.mxu0 0.0
        %2353 = vmatprep.subr.mxu0 0.0
        %2354 = vmatpush1.msra.mxu0 0.0
        %2355 = vmatprep.subr.mxu0 0.0
        %2356 = vmatpush1.msra.mxu0 0.0
        %2357 = vmatprep.subr.mxu0 0.0
        %2358 = vmatpush1.msra.mxu0 0.0
        %2359 = vmatprep.subr.mxu0 0.0
        %2360 = vmatpush1.msra.mxu0 0.0
        %2361 = vmatprep.subr.mxu0 0.0
        %2362 = vmatpush1.msra.mxu0 0.0
        %2363 = vmatprep.subr.mxu0 0.0
        %2364 = vmatpush1.msra.mxu0 0.0
        %2365 = vmatprep.subr.mxu0 0.0
        %2366 = vmatpush1.msra.mxu0 0.0
        %2367 = vmatprep.subr.mxu0 0.0
        %2368 = vmatpush1.msra.mxu0 0.0
        %2369 = vmatprep.mubr.f32.mxu0 0.0
        %2370 = vmatmul.mubr.f32.gmra.mrb[0].mxu0 %v2303
        %v2371 = vpop.f32.mrb[0].mxu0
        %v2372 = vadd.f32 0.0, %v2371
        %v2373 = vpop.f32.mrb[0].mxu0
        %2374 = vdwg.mxu0
        %v2376 = vsel %vm1801, %v2155, 0
        %2378 = vmatprep.subr.mxu0 0.0
        %2379 = vmatpush1.msra.mxu0 %v1798
        %2380 = vmatprep.subr.mxu0 0.0
        %2381 = vmatpush1.msra.mxu0 0.0
        %2382 = vmatprep.subr.mxu0 0.0
        %2383 = vmatpush1.msra.mxu0 0.0
        %2384 = vmatprep.subr.mxu0 0.0
        %2385 = vmatpush1.msra.mxu0 0.0
        %2386 = vmatprep.subr.mxu0 0.0
        %2387 = vmatpush1.msra.mxu0 0.0
        %2388 = vmatprep.subr.mxu0 0.0
        %2389 = vmatpush1.msra.mxu0 0.0
        %2390 = vmatprep.subr.mxu0 0.0
        %2391 = vmatpush1.msra.mxu0 0.0
        %2392 = vmatprep.subr.mxu0 0.0
        %2393 = vmatpush1.msra.mxu0 0.0
        %2394 = vmatprep.subr.mxu0 0.0
        %2395 = vmatpush1.msra.mxu0 0.0
        %2396 = vmatprep.subr.mxu0 0.0
        %2397 = vmatpush1.msra.mxu0 0.0
        %2398 = vmatprep.subr.mxu0 0.0
        %2399 = vmatpush1.msra.mxu0 0.0
        %2400 = vmatprep.subr.mxu0 0.0
        %2401 = vmatpush1.msra.mxu0 0.0
        %2402 = vmatprep.subr.mxu0 0.0
        %2403 = vmatpush1.msra.mxu0 0.0
        %2404 = vmatprep.subr.mxu0 0.0
        %2405 = vmatpush1.msra.mxu0 0.0
        %2406 = vmatprep.subr.mxu0 0.0
        %2407 = vmatpush1.msra.mxu0 0.0
        %2408 = vmatprep.subr.mxu0 0.0
        %2409 = vmatpush1.msra.mxu0 0.0
        %2410 = vmatprep.subr.mxu0 0.0
        %2411 = vmatpush1.msra.mxu0 0.0
        %2412 = vmatprep.subr.mxu0 0.0
        %2413 = vmatpush1.msra.mxu0 0.0
        %2414 = vmatprep.subr.mxu0 0.0
        %2415 = vmatpush1.msra.mxu0 0.0
        %2416 = vmatprep.subr.mxu0 0.0
        %2417 = vmatpush1.msra.mxu0 0.0
        %2418 = vmatprep.subr.mxu0 0.0
        %2419 = vmatpush1.msra.mxu0 0.0
        %2420 = vmatprep.subr.mxu0 0.0
        %2421 = vmatpush1.msra.mxu0 0.0
        %2422 = vmatprep.subr.mxu0 0.0
        %2423 = vmatpush1.msra.mxu0 0.0
        %2424 = vmatprep.subr.mxu0 0.0
        %2425 = vmatpush1.msra.mxu0 0.0
        %2426 = vmatprep.subr.mxu0 0.0
        %2427 = vmatpush1.msra.mxu0 0.0
        %2428 = vmatprep.subr.mxu0 0.0
        %2429 = vmatpush1.msra.mxu0 0.0
        %2430 = vmatprep.subr.mxu0 0.0
        %2431 = vmatpush1.msra.mxu0 0.0
        %2432 = vmatprep.subr.mxu0 0.0
        %2433 = vmatpush1.msra.mxu0 0.0
        %2434 = vmatprep.subr.mxu0 0.0
        %2435 = vmatpush1.msra.mxu0 0.0
        %2436 = vmatprep.subr.mxu0 0.0
        %2437 = vmatpush1.msra.mxu0 0.0
        %2438 = vmatprep.subr.mxu0 0.0
        %2439 = vmatpush1.msra.mxu0 0.0
        %2440 = vmatprep.subr.mxu0 0.0
        %2441 = vmatpush1.msra.mxu0 0.0
        %2442 = vmatprep.mubr.f32.mxu0 0.0
        %2443 = vmatmul.mubr.f32.gmra.mrb[0].mxu0 %v2376
        %v2444 = vpop.f32.mrb[0].mxu0
        %v2445 = vadd.f32 0.0, %v2444
        %v2446 = vpop.f32.mrb[0].mxu0
        %2447 = vdwg.mxu0
        %v2449 = vsel %vm1801, %v2226, 0
        %2451 = vmatprep.subr.mxu0 0.0
        %2452 = vmatpush1.msra.mxu0 %v953
        %2453 = vmatprep.subr.mxu0 0.0
        %2454 = vmatpush1.msra.mxu0 0.0
        %2455 = vmatprep.subr.mxu0 0.0
        %2456 = vmatpush1.msra.mxu0 0.0
        %2457 = vmatprep.subr.mxu0 0.0
        %2458 = vmatpush1.msra.mxu0 0.0
        %2459 = vmatprep.subr.mxu0 0.0
        %2460 = vmatpush1.msra.mxu0 0.0
        %2461 = vmatprep.subr.mxu0 0.0
        %2462 = vmatpush1.msra.mxu0 0.0
        %2463 = vmatprep.subr.mxu0 0.0
        %2464 = vmatpush1.msra.mxu0 0.0
        %2465 = vmatprep.subr.mxu0 0.0
        %2466 = vmatpush1.msra.mxu0 0.0
        %2467 = vmatprep.subr.mxu0 0.0
        %2468 = vmatpush1.msra.mxu0 0.0
        %2469 = vmatprep.subr.mxu0 0.0
        %2470 = vmatpush1.msra.mxu0 0.0
        %2471 = vmatprep.subr.mxu0 0.0
        %2472 = vmatpush1.msra.mxu0 0.0
        %2473 = vmatprep.subr.mxu0 0.0
        %2474 = vmatpush1.msra.mxu0 0.0
        %2475 = vmatprep.subr.mxu0 0.0
        %2476 = vmatpush1.msra.mxu0 0.0
        %2477 = vmatprep.subr.mxu0 0.0
        %2478 = vmatpush1.msra.mxu0 0.0
        %2479 = vmatprep.subr.mxu0 0.0
        %2480 = vmatpush1.msra.mxu0 0.0
        %2481 = vmatprep.subr.mxu0 0.0
        %2482 = vmatpush1.msra.mxu0 0.0
        %2483 = vmatprep.subr.mxu0 0.0
        %2484 = vmatpush1.msra.mxu0 0.0
        %2485 = vmatprep.subr.mxu0 0.0
        %2486 = vmatpush1.msra.mxu0 0.0
        %2487 = vmatprep.subr.mxu0 0.0
        %2488 = vmatpush1.msra.mxu0 0.0
        %2489 = vmatprep.subr.mxu0 0.0
        %2490 = vmatpush1.msra.mxu0 0.0
        %2491 = vmatprep.subr.mxu0 0.0
        %2492 = vmatpush1.msra.mxu0 0.0
        %2493 = vmatprep.subr.mxu0 0.0
        %2494 = vmatpush1.msra.mxu0 0.0
        %2495 = vmatprep.subr.mxu0 0.0
        %2496 = vmatpush1.msra.mxu0 0.0
        %2497 = vmatprep.subr.mxu0 0.0
        %2498 = vmatpush1.msra.mxu0 0.0
        %2499 = vmatprep.subr.mxu0 0.0
        %2500 = vmatpush1.msra.mxu0 0.0
        %2501 = vmatprep.subr.mxu0 0.0
        %2502 = vmatpush1.msra.mxu0 0.0
        %2503 = vmatprep.subr.mxu0 0.0
        %2504 = vmatpush1.msra.mxu0 0.0
        %2505 = vmatprep.subr.mxu0 0.0
        %2506 = vmatpush1.msra.mxu0 0.0
        %2507 = vmatprep.subr.mxu0 0.0
        %2508 = vmatpush1.msra.mxu0 0.0
        %2509 = vmatprep.subr.mxu0 0.0
        %2510 = vmatpush1.msra.mxu0 0.0
        %2511 = vmatprep.subr.mxu0 0.0
        %2512 = vmatpush1.msra.mxu0 0.0
        %2513 = vmatprep.subr.mxu0 0.0
        %2514 = vmatpush1.msra.mxu0 0.0
        %2515 = vmatprep.mubr.f32.mxu0 0.0
        %2516 = vmatmul.mubr.f32.gmra.mrb[0].mxu0 %v2449
        %v2517 = vpop.f32.mrb[0].mxu0
        %v2518 = vadd.f32 0.0, %v2517
        %v2519 = vpop.f32.mrb[0].mxu0
        %2520 = vdwg.mxu0
        %v2522 = vsel %vm1801, %v2299, 0
        %2524 = vmatprep.subr.mxu0 0.0
        %2525 = vmatpush1.msra.mxu0 %v954
        %2526 = vmatprep.subr.mxu0 0.0
        %2527 = vmatpush1.msra.mxu0 0.0
        %2528 = vmatprep.subr.mxu0 0.0
        %2529 = vmatpush1.msra.mxu0 0.0
        %2530 = vmatprep.subr.mxu0 0.0
        %2531 = vmatpush1.msra.mxu0 0.0
        %2532 = vmatprep.subr.mxu0 0.0
        %2533 = vmatpush1.msra.mxu0 0.0
        %2534 = vmatprep.subr.mxu0 0.0
        %2535 = vmatpush1.msra.mxu0 0.0
        %2536 = vmatprep.subr.mxu0 0.0
        %2537 = vmatpush1.msra.mxu0 0.0
        %2538 = vmatprep.subr.mxu0 0.0
        %2539 = vmatpush1.msra.mxu0 0.0
        %2540 = vmatprep.subr.mxu0 0.0
        %2541 = vmatpush1.msra.mxu0 0.0
        %2542 = vmatprep.subr.mxu0 0.0
        %2543 = vmatpush1.msra.mxu0 0.0
        %2544 = vmatprep.subr.mxu0 0.0
        %2545 = vmatpush1.msra.mxu0 0.0
        %2546 = vmatprep.subr.mxu0 0.0
        %2547 = vmatpush1.msra.mxu0 0.0
        %2548 = vmatprep.subr.mxu0 0.0
        %2549 = vmatpush1.msra.mxu0 0.0
        %2550 = vmatprep.subr.mxu0 0.0
        %2551 = vmatpush1.msra.mxu0 0.0
        %2552 = vmatprep.subr.mxu0 0.0
        %2553 = vmatpush1.msra.mxu0 0.0
        %2554 = vmatprep.subr.mxu0 0.0
        %2555 = vmatpush1.msra.mxu0 0.0
        %2556 = vmatprep.subr.mxu0 0.0
        %2557 = vmatpush1.msra.mxu0 0.0
        %2558 = vmatprep.subr.mxu0 0.0
        %2559 = vmatpush1.msra.mxu0 0.0
        %2560 = vmatprep.subr.mxu0 0.0
        %2561 = vmatpush1.msra.mxu0 0.0
        %2562 = vmatprep.subr.mxu0 0.0
        %2563 = vmatpush1.msra.mxu0 0.0
        %2564 = vmatprep.subr.mxu0 0.0
        %2565 = vmatpush1.msra.mxu0 0.0
        %2566 = vmatprep.subr.mxu0 0.0
        %2567 = vmatpush1.msra.mxu0 0.0
        %2568 = vmatprep.subr.mxu0 0.0
        %2569 = vmatpush1.msra.mxu0 0.0
        %2570 = vmatprep.subr.mxu0 0.0
        %2571 = vmatpush1.msra.mxu0 0.0
        %2572 = vmatprep.subr.mxu0 0.0
        %2573 = vmatpush1.msra.mxu0 0.0
        %2574 = vmatprep.subr.mxu0 0.0
        %2575 = vmatpush1.msra.mxu0 0.0
        %2576 = vmatprep.subr.mxu0 0.0
        %2577 = vmatpush1.msra.mxu0 0.0
        %2578 = vmatprep.subr.mxu0 0.0
        %2579 = vmatpush1.msra.mxu0 0.0
        %2580 = vmatprep.subr.mxu0 0.0
        %2581 = vmatpush1.msra.mxu0 0.0
        %2582 = vmatprep.subr.mxu0 0.0
        %2583 = vmatpush1.msra.mxu0 0.0
        %2584 = vmatprep.subr.mxu0 0.0
        %2585 = vmatpush1.msra.mxu0 0.0
        %2586 = vmatprep.subr.mxu0 0.0
        %2587 = vmatpush1.msra.mxu0 0.0
        %2588 = vmatprep.mubr.f32.mxu0 0.0
        %2589 = vmatmul.mubr.f32.gmra.mrb[0].mxu0 %v2522
        %v2590 = vpop.f32.mrb[0].mxu0
        %v2591 = vadd.f32 0.0, %v2590
        %v2592 = vpop.f32.mrb[0].mxu0
        %2593 = vdwg.mxu0
        %v2595 = vsel %vm1801, %v2372, 0
        %2597 = vmatprep.subr.mxu0 0.0
        %2598 = vmatpush1.msra.mxu0 %v955
        %2599 = vmatprep.subr.mxu0 0.0
        %2600 = vmatpush1.msra.mxu0 0.0
        %2601 = vmatprep.subr.mxu0 0.0
        %2602 = vmatpush1.msra.mxu0 0.0
        %2603 = vmatprep.subr.mxu0 0.0
        %2604 = vmatpush1.msra.mxu0 0.0
        %2605 = vmatprep.subr.mxu0 0.0
        %2606 = vmatpush1.msra.mxu0 0.0
        %2607 = vmatprep.subr.mxu0 0.0
        %2608 = vmatpush1.msra.mxu0 0.0
        %2609 = vmatprep.subr.mxu0 0.0
        %2610 = vmatpush1.msra.mxu0 0.0
        %2611 = vmatprep.subr.mxu0 0.0
        %2612 = vmatpush1.msra.mxu0 0.0
        %2613 = vmatprep.subr.mxu0 0.0
        %2614 = vmatpush1.msra.mxu0 0.0
        %2615 = vmatprep.subr.mxu0 0.0
        %2616 = vmatpush1.msra.mxu0 0.0
        %2617 = vmatprep.subr.mxu0 0.0
        %2618 = vmatpush1.msra.mxu0 0.0
        %2619 = vmatprep.subr.mxu0 0.0
        %2620 = vmatpush1.msra.mxu0 0.0
        %2621 = vmatprep.subr.mxu0 0.0
        %2622 = vmatpush1.msra.mxu0 0.0
        %2623 = vmatprep.subr.mxu0 0.0
        %2624 = vmatpush1.msra.mxu0 0.0
        %2625 = vmatprep.subr.mxu0 0.0
        %2626 = vmatpush1.msra.mxu0 0.0
        %2627 = vmatprep.subr.mxu0 0.0
        %2628 = vmatpush1.msra.mxu0 0.0
        %2629 = vmatprep.subr.mxu0 0.0
        %2630 = vmatpush1.msra.mxu0 0.0
        %2631 = vmatprep.subr.mxu0 0.0
        %2632 = vmatpush1.msra.mxu0 0.0
        %2633 = vmatprep.subr.mxu0 0.0
        %2634 = vmatpush1.msra.mxu0 0.0
        %2635 = vmatprep.subr.mxu0 0.0
        %2636 = vmatpush1.msra.mxu0 0.0
        %2637 = vmatprep.subr.mxu0 0.0
        %2638 = vmatpush1.msra.mxu0 0.0
        %2639 = vmatprep.subr.mxu0 0.0
        %2640 = vmatpush1.msra.mxu0 0.0
        %2641 = vmatprep.subr.mxu0 0.0
        %2642 = vmatpush1.msra.mxu0 0.0
        %2643 = vmatprep.subr.mxu0 0.0
        %2644 = vmatpush1.msra.mxu0 0.0
        %2645 = vmatprep.subr.mxu0 0.0
        %2646 = vmatpush1.msra.mxu0 0.0
        %2647 = vmatprep.subr.mxu0 0.0
        %2648 = vmatpush1.msra.mxu0 0.0
        %2649 = vmatprep.subr.mxu0 0.0
        %2650 = vmatpush1.msra.mxu0 0.0
        %2651 = vmatprep.subr.mxu0 0.0
        %2652 = vmatpush1.msra.mxu0 0.0
        %2653 = vmatprep.subr.mxu0 0.0
        %2654 = vmatpush1.msra.mxu0 0.0
        %2655 = vmatprep.subr.mxu0 0.0
        %2656 = vmatpush1.msra.mxu0 0.0
        %2657 = vmatprep.subr.mxu0 0.0
        %2658 = vmatpush1.msra.mxu0 0.0
        %2659 = vmatprep.subr.mxu0 0.0
        %2660 = vmatpush1.msra.mxu0 0.0
        %2661 = vmatprep.mubr.f32.mxu0 0.0
        %2662 = vmatmul.mubr.f32.gmra.mrb[0].mxu0 %v2595
        %v2663 = vpop.f32.mrb[0].mxu0
        %v2664 = vadd.f32 0.0, %v2663
        %v2665 = vpop.f32.mrb[0].mxu0
        %2666 = vdwg.mxu0
        %v2668 = vsel %vm1801, %v2445, 0
        %2670 = vmatprep.subr.mxu0 0.0
        %2671 = vmatpush1.msra.mxu0 %v956
        %2672 = vmatprep.subr.mxu0 0.0
        %2673 = vmatpush1.msra.mxu0 0.0
        %2674 = vmatprep.subr.mxu0 0.0
        %2675 = vmatpush1.msra.mxu0 0.0
        %2676 = vmatprep.subr.mxu0 0.0
        %2677 = vmatpush1.msra.mxu0 0.0
        %2678 = vmatprep.subr.mxu0 0.0
        %2679 = vmatpush1.msra.mxu0 0.0
        %2680 = vmatprep.subr.mxu0 0.0
        %2681 = vmatpush1.msra.mxu0 0.0
        %2682 = vmatprep.subr.mxu0 0.0
        %2683 = vmatpush1.msra.mxu0 0.0
        %2684 = vmatprep.subr.mxu0 0.0
        %2685 = vmatpush1.msra.mxu0 0.0
        %2686 = vmatprep.subr.mxu0 0.0
        %2687 = vmatpush1.msra.mxu0 0.0
        %2688 = vmatprep.subr.mxu0 0.0
        %2689 = vmatpush1.msra.mxu0 0.0
        %2690 = vmatprep.subr.mxu0 0.0
        %2691 = vmatpush1.msra.mxu0 0.0
        %2692 = vmatprep.subr.mxu0 0.0
        %2693 = vmatpush1.msra.mxu0 0.0
        %2694 = vmatprep.subr.mxu0 0.0
        %2695 = vmatpush1.msra.mxu0 0.0
        %2696 = vmatprep.subr.mxu0 0.0
        %2697 = vmatpush1.msra.mxu0 0.0
        %2698 = vmatprep.subr.mxu0 0.0
        %2699 = vmatpush1.msra.mxu0 0.0
        %2700 = vmatprep.subr.mxu0 0.0
        %2701 = vmatpush1.msra.mxu0 0.0
        %2702 = vmatprep.subr.mxu0 0.0
        %2703 = vmatpush1.msra.mxu0 0.0
        %2704 = vmatprep.subr.mxu0 0.0
        %2705 = vmatpush1.msra.mxu0 0.0
        %2706 = vmatprep.subr.mxu0 0.0
        %2707 = vmatpush1.msra.mxu0 0.0
        %2708 = vmatprep.subr.mxu0 0.0
        %2709 = vmatpush1.msra.mxu0 0.0
        %2710 = vmatprep.subr.mxu0 0.0
        %2711 = vmatpush1.msra.mxu0 0.0
        %2712 = vmatprep.subr.mxu0 0.0
        %2713 = vmatpush1.msra.mxu0 0.0
        %2714 = vmatprep.subr.mxu0 0.0
        %2715 = vmatpush1.msra.mxu0 0.0
        %2716 = vmatprep.subr.mxu0 0.0
        %2717 = vmatpush1.msra.mxu0 0.0
        %2718 = vmatprep.subr.mxu0 0.0
        %2719 = vmatpush1.msra.mxu0 0.0
        %2720 = vmatprep.subr.mxu0 0.0
        %2721 = vmatpush1.msra.mxu0 0.0
        %2722 = vmatprep.subr.mxu0 0.0
        %2723 = vmatpush1.msra.mxu0 0.0
        %2724 = vmatprep.subr.mxu0 0.0
        %2725 = vmatpush1.msra.mxu0 0.0
        %2726 = vmatprep.subr.mxu0 0.0
        %2727 = vmatpush1.msra.mxu0 0.0
        %2728 = vmatprep.subr.mxu0 0.0
        %2729 = vmatpush1.msra.mxu0 0.0
        %2730 = vmatprep.subr.mxu0 0.0
        %2731 = vmatpush1.msra.mxu0 0.0
        %2732 = vmatprep.subr.mxu0 0.0
        %2733 = vmatpush1.msra.mxu0 0.0
        %2734 = vmatprep.mubr.f32.mxu0 0.0
        %2735 = vmatmul.mubr.f32.gmra.mrb[0].mxu0 %v2668
        %v2736 = vpop.f32.mrb[0].mxu0
        %v2737 = vadd.f32 0.0, %v2736
        %v2738 = vpop.f32.mrb[0].mxu0
        %2739 = vdwg.mxu0
        %v2740 = vsel %vm957, %v2518, 0.0
        %v2741 = vsel %vm957, %v2591, 0.0
        %v2742 = vadd.f32 %v2740, %v2741
        %v2743 = vsel %vm957, %v2664, 0.0
        %v2744 = vadd.f32 %v2742, %v2743
        %v2745 = vsel %vm957, %v2737, 0.0
        %v2746 = vadd.f32 %v2744, %v2745
        %v2747 = vadd.f32 %v882, %v2746
        %v2748 = vsel %vm957, %v2747, 0.0
        %2749 = vadd.xlane.f32.xlu0 %v2748
        %v2750 = vpop.xlane.xlu0 %2749
        %v2751 = vrcp.pop 32.0
        %v2752 = vmul.f32 %v2750, %v2751
        %v2753 = vsub.f32 %v2747, %v2752
        %v2754 = vmul.f32 %v2753, %v2753
        %v2755 = vsel %vm957, %v2754, 0.0
        %2756 = vadd.xlane.f32.xlu0 %v2755
        %v2757 = vpop.xlane.xlu0 %2756
        %v2758 = vmul.f32 %v2757, %v2751
        %v2759 = vadd.f32 %v2758, 1e-05
        %v2760 = vrsqrt.pop %v2759
        %v2761 = vmul.f32 %v2753, %v2760
        %v2762 = vmul.f32 %v2761, %v889
        %v2763 = vadd.f32 %v2762, %v896
        %v2764 = vld [vmem:[%s835] sm:$0xff]
        %v2765 = vld [vmem:[%s835 + $0x8] sm:$0xff]
        %v2766 = vld [vmem:[%s835 + $0x10] sm:$0xff]
        %v2767 = vld [vmem:[%s835 + $0x18] sm:$0xff]
        %v2768 = vld [vmem:[%s835 + $0x20] sm:$0xff]
        %v2769 = vld [vmem:[%s835 + $0x28] sm:$0xff]
        %v2770 = vld [vmem:[%s835 + $0x30] sm:$0xff]
        %v2771 = vld [vmem:[%s835 + $0x38] sm:$0xff]
        %v2772 = vld [vmem:[%s835 + $0x40] sm:$0xff]
        %v2773 = vld [vmem:[%s835 + $0x48] sm:$0xff]
        %v2774 = vld [vmem:[%s835 + $0x50] sm:$0xff]
        %v2775 = vld [vmem:[%s835 + $0x58] sm:$0xff]
        %v2776 = vld [vmem:[%s835 + $0x60] sm:$0xff]
        %v2777 = vld [vmem:[%s835 + $0x68] sm:$0xff]
        %v2778 = vld [vmem:[%s835 + $0x70] sm:$0xff]
        %v2779 = vld [vmem:[%s835 + $0x78] sm:$0xff]
        %v2780 = vld [vmem:[%s840] sm:$0xff]
        %v2781 = vld [vmem:[%s840 + $0x8] sm:$0xff]
        %v2782 = vld [vmem:[%s840 + $0x10] sm:$0xff]
        %v2783 = vld [vmem:[%s840 + $0x18] sm:$0xff]
        %v2784 = vld [vmem:[%s840 + $0x20] sm:$0xff]
        %v2785 = vld [vmem:[%s840 + $0x28] sm:$0xff]
        %v2786 = vld [vmem:[%s840 + $0x30] sm:$0xff]
        %v2787 = vld [vmem:[%s840 + $0x38] sm:$0xff]
        %v2788 = vld [vmem:[%s840 + $0x40] sm:$0xff]
        %v2789 = vld [vmem:[%s840 + $0x48] sm:$0xff]
        %v2790 = vld [vmem:[%s840 + $0x50] sm:$0xff]
        %v2791 = vld [vmem:[%s840 + $0x58] sm:$0xff]
        %v2792 = vld [vmem:[%s840 + $0x60] sm:$0xff]
        %v2793 = vld [vmem:[%s840 + $0x68] sm:$0xff]
        %v2794 = vld [vmem:[%s840 + $0x70] sm:$0xff]
        %v2795 = vld [vmem:[%s840 + $0x78] sm:$0xff]
        %v2796 = vld [vmem:[%s845] sm:$0xff]
        %v2797 = vld [vmem:[%s845 + $0x8] sm:$0xff]
        %v2798 = vld [vmem:[%s845 + $0x10] sm:$0xff]
        %v2799 = vld [vmem:[%s845 + $0x18] sm:$0xff]
        %v2800 = vld [vmem:[%s845 + $0x20] sm:$0xff]
        %v2801 = vld [vmem:[%s845 + $0x28] sm:$0xff]
        %v2802 = vld [vmem:[%s845 + $0x30] sm:$0xff]
        %v2803 = vld [vmem:[%s845 + $0x38] sm:$0xff]
        %v2804 = vld [vmem:[%s845 + $0x40] sm:$0xff]
        %v2805 = vld [vmem:[%s845 + $0x48] sm:$0xff]
        %v2806 = vld [vmem:[%s845 + $0x50] sm:$0xff]
        %v2807 = vld [vmem:[%s845 + $0x58] sm:$0xff]
        %v2808 = vld [vmem:[%s845 + $0x60] sm:$0xff]
        %v2809 = vld [vmem:[%s845 + $0x68] sm:$0xff]
        %v2810 = vld [vmem:[%s845 + $0x70] sm:$0xff]
        %v2811 = vld [vmem:[%s845 + $0x78] sm:$0xff]
        %v2812 = vld [vmem:[%s850] sm:$0xff]
        %v2813 = vld [vmem:[%s850 + $0x8] sm:$0xff]
        %v2814 = vld [vmem:[%s850 + $0x10] sm:$0xff]
        %v2815 = vld [vmem:[%s850 + $0x18] sm:$0xff]
        %v2817 = vsel %vm957, %v2763, 0
        %2819 = vmatprep.subr.mxu0 0.0
        %2820 = vmatpush1.msra.mxu0 %v2764
        %2821 = vmatprep.subr.mxu0 0.0
        %2822 = vmatpush1.msra.mxu0 %v2765
        %2823 = vmatprep.subr.mxu0 0.0
        %2824 = vmatpush1.msra.mxu0 %v2766
        %2825 = vmatprep.subr.mxu0 0.0
        %2826 = vmatpush1.msra.mxu0 %v2767
        %2827 = vmatprep.subr.mxu0 0.0
        %2828 = vmatpush1.msra.mxu0 0.0
        %2829 = vmatprep.subr.mxu0 0.0
        %2830 = vmatpush1.msra.mxu0 0.0
        %2831 = vmatprep.subr.mxu0 0.0
        %2832 = vmatpush1.msra.mxu0 0.0
        %2833 = vmatprep.subr.mxu0 0.0
        %2834 = vmatpush1.msra.mxu0 0.0
        %2835 = vmatprep.subr.mxu0 0.0
        %2836 = vmatpush1.msra.mxu0 0.0
        %2837 = vmatprep.subr.mxu0 0.0
        %2838 = vmatpush1.msra.mxu0 0.0
        %2839 = vmatprep.subr.mxu0 0.0
        %2840 = vmatpush1.msra.mxu0 0.0
        %2841 = vmatprep.subr.mxu0 0.0
        %2842 = vmatpush1.msra.mxu0 0.0
        %2843 = vmatprep.subr.mxu0 0.0
        %2844 = vmatpush1.msra.mxu0 0.0
        %2845 = vmatprep.subr.mxu0 0.0
        %2846 = vmatpush1.msra.mxu0 0.0
        %2847 = vmatprep.subr.mxu0 0.0
        %2848 = vmatpush1.msra.mxu0 0.0
        %2849 = vmatprep.subr.mxu0 0.0
        %2850 = vmatpush1.msra.mxu0 0.0
        %2851 = vmatprep.subr.mxu0 0.0
        %2852 = vmatpush1.msra.mxu0 0.0
        %2853 = vmatprep.subr.mxu0 0.0
        %2854 = vmatpush1.msra.mxu0 0.0
        %2855 = vmatprep.subr.mxu0 0.0
        %2856 = vmatpush1.msra.mxu0 0.0
        %2857 = vmatprep.subr.mxu0 0.0
        %2858 = vmatpush1.msra.mxu0 0.0
        %2859 = vmatprep.subr.mxu0 0.0
        %2860 = vmatpush1.msra.mxu0 0.0
        %2861 = vmatprep.subr.mxu0 0.0
        %2862 = vmatpush1.msra.mxu0 0.0
        %2863 = vmatprep.subr.mxu0 0.0
        %2864 = vmatpush1.msra.mxu0 0.0
        %2865 = vmatprep.subr.mxu0 0.0
        %2866 = vmatpush1.msra.mxu0 0.0
        %2867 = vmatprep.subr.mxu0 0.0
        %2868 = vmatpush1.msra.mxu0 0.0
        %2869 = vmatprep.subr.mxu0 0.0
        %2870 = vmatpush1.msra.mxu0 0.0
        %2871 = vmatprep.subr.mxu0 0.0
        %2872 = vmatpush1.msra.mxu0 0.0
        %2873 = vmatprep.subr.mxu0 0.0
        %2874 = vmatpush1.msra.mxu0 0.0
        %2875 = vmatprep.subr.mxu0 0.0
        %2876 = vmatpush1.msra.mxu0 0.0
        %2877 = vmatprep.subr.mxu0 0.0
        %2878 = vmatpush1.msra.mxu0 0.0
        %2879 = vmatprep.subr.mxu0 0.0
        %2880 = vmatpush1.msra.mxu0 0.0
        %2881 = vmatprep.subr.mxu0 0.0
        %2882 = vmatpush1.msra.mxu0 0.0
        %2883 = vmatprep.mubr.f32.mxu0 0.0
        %2884 = vmatmul.mubr.f32.gmra.mrb[0].mxu0 %v2817
        %v2885 = vpop.f32.mrb[0].mxu0
        %v2886 = vadd.f32 0.0, %v2885
        %v2887 = vpop.f32.mrb[0].mxu0
        %2888 = vdwg.mxu0
        %2889 = vmatprep.subr.mxu0 0.0
        %2890 = vmatpush1.msra.mxu0 %v2768
        %2891 = vmatprep.subr.mxu0 0.0
        %2892 = vmatpush1.msra.mxu0 %v2769
        %2893 = vmatprep.subr.mxu0 0.0
        %2894 = vmatpush1.msra.mxu0 %v2770
        %2895 = vmatprep.subr.mxu0 0.0
        %2896 = vmatpush1.msra.mxu0 %v2771
        %2897 = vmatprep.subr.mxu0 0.0
        %2898 = vmatpush1.msra.mxu0 0.0
        %2899 = vmatprep.subr.mxu0 0.0
        %2900 = vmatpush1.msra.mxu0 0.0
        %2901 = vmatprep.subr.mxu0 0.0
        %2902 = vmatpush1.msra.mxu0 0.0
        %2903 = vmatprep.subr.mxu0 0.0
        %2904 = vmatpush1.msra.mxu0 0.0
        %2905 = vmatprep.subr.mxu0 0.0
        %2906 = vmatpush1.msra.mxu0 0.0
        %2907 = vmatprep.subr.mxu0 0.0
        %2908 = vmatpush1.msra.mxu0 0.0
        %2909 = vmatprep.subr.mxu0 0.0
        %2910 = vmatpush1.msra.mxu0 0.0
        %2911 = vmatprep.subr.mxu0 0.0
        %2912 = vmatpush1.msra.mxu0 0.0
        %2913 = vmatprep.subr.mxu0 0.0
        %2914 = vmatpush1.msra.mxu0 0.0
        %2915 = vmatprep.subr.mxu0 0.0
        %2916 = vmatpush1.msra.mxu0 0.0
        %2917 = vmatprep.subr.mxu0 0.0
        %2918 = vmatpush1.msra.mxu0 0.0
        %2919 = vmatprep.subr.mxu0 0.0
        %2920 = vmatpush1.msra.mxu0 0.0
        %2921 = vmatprep.subr.mxu0 0.0
        %2922 = vmatpush1.msra.mxu0 0.0
        %2923 = vmatprep.subr.mxu0 0.0
        %2924 = vmatpush1.msra.mxu0 0.0
        %2925 = vmatprep.subr.mxu0 0.0
        %2926 = vmatpush1.msra.mxu0 0.0
        %2927 = vmatprep.subr.mxu0 0.0
        %2928 = vmatpush1.msra.mxu0 0.0
        %2929 = vmatprep.subr.mxu0 0.0
        %2930 = vmatpush1.msra.mxu0 0.0
        %2931 = vmatprep.subr.mxu0 0.0
        %2932 = vmatpush1.msra.mxu0 0.0
        %2933 = vmatprep.subr.mxu0 0.0
        %2934 = vmatpush1.msra.mxu0 0.0
        %2935 = vmatprep.subr.mxu0 0.0
        %2936 = vmatpush1.msra.mxu0 0.0
        %2937 = vmatprep.subr.mxu0 0.0
        %2938 = vmatpush1.msra.mxu0 0.0
        %2939 = vmatprep.subr.mxu0 0.0
        %2940 = vmatpush1.msra.mxu0 0.0
        %2941 = vmatprep.subr.mxu0 0.0
        %2942 = vmatpush1.msra.mxu0 0.0
        %2943 = vmatprep.subr.mxu0 0.0
        %2944 = vmatpush1.msra.mxu0 0.0
        %2945 = vmatprep.subr.mxu0 0.0
        %2946 = vmatpush1.msra.mxu0 0.0
        %2947 = vmatprep.subr.mxu0 0.0
        %2948 = vmatpush1.msra.mxu0 0.0
        %2949 = vmatprep.subr.mxu0 0.0
        %2950 = vmatpush1.msra.mxu0 0.0
        %2951 = vmatprep.subr.mxu0 0.0
        %2952 = vmatpush1.msra.mxu0 0.0
        %2953 = vmatprep.mubr.f32.mxu0 0.0
        %2954 = vmatmul.mubr.f32.gmra.mrb[0].mxu0 %v2817
        %v2955 = vpop.f32.mrb[0].mxu0
        %v2956 = vadd.f32 0.0, %v2955
        %v2957 = vpop.f32.mrb[0].mxu0
        %2958 = vdwg.mxu0
        %2959 = vmatprep.subr.mxu0 0.0
        %2960 = vmatpush1.msra.mxu0 %v2772
        %2961 = vmatprep.subr.mxu0 0.0
        %2962 = vmatpush1.msra.mxu0 %v2773
        %2963 = vmatprep.subr.mxu0 0.0
        %2964 = vmatpush1.msra.mxu0 %v2774
        %2965 = vmatprep.subr.mxu0 0.0
        %2966 = vmatpush1.msra.mxu0 %v2775
        %2967 = vmatprep.subr.mxu0 0.0
        %2968 = vmatpush1.msra.mxu0 0.0
        %2969 = vmatprep.subr.mxu0 0.0
        %2970 = vmatpush1.msra.mxu0 0.0
        %2971 = vmatprep.subr.mxu0 0.0
        %2972 = vmatpush1.msra.mxu0 0.0
        %2973 = vmatprep.subr.mxu0 0.0
        %2974 = vmatpush1.msra.mxu0 0.0
        %2975 = vmatprep.subr.mxu0 0.0
        %2976 = vmatpush1.msra.mxu0 0.0
        %2977 = vmatprep.subr.mxu0 0.0
        %2978 = vmatpush1.msra.mxu0 0.0
        %2979 = vmatprep.subr.mxu0 0.0
        %2980 = vmatpush1.msra.mxu0 0.0
        %2981 = vmatprep.subr.mxu0 0.0
        %2982 = vmatpush1.msra.mxu0 0.0
        %2983 = vmatprep.subr.mxu0 0.0
        %2984 = vmatpush1.msra.mxu0 0.0
        %2985 = vmatprep.subr.mxu0 0.0
        %2986 = vmatpush1.msra.mxu0 0.0
        %2987 = vmatprep.subr.mxu0 0.0
        %2988 = vmatpush1.msra.mxu0 0.0
        %2989 = vmatprep.subr.mxu0 0.0
        %2990 = vmatpush1.msra.mxu0 0.0
        %2991 = vmatprep.subr.mxu0 0.0
        %2992 = vmatpush1.msra.mxu0 0.0
        %2993 = vmatprep.subr.mxu0 0.0
        %2994 = vmatpush1.msra.mxu0 0.0
        %2995 = vmatprep.subr.mxu0 0.0
        %2996 = vmatpush1.msra.mxu0 0.0
        %2997 = vmatprep.subr.mxu0 0.0
        %2998 = vmatpush1.msra.mxu0 0.0
        %2999 = vmatprep.subr.mxu0 0.0
        %3000 = vmatpush1.msra.mxu0 0.0
        %3001 = vmatprep.subr.mxu0 0.0
        %3002 = vmatpush1.msra.mxu0 0.0
        %3003 = vmatprep.subr.mxu0 0.0
        %3004 = vmatpush1.msra.mxu0 0.0
        %3005 = vmatprep.subr.mxu0 0.0
        %3006 = vmatpush1.msra.mxu0 0.0
        %3007 = vmatprep.subr.mxu0 0.0
        %3008 = vmatpush1.msra.mxu0 0.0
        %3009 = vmatprep.subr.mxu0 0.0
        %3010 = vmatpush1.msra.mxu0 0.0
        %3011 = vmatprep.subr.mxu0 0.0
        %3012 = vmatpush1.msra.mxu0 0.0
        %3013 = vmatprep.subr.mxu0 0.0
        %3014 = vmatpush1.msra.mxu0 0.0
        %3015 = vmatprep.subr.mxu0 0.0
        %3016 = vmatpush1.msra.mxu0 0.0
        %3017 = vmatprep.subr.mxu0 0.0
        %3018 = vmatpush1.msra.mxu0 0.0
        %3019 = vmatprep.subr.mxu0 0.0
        %3020 = vmatpush1.msra.mxu0 0.0
        %3021 = vmatprep.subr.mxu0 0.0
        %3022 = vmatpush1.msra.mxu0 0.0
        %3023 = vmatprep.mubr.f32.mxu0 0.0
        %3024 = vmatmul.mubr.f32.gmra.mrb[0].mxu0 %v2817
        %v3025 = vpop.f32.mrb[0].mxu0
        %v3026 = vadd.f32 0.0, %v3025
        %v3027 = vpop.f32.mrb[0].mxu0
        %3028 = vdwg.mxu0
        %3029 = vmatprep.subr.mxu0 0.0
        %3030 = vmatpush1.msra.mxu0 %v2776
        %3031 = vmatprep.subr.mxu0 0.0
        %3032 = vmatpush1.msra.mxu0 %v2777
        %3033 = vmatprep.subr.mxu0 0.0
        %3034 = vmatpush1.msra.mxu0 %v2778
        %3035 = vmatprep.subr.mxu0 0.0
        %3036 = vmatpush1.msra.mxu0 %v2779
        %3037 = vmatprep.subr.mxu0 0.0
        %3038 = vmatpush1.msra.mxu0 0.0
        %3039 = vmatprep.subr.mxu0 0.0
        %3040 = vmatpush1.msra.mxu0 0.0
        %3041 = vmatprep.subr.mxu0 0.0
        %3042 = vmatpush1.msra.mxu0 0.0
        %3043 = vmatprep.subr.mxu0 0.0
        %3044 = vmatpush1.msra.mxu0 0.0
        %3045 = vmatprep.subr.mxu0 0.0
        %3046 = vmatpush1.msra.mxu0 0.0
        %3047 = vmatprep.subr.mxu0 0.0
        %3048 = vmatpush1.msra.mxu0 0.0
        %3049 = vmatprep.subr.mxu0 0.0
        %3050 = vmatpush1.msra.mxu0 0.0
        %3051 = vmatprep.subr.mxu0 0.0
        %3052 = vmatpush1.msra.mxu0 0.0
        %3053 = vmatprep.subr.mxu0 0.0
        %3054 = vmatpush1.msra.mxu0 0.0
        %3055 = vmatprep.subr.mxu0 0.0
        %3056 = vmatpush1.msra.mxu0 0.0
        %3057 = vmatprep.subr.mxu0 0.0
        %3058 = vmatpush1.msra.mxu0 0.0
        %3059 = vmatprep.subr.mxu0 0.0
        %3060 = vmatpush1.msra.mxu0 0.0
        %3061 = vmatprep.subr.mxu0 0.0
        %3062 = vmatpush1.msra.mxu0 0.0
        %3063 = vmatprep.subr.mxu0 0.0
        %3064 = vmatpush1.msra.mxu0 0.0
        %3065 = vmatprep.subr.mxu0 0.0
        %3066 = vmatpush1.msra.mxu0 0.0
        %3067 = vmatprep.subr.mxu0 0.0
        %3068 = vmatpush1.msra.mxu0 0.0
        %3069 = vmatprep.subr.mxu0 0.0
        %3070 = vmatpush1.msra.mxu0 0.0
        %3071 = vmatprep.subr.mxu0 0.0
        %3072 = vmatpush1.msra.mxu0 0.0
        %3073 = vmatprep.subr.mxu0 0.0
        %3074 = vmatpush1.msra.mxu0 0.0
        %3075 = vmatprep.subr.mxu0 0.0
        %3076 = vmatpush1.msra.mxu0 0.0
        %3077 = vmatprep.subr.mxu0 0.0
        %3078 = vmatpush1.msra.mxu0 0.0
        %3079 = vmatprep.subr.mxu0 0.0
        %3080 = vmatpush1.msra.mxu0 0.0
        %3081 = vmatprep.subr.mxu0 0.0
        %3082 = vmatpush1.msra.mxu0 0.0
        %3083 = vmatprep.subr.mxu0 0.0
        %3084 = vmatpush1.msra.mxu0 0.0
        %3085 = vmatprep.subr.mxu0 0.0
        %3086 = vmatpush1.msra.mxu0 0.0
        %3087 = vmatprep.subr.mxu0 0.0
        %3088 = vmatpush1.msra.mxu0 0.0
        %3089 = vmatprep.subr.mxu0 0.0
        %3090 = vmatpush1.msra.mxu0 0.0
        %3091 = vmatprep.subr.mxu0 0.0
        %3092 = vmatpush1.msra.mxu0 0.0
        %3093 = vmatprep.mubr.f32.mxu0 0.0
        %3094 = vmatmul.mubr.f32.gmra.mrb[0].mxu0 %v2817
        %v3095 = vpop.f32.mrb[0].mxu0
        %v3096 = vadd.f32 0.0, %v3095
        %v3097 = vpop.f32.mrb[0].mxu0
        %3098 = vdwg.mxu0
        %v3100 = vsel %vm957, %v883, 0
        %3102 = vmatprep.subr.mxu0 0.0
        %3103 = vmatpush1.msra.mxu0 %v2780
        %3104 = vmatprep.subr.mxu0 0.0
        %3105 = vmatpush1.msra.mxu0 %v2781
        %3106 = vmatprep.subr.mxu0 0.0
        %3107 = vmatpush1.msra.mxu0 %v2782
        %3108 = vmatprep.subr.mxu0 0.0
        %3109 = vmatpush1.msra.mxu0 %v2783
        %3110 = vmatprep.subr.mxu0 0.0
        %3111 = vmatpush1.msra.mxu0 0.0
        %3112 = vmatprep.subr.mxu0 0.0
        %3113 = vmatpush1.msra.mxu0 0.0
        %3114 = vmatprep.subr.mxu0 0.0
        %3115 = vmatpush1.msra.mxu0 0.0
        %3116 = vmatprep.subr.mxu0 0.0
        %3117 = vmatpush1.msra.mxu0 0.0
        %3118 = vmatprep.subr.mxu0 0.0
        %3119 = vmatpush1.msra.mxu0 0.0
        %3120 = vmatprep.subr.mxu0 0.0
        %3121 = vmatpush1.msra.mxu0 0.0
        %3122 = vmatprep.subr.mxu0 0.0
        %3123 = vmatpush1.msra.mxu0 0.0
        %3124 = vmatprep.subr.mxu0 0.0
        %3125 = vmatpush1.msra.mxu0 0.0
        %3126 = vmatprep.subr.mxu0 0.0
        %3127 = vmatpush1.msra.mxu0 0.0
        %3128 = vmatprep.subr.mxu0 0.0
        %3129 = vmatpush1.msra.mxu0 0.0
        %3130 = vmatprep.subr.mxu0 0.0
        %3131 = vmatpush1.msra.mxu0 0.0
        %3132 = vmatprep.subr.mxu0 0.0
        %3133 = vmatpush1.msra.mxu0 0.0
        %3134 = vmatprep.subr.mxu0 0.0
        %3135 = vmatpush1.msra.mxu0 0.0
        %3136 = vmatprep.subr.mxu0 0.0
        %3137 = vmatpush1.msra.mxu0 0.0
        %3138 = vmatprep.subr.mxu0 0.0
        %3139 = vmatpush1.msra.mxu0 0.0
        %3140 = vmatprep.subr.mxu0 0.0
        %3141 = vmatpush1.msra.mxu0 0.0
        %3142 = vmatprep.subr.mxu0 0.0
        %3143 = vmatpush1.msra.mxu0 0.0
        %3144 = vmatprep.subr.mxu0 0.0
        %3145 = vmatpush1.msra.mxu0 0.0
        %3146 = vmatprep.subr.mxu0 0.0
        %3147 = vmatpush1.msra.mxu0 0.0
        %3148 = vmatprep.subr.mxu0 0.0
        %3149 = vmatpush1.msra.mxu0 0.0
        %3150 = vmatprep.subr.mxu0 0.0
        %3151 = vmatpush1.msra.mxu0 0.0
        %3152 = vmatprep.subr.mxu0 0.0
        %3153 = vmatpush1.msra.mxu0 0.0
        %3154 = vmatprep.subr.mxu0 0.0
        %3155 = vmatpush1.msra.mxu0 0.0
        %3156 = vmatprep.subr.mxu0 0.0
        %3157 = vmatpush1.msra.mxu0 0.0
        %3158 = vmatprep.subr.mxu0 0.0
        %3159 = vmatpush1.msra.mxu0 0.0
        %3160 = vmatprep.subr.mxu0 0.0
        %3161 = vmatpush1.msra.mxu0 0.0
        %3162 = vmatprep.subr.mxu0 0.0
        %3163 = vmatpush1.msra.mxu0 0.0
        %3164 = vmatprep.subr.mxu0 0.0
        %3165 = vmatpush1.msra.mxu0 0.0
        %3166 = vmatprep.mubr.f32.mxu0 0.0
        %3167 = vmatmul.mubr.f32.gmra.mrb[0].mxu0 %v3100
        %v3168 = vpop.f32.mrb[0].mxu0
        %v3169 = vadd.f32 0.0, %v3168
        %v3170 = vpop.f32.mrb[0].mxu0
        %3171 = vdwg.mxu0
        %3172 = vmatprep.subr.mxu0 0.0
        %3173 = vmatpush1.msra.mxu0 %v2784
        %3174 = vmatprep.subr.mxu0 0.0
        %3175 = vmatpush1.msra.mxu0 %v2785
        %3176 = vmatprep.subr.mxu0 0.0
        %3177 = vmatpush1.msra.mxu0 %v2786
        %3178 = vmatprep.subr.mxu0 0.0
        %3179 = vmatpush1.msra.mxu0 %v2787
        %3180 = vmatprep.subr.mxu0 0.0
        %3181 = vmatpush1.msra.mxu0 0.0
        %3182 = vmatprep.subr.mxu0 0.0
        %3183 = vmatpush1.msra.mxu0 0.0
        %3184 = vmatprep.subr.mxu0 0.0
        %3185 = vmatpush1.msra.mxu0 0.0
        %3186 = vmatprep.subr.mxu0 0.0
        %3187 = vmatpush1.msra.mxu0 0.0
        %3188 = vmatprep.subr.mxu0 0.0
        %3189 = vmatpush1.msra.mxu0 0.0
        %3190 = vmatprep.subr.mxu0 0.0
        %3191 = vmatpush1.msra.mxu0 0.0
        %3192 = vmatprep.subr.mxu0 0.0
        %3193 = vmatpush1.msra.mxu0 0.0
        %3194 = vmatprep.subr.mxu0 0.0
        %3195 = vmatpush1.msra.mxu0 0.0
        %3196 = vmatprep.subr.mxu0 0.0
        %3197 = vmatpush1.msra.mxu0 0.0
        %3198 = vmatprep.subr.mxu0 0.0
        %3199 = vmatpush1.msra.mxu0 0.0
        %3200 = vmatprep.subr.mxu0 0.0
        %3201 = vmatpush1.msra.mxu0 0.0
        %3202 = vmatprep.subr.mxu0 0.0
        %3203 = vmatpush1.msra.mxu0 0.0
        %3204 = vmatprep.subr.mxu0 0.0
        %3205 = vmatpush1.msra.mxu0 0.0
        %3206 = vmatprep.subr.mxu0 0.0
        %3207 = vmatpush1.msra.mxu0 0.0
        %3208 = vmatprep.subr.mxu0 0.0
        %3209 = vmatpush1.msra.mxu0 0.0
        %3210 = vmatprep.subr.mxu0 0.0
        %3211 = vmatpush1.msra.mxu0 0.0
        %3212 = vmatprep.subr.mxu0 0.0
        %3213 = vmatpush1.msra.mxu0 0.0
        %3214 = vmatprep.subr.mxu0 0.0
        %3215 = vmatpush1.msra.mxu0 0.0
        %3216 = vmatprep.subr.mxu0 0.0
        %3217 = vmatpush1.msra.mxu0 0.0
        %3218 = vmatprep.subr.mxu0 0.0
        %3219 = vmatpush1.msra.mxu0 0.0
        %3220 = vmatprep.subr.mxu0 0.0
        %3221 = vmatpush1.msra.mxu0 0.0
        %3222 = vmatprep.subr.mxu0 0.0
        %3223 = vmatpush1.msra.mxu0 0.0
        %3224 = vmatprep.subr.mxu0 0.0
        %3225 = vmatpush1.msra.mxu0 0.0
        %3226 = vmatprep.subr.mxu0 0.0
        %3227 = vmatpush1.msra.mxu0 0.0
        %3228 = vmatprep.subr.mxu0 0.0
        %3229 = vmatpush1.msra.mxu0 0.0
        %3230 = vmatprep.subr.mxu0 0.0
        %3231 = vmatpush1.msra.mxu0 0.0
        %3232 = vmatprep.subr.mxu0 0.0
        %3233 = vmatpush1.msra.mxu0 0.0
        %3234 = vmatprep.subr.mxu0 0.0
        %3235 = vmatpush1.msra.mxu0 0.0
        %3236 = vmatprep.mubr.f32.mxu0 0.0
        %3237 = vmatmul.mubr.f32.gmra.mrb[0].mxu0 %v3100
        %v3238 = vpop.f32.mrb[0].mxu0
        %v3239 = vadd.f32 0.0, %v3238
        %v3240 = vpop.f32.mrb[0].mxu0
        %3241 = vdwg.mxu0
        %3242 = vmatprep.subr.mxu0 0.0
        %3243 = vmatpush1.msra.mxu0 %v2788
        %3244 = vmatprep.subr.mxu0 0.0
        %3245 = vmatpush1.msra.mxu0 %v2789
        %3246 = vmatprep.subr.mxu0 0.0
        %3247 = vmatpush1.msra.mxu0 %v2790
        %3248 = vmatprep.subr.mxu0 0.0
        %3249 = vmatpush1.msra.mxu0 %v2791
        %3250 = vmatprep.subr.mxu0 0.0
        %3251 = vmatpush1.msra.mxu0 0.0
        %3252 = vmatprep.subr.mxu0 0.0
        %3253 = vmatpush1.msra.mxu0 0.0
        %3254 = vmatprep.subr.mxu0 0.0
        %3255 = vmatpush1.msra.mxu0 0.0
        %3256 = vmatprep.subr.mxu0 0.0
        %3257 = vmatpush1.msra.mxu0 0.0
        %3258 = vmatprep.subr.mxu0 0.0
        %3259 = vmatpush1.msra.mxu0 0.0
        %3260 = vmatprep.subr.mxu0 0.0
        %3261 = vmatpush1.msra.mxu0 0.0
        %3262 = vmatprep.subr.mxu0 0.0
        %3263 = vmatpush1.msra.mxu0 0.0
        %3264 = vmatprep.subr.mxu0 0.0
        %3265 = vmatpush1.msra.mxu0 0.0
        %3266 = vmatprep.subr.mxu0 0.0
        %3267 = vmatpush1.msra.mxu0 0.0
        %3268 = vmatprep.subr.mxu0 0.0
        %3269 = vmatpush1.msra.mxu0 0.0
        %3270 = vmatprep.subr.mxu0 0.0
        %3271 = vmatpush1.msra.mxu0 0.0
        %3272 = vmatprep.subr.mxu0 0.0
        %3273 = vmatpush1.msra.mxu0 0.0
        %3274 = vmatprep.subr.mxu0 0.0
        %3275 = vmatpush1.msra.mxu0 0.0
        %3276 = vmatprep.subr.mxu0 0.0
        %3277 = vmatpush1.msra.mxu0 0.0
        %3278 = vmatprep.subr.mxu0 0.0
        %3279 = vmatpush1.msra.mxu0 0.0
        %3280 = vmatprep.subr.mxu0 0.0
        %3281 = vmatpush1.msra.mxu0 0.0
        %3282 = vmatprep.subr.mxu0 0.0
        %3283 = vmatpush1.msra.mxu0 0.0
        %3284 = vmatprep.subr.mxu0 0.0
        %3285 = vmatpush1.msra.mxu0 0.0
        %3286 = vmatprep.subr.mxu0 0.0
        %3287 = vmatpush1.msra.mxu0 0.0
        %3288 = vmatprep.subr.mxu0 0.0
        %3289 = vmatpush1.msra.mxu0 0.0
        %3290 = vmatprep.subr.mxu0 0.0
        %3291 = vmatpush1.msra.mxu0 0.0
        %3292 = vmatprep.subr.mxu0 0.0
        %3293 = vmatpush1.msra.mxu0 0.0
        %3294 = vmatprep.subr.mxu0 0.0
        %3295 = vmatpush1.msra.mxu0 0.0
        %3296 = vmatprep.subr.mxu0 0.0
        %3297 = vmatpush1.msra.mxu0 0.0
        %3298 = vmatprep.subr.mxu0 0.0
        %3299 = vmatpush1.msra.mxu0 0.0
        %3300 = vmatprep.subr.mxu0 0.0
        %3301 = vmatpush1.msra.mxu0 0.0
        %3302 = vmatprep.subr.mxu0 0.0
        %3303 = vmatpush1.msra.mxu0 0.0
        %3304 = vmatprep.subr.mxu0 0.0
        %3305 = vmatpush1.msra.mxu0 0.0
        %3306 = vmatprep.mubr.f32.mxu0 0.0
        %3307 = vmatmul.mubr.f32.gmra.mrb[0].mxu0 %v3100
        %v3308 = vpop.f32.mrb[0].mxu0
        %v3309 = vadd.f32 0.0, %v3308
        %v3310 = vpop.f32.mrb[0].mxu0
        %3311 = vdwg.mxu0
        %3312 = vmatprep.subr.mxu0 0.0
        %3313 = vmatpush1.msra.mxu0 %v2792
        %3314 = vmatprep.subr.mxu0 0.0
        %3315 = vmatpush1.msra.mxu0 %v2793
        %3316 = vmatprep.subr.mxu0 0.0
        %3317 = vmatpush1.msra.mxu0 %v2794
        %3318 = vmatprep.subr.mxu0 0.0
        %3319 = vmatpush1.msra.mxu0 %v2795
        %3320 = vmatprep.subr.mxu0 0.0
        %3321 = vmatpush1.msra.mxu0 0.0
        %3322 = vmatprep.subr.mxu0 0.0
        %3323 = vmatpush1.msra.mxu0 0.0
        %3324 = vmatprep.subr.mxu0 0.0
        %3325 = vmatpush1.msra.mxu0 0.0
        %3326 = vmatprep.subr.mxu0 0.0
        %3327 = vmatpush1.msra.mxu0 0.0
        %3328 = vmatprep.subr.mxu0 0.0
        %3329 = vmatpush1.msra.mxu0 0.0
        %3330 = vmatprep.subr.mxu0 0.0
        %3331 = vmatpush1.msra.mxu0 0.0
        %3332 = vmatprep.subr.mxu0 0.0
        %3333 = vmatpush1.msra.mxu0 0.0
        %3334 = vmatprep.subr.mxu0 0.0
        %3335 = vmatpush1.msra.mxu0 0.0
        %3336 = vmatprep.subr.mxu0 0.0
        %3337 = vmatpush1.msra.mxu0 0.0
        %3338 = vmatprep.subr.mxu0 0.0
        %3339 = vmatpush1.msra.mxu0 0.0
        %3340 = vmatprep.subr.mxu0 0.0
        %3341 = vmatpush1.msra.mxu0 0.0
        %3342 = vmatprep.subr.mxu0 0.0
        %3343 = vmatpush1.msra.mxu0 0.0
        %3344 = vmatprep.subr.mxu0 0.0
        %3345 = vmatpush1.msra.mxu0 0.0
        %3346 = vmatprep.subr.mxu0 0.0
        %3347 = vmatpush1.msra.mxu0 0.0
        %3348 = vmatprep.subr.mxu0 0.0
        %3349 = vmatpush1.msra.mxu0 0.0
        %3350 = vmatprep.subr.mxu0 0.0
        %3351 = vmatpush1.msra.mxu0 0.0
        %3352 = vmatprep.subr.mxu0 0.0
        %3353 = vmatpush1.msra.mxu0 0.0
        %3354 = vmatprep.subr.mxu0 0.0
        %3355 = vmatpush1.msra.mxu0 0.0
        %3356 = vmatprep.subr.mxu0 0.0
        %3357 = vmatpush1.msra.mxu0 0.0
        %3358 = vmatprep.subr.mxu0 0.0
        %3359 = vmatpush1.msra.mxu0 0.0
        %3360 = vmatprep.subr.mxu0 0.0
        %3361 = vmatpush1.msra.mxu0 0.0
        %3362 = vmatprep.subr.mxu0 0.0
        %3363 = vmatpush1.msra.mxu0 0.0
        %3364 = vmatprep.subr.mxu0 0.0
        %3365 = vmatpush1.msra.mxu0 0.0
        %3366 = vmatprep.subr.mxu0 0.0
        %3367 = vmatpush1.msra.mxu0 0.0
        %3368 = vmatprep.subr.mxu0 0.0
        %3369 = vmatpush1.msra.mxu0 0.0
        %3370 = vmatprep.subr.mxu0 0.0
        %3371 = vmatpush1.msra.mxu0 0.0
        %3372 = vmatprep.subr.mxu0 0.0
        %3373 = vmatpush1.msra.mxu0 0.0
        %3374 = vmatprep.subr.mxu0 0.0
        %3375 = vmatpush1.msra.mxu0 0.0
        %3376 = vmatprep.mubr.f32.mxu0 0.0
        %3377 = vmatmul.mubr.f32.gmra.mrb[0].mxu0 %v3100
        %v3378 = vpop.f32.mrb[0].mxu0
        %v3379 = vadd.f32 0.0, %v3378
        %v3380 = vpop.f32.mrb[0].mxu0
        %3381 = vdwg.mxu0
        %3382 = vmatprep.subr.mxu0 0.0
        %3383 = vmatpush1.msra.mxu0 %v2796
        %3384 = vmatprep.subr.mxu0 0.0
        %3385 = vmatpush1.msra.mxu0 %v2797
        %3386 = vmatprep.subr.mxu0 0.0
        %3387 = vmatpush1.msra.mxu0 %v2798
        %3388 = vmatprep.subr.mxu0 0.0
        %3389 = vmatpush1.msra.mxu0 %v2799
        %3390 = vmatprep.subr.mxu0 0.0
        %3391 = vmatpush1.msra.mxu0 0.0
        %3392 = vmatprep.subr.mxu0 0.0
        %3393 = vmatpush1.msra.mxu0 0.0
        %3394 = vmatprep.subr.mxu0 0.0
        %3395 = vmatpush1.msra.mxu0 0.0
        %3396 = vmatprep.subr.mxu0 0.0
        %3397 = vmatpush1.msra.mxu0 0.0
        %3398 = vmatprep.subr.mxu0 0.0
        %3399 = vmatpush1.msra.mxu0 0.0
        %3400 = vmatprep.subr.mxu0 0.0
        %3401 = vmatpush1.msra.mxu0 0.0
        %3402 = vmatprep.subr.mxu0 0.0
        %3403 = vmatpush1.msra.mxu0 0.0
        %3404 = vmatprep.subr.mxu0 0.0
        %3405 = vmatpush1.msra.mxu0 0.0
        %3406 = vmatprep.subr.mxu0 0.0
        %3407 = vmatpush1.msra.mxu0 0.0
        %3408 = vmatprep.subr.mxu0 0.0
        %3409 = vmatpush1.msra.mxu0 0.0
        %3410 = vmatprep.subr.mxu0 0.0
        %3411 = vmatpush1.msra.mxu0 0.0
        %3412 = vmatprep.subr.mxu0 0.0
        %3413 = vmatpush1.msra.mxu0 0.0
        %3414 = vmatprep.subr.mxu0 0.0
        %3415 = vmatpush1.msra.mxu0 0.0
        %3416 = vmatprep.subr.mxu0 0.0
        %3417 = vmatpush1.msra.mxu0 0.0
        %3418 = vmatprep.subr.mxu0 0.0
        %3419 = vmatpush1.msra.mxu0 0.0
        %3420 = vmatprep.subr.mxu0 0.0
        %3421 = vmatpush1.msra.mxu0 0.0
        %3422 = vmatprep.subr.mxu0 0.0
        %3423 = vmatpush1.msra.mxu0 0.0
        %3424 = vmatprep.subr.mxu0 0.0
        %3425 = vmatpush1.msra.mxu0 0.0
        %3426 = vmatprep.subr.mxu0 0.0
        %3427 = vmatpush1.msra.mxu0 0.0
        %3428 = vmatprep.subr.mxu0 0.0
        %3429 = vmatpush1.msra.mxu0 0.0
        %3430 = vmatprep.subr.mxu0 0.0
        %3431 = vmatpush1.msra.mxu0 0.0
        %3432 = vmatprep.subr.mxu0 0.0
        %3433 = vmatpush1.msra.mxu0 0.0
        %3434 = vmatprep.subr.mxu0 0.0
        %3435 = vmatpush1.msra.mxu0 0.0
        %3436 = vmatprep.subr.mxu0 0.0
        %3437 = vmatpush1.msra.mxu0 0.0
        %3438 = vmatprep.subr.mxu0 0.0
        %3439 = vmatpush1.msra.mxu0 0.0
        %3440 = vmatprep.subr.mxu0 0.0
        %3441 = vmatpush1.msra.mxu0 0.0
        %3442 = vmatprep.subr.mxu0 0.0
        %3443 = vmatpush1.msra.mxu0 0.0
        %3444 = vmatprep.subr.mxu0 0.0
        %3445 = vmatpush1.msra.mxu0 0.0
        %3446 = vmatprep.mubr.f32.mxu0 0.0
        %3447 = vmatmul.mubr.f32.gmra.mrb[0].mxu0 %v3100
        %v3448 = vpop.f32.mrb[0].mxu0
        %v3449 = vadd.f32 0.0, %v3448
        %v3450 = vpop.f32.mrb[0].mxu0
        %3451 = vdwg.mxu0
        %3452 = vmatprep.subr.mxu0 0.0
        %3453 = vmatpush1.msra.mxu0 %v2800
        %3454 = vmatprep.subr.mxu0 0.0
        %3455 = vmatpush1.msra.mxu0 %v2801
        %3456 = vmatprep.subr.mxu0 0.0
        %3457 = vmatpush1.msra.mxu0 %v2802
        %3458 = vmatprep.subr.mxu0 0.0
        %3459 = vmatpush1.msra.mxu0 %v2803
        %3460 = vmatprep.subr.mxu0 0.0
        %3461 = vmatpush1.msra.mxu0 0.0
        %3462 = vmatprep.subr.mxu0 0.0
        %3463 = vmatpush1.msra.mxu0 0.0
        %3464 = vmatprep.subr.mxu0 0.0
        %3465 = vmatpush1.msra.mxu0 0.0
        %3466 = vmatprep.subr.mxu0 0.0
        %3467 = vmatpush1.msra.mxu0 0.0
        %3468 = vmatprep.subr.mxu0 0.0
        %3469 = vmatpush1.msra.mxu0 0.0
        %3470 = vmatprep.subr.mxu0 0.0
        %3471 = vmatpush1.msra.mxu0 0.0
        %3472 = vmatprep.subr.mxu0 0.0
        %3473 = vmatpush1.msra.mxu0 0.0
        %3474 = vmatprep.subr.mxu0 0.0
        %3475 = vmatpush1.msra.mxu0 0.0
        %3476 = vmatprep.subr.mxu0 0.0
        %3477 = vmatpush1.msra.mxu0 0.0
        %3478 = vmatprep.subr.mxu0 0.0
        %3479 = vmatpush1.msra.mxu0 0.0
        %3480 = vmatprep.subr.mxu0 0.0
        %3481 = vmatpush1.msra.mxu0 0.0
        %3482 = vmatprep.subr.mxu0 0.0
        %3483 = vmatpush1.msra.mxu0 0.0
        %3484 = vmatprep.subr.mxu0 0.0
        %3485 = vmatpush1.msra.mxu0 0.0
        %3486 = vmatprep.subr.mxu0 0.0
        %3487 = vmatpush1.msra.mxu0 0.0
        %3488 = vmatprep.subr.mxu0 0.0
        %3489 = vmatpush1.msra.mxu0 0.0
        %3490 = vmatprep.subr.mxu0 0.0
        %3491 = vmatpush1.msra.mxu0 0.0
        %3492 = vmatprep.subr.mxu0 0.0
        %3493 = vmatpush1.msra.mxu0 0.0
        %3494 = vmatprep.subr.mxu0 0.0
        %3495 = vmatpush1.msra.mxu0 0.0
        %3496 = vmatprep.subr.mxu0 0.0
        %3497 = vmatpush1.msra.mxu0 0.0
        %3498 = vmatprep.subr.mxu0 0.0
        %3499 = vmatpush1.msra.mxu0 0.0
        %3500 = vmatprep.subr.mxu0 0.0
        %3501 = vmatpush1.msra.mxu0 0.0
        %3502 = vmatprep.subr.mxu0 0.0
        %3503 = vmatpush1.msra.mxu0 0.0
        %3504 = vmatprep.subr.mxu0 0.0
        %3505 = vmatpush1.msra.mxu0 0.0
        %3506 = vmatprep.subr.mxu0 0.0
        %3507 = vmatpush1.msra.mxu0 0.0
        %3508 = vmatprep.subr.mxu0 0.0
        %3509 = vmatpush1.msra.mxu0 0.0
        %3510 = vmatprep.subr.mxu0 0.0
        %3511 = vmatpush1.msra.mxu0 0.0
        %3512 = vmatprep.subr.mxu0 0.0
        %3513 = vmatpush1.msra.mxu0 0.0
        %3514 = vmatprep.subr.mxu0 0.0
        %3515 = vmatpush1.msra.mxu0 0.0
        %3516 = vmatprep.mubr.f32.mxu0 0.0
        %3517 = vmatmul.mubr.f32.gmra.mrb[0].mxu0 %v3100
        %v3518 = vpop.f32.mrb[0].mxu0
        %v3519 = vadd.f32 0.0, %v3518
        %v3520 = vpop.f32.mrb[0].mxu0
        %3521 = vdwg.mxu0
        %3522 = vmatprep.subr.mxu0 0.0
        %3523 = vmatpush1.msra.mxu0 %v2804
        %3524 = vmatprep.subr.mxu0 0.0
        %3525 = vmatpush1.msra.mxu0 %v2805
        %3526 = vmatprep.subr.mxu0 0.0
        %3527 = vmatpush1.msra.mxu0 %v2806
        %3528 = vmatprep.subr.mxu0 0.0
        %3529 = vmatpush1.msra.mxu0 %v2807
        %3530 = vmatprep.subr.mxu0 0.0
        %3531 = vmatpush1.msra.mxu0 0.0
        %3532 = vmatprep.subr.mxu0 0.0
        %3533 = vmatpush1.msra.mxu0 0.0
        %3534 = vmatprep.subr.mxu0 0.0
        %3535 = vmatpush1.msra.mxu0 0.0
        %3536 = vmatprep.subr.mxu0 0.0
        %3537 = vmatpush1.msra.mxu0 0.0
        %3538 = vmatprep.subr.mxu0 0.0
        %3539 = vmatpush1.msra.mxu0 0.0
        %3540 = vmatprep.subr.mxu0 0.0
        %3541 = vmatpush1.msra.mxu0 0.0
        %3542 = vmatprep.subr.mxu0 0.0
        %3543 = vmatpush1.msra.mxu0 0.0
        %3544 = vmatprep.subr.mxu0 0.0
        %3545 = vmatpush1.msra.mxu0 0.0
        %3546 = vmatprep.subr.mxu0 0.0
        %3547 = vmatpush1.msra.mxu0 0.0
        %3548 = vmatprep.subr.mxu0 0.0
        %3549 = vmatpush1.msra.mxu0 0.0
        %3550 = vmatprep.subr.mxu0 0.0
        %3551 = vmatpush1.msra.mxu0 0.0
        %3552 = vmatprep.subr.mxu0 0.0
        %3553 = vmatpush1.msra.mxu0 0.0
        %3554 = vmatprep.subr.mxu0 0.0
        %3555 = vmatpush1.msra.mxu0 0.0
        %3556 = vmatprep.subr.mxu0 0.0
        %3557 = vmatpush1.msra.mxu0 0.0
        %3558 = vmatprep.subr.mxu0 0.0
        %3559 = vmatpush1.msra.mxu0 0.0
        %3560 = vmatprep.subr.mxu0 0.0
        %3561 = vmatpush1.msra.mxu0 0.0
        %3562 = vmatprep.subr.mxu0 0.0
        %3563 = vmatpush1.msra.mxu0 0.0
        %3564 = vmatprep.subr.mxu0 0.0
        %3565 = vmatpush1.msra.mxu0 0.0
        %3566 = vmatprep.subr.mxu0 0.0
        %3567 = vmatpush1.msra.mxu0 0.0
        %3568 = vmatprep.subr.mxu0 0.0
        %3569 = vmatpush1.msra.mxu0 0.0
        %3570 = vmatprep.subr.mxu0 0.0
        %3571 = vmatpush1.msra.mxu0 0.0
        %3572 = vmatprep.subr.mxu0 0.0
        %3573 = vmatpush1.msra.mxu0 0.0
        %3574 = vmatprep.subr.mxu0 0.0
        %3575 = vmatpush1.msra.mxu0 0.0
        %3576 = vmatprep.subr.mxu0 0.0
        %3577 = vmatpush1.msra.mxu0 0.0
        %3578 = vmatprep.subr.mxu0 0.0
        %3579 = vmatpush1.msra.mxu0 0.0
        %3580 = vmatprep.subr.mxu0 0.0
        %3581 = vmatpush1.msra.mxu0 0.0
        %3582 = vmatprep.subr.mxu0 0.0
        %3583 = vmatpush1.msra.mxu0 0.0
        %3584 = vmatprep.subr.mxu0 0.0
        %3585 = vmatpush1.msra.mxu0 0.0
        %3586 = vmatprep.mubr.f32.mxu0 0.0
        %3587 = vmatmul.mubr.f32.gmra.mrb[0].mxu0 %v3100
        %v3588 = vpop.f32.mrb[0].mxu0
        %v3589 = vadd.f32 0.0, %v3588
        %v3590 = vpop.f32.mrb[0].mxu0
        %3591 = vdwg.mxu0
        %3592 = vmatprep.subr.mxu0 0.0
        %3593 = vmatpush1.msra.mxu0 %v2808
        %3594 = vmatprep.subr.mxu0 0.0
        %3595 = vmatpush1.msra.mxu0 %v2809
        %3596 = vmatprep.subr.mxu0 0.0
        %3597 = vmatpush1.msra.mxu0 %v2810
        %3598 = vmatprep.subr.mxu0 0.0
        %3599 = vmatpush1.msra.mxu0 %v2811
        %3600 = vmatprep.subr.mxu0 0.0
        %3601 = vmatpush1.msra.mxu0 0.0
        %3602 = vmatprep.subr.mxu0 0.0
        %3603 = vmatpush1.msra.mxu0 0.0
        %3604 = vmatprep.subr.mxu0 0.0
        %3605 = vmatpush1.msra.mxu0 0.0
        %3606 = vmatprep.subr.mxu0 0.0
        %3607 = vmatpush1.msra.mxu0 0.0
        %3608 = vmatprep.subr.mxu0 0.0
        %3609 = vmatpush1.msra.mxu0 0.0
        %3610 = vmatprep.subr.mxu0 0.0
        %3611 = vmatpush1.msra.mxu0 0.0
        %3612 = vmatprep.subr.mxu0 0.0
        %3613 = vmatpush1.msra.mxu0 0.0
        %3614 = vmatprep.subr.mxu0 0.0
        %3615 = vmatpush1.msra.mxu0 0.0
        %3616 = vmatprep.subr.mxu0 0.0
        %3617 = vmatpush1.msra.mxu0 0.0
        %3618 = vmatprep.subr.mxu0 0.0
        %3619 = vmatpush1.msra.mxu0 0.0
        %3620 = vmatprep.subr.mxu0 0.0
        %3621 = vmatpush1.msra.mxu0 0.0
        %3622 = vmatprep.subr.mxu0 0.0
        %3623 = vmatpush1.msra.mxu0 0.0
        %3624 = vmatprep.subr.mxu0 0.0
        %3625 = vmatpush1.msra.mxu0 0.0
        %3626 = vmatprep.subr.mxu0 0.0
        %3627 = vmatpush1.msra.mxu0 0.0
        %3628 = vmatprep.subr.mxu0 0.0
        %3629 = vmatpush1.msra.mxu0 0.0
        %3630 = vmatprep.subr.mxu0 0.0
        %3631 = vmatpush1.msra.mxu0 0.0
        %3632 = vmatprep.subr.mxu0 0.0
        %3633 = vmatpush1.msra.mxu0 0.0
        %3634 = vmatprep.subr.mxu0 0.0
        %3635 = vmatpush1.msra.mxu0 0.0
        %3636 = vmatprep.subr.mxu0 0.0
        %3637 = vmatpush1.msra.mxu0 0.0
        %3638 = vmatprep.subr.mxu0 0.0
        %3639 = vmatpush1.msra.mxu0 0.0
        %3640 = vmatprep.subr.mxu0 0.0
        %3641 = vmatpush1.msra.mxu0 0.0
        %3642 = vmatprep.subr.mxu0 0.0
        %3643 = vmatpush1.msra.mxu0 0.0
        %3644 = vmatprep.subr.mxu0 0.0
        %3645 = vmatpush1.msra.mxu0 0.0
        %3646 = vmatprep.subr.mxu0 0.0
        %3647 = vmatpush1.msra.mxu0 0.0
        %3648 = vmatprep.subr.mxu0 0.0
        %3649 = vmatpush1.msra.mxu0 0.0
        %3650 = vmatprep.subr.mxu0 0.0
        %3651 = vmatpush1.msra.mxu0 0.0
        %3652 = vmatprep.subr.mxu0 0.0
        %3653 = vmatpush1.msra.mxu0 0.0
        %3654 = vmatprep.subr.mxu0 0.0
        %3655 = vmatpush1.msra.mxu0 0.0
        %3656 = vmatprep.mubr.f32.mxu0 0.0
        %3657 = vmatmul.mubr.f32.gmra.mrb[0].mxu0 %v3100
        %v3658 = vpop.f32.mrb[0].mxu0
        %v3659 = vadd.f32 0.0, %v3658
        %v3660 = vpop.f32.mrb[0].mxu0
        %3661 = vdwg.mxu0
        %v3663 = vsel %vm1801, %v2886, 0
        %v3666 = vsel %vm1801, %v3169, 0
        %3668 = vmatprep.subr.mxu0 0.0
        %3669 = vmatpush1.xpose.msra.mxu0 %v3666
        %3670 = vmatprep.subr.mxu0 0.0
        %3671 = vmatpush1.xpose.msra.mxu0 0.0
        %3672 = vmatprep.subr.mxu0 0.0
        %3673 = vmatpush1.xpose.msra.mxu0 0.0
        %3674 = vmatprep.subr.mxu0 0.0
        %3675 = vmatpush1.xpose.msra.mxu0 0.0
        %3676 = vmatprep.subr.mxu0 0.0
        %3677 = vmatpush1.xpose.msra.mxu0 0.0
        %3678 = vmatprep.subr.mxu0 0.0
        %3679 = vmatpush1.xpose.msra.mxu0 0.0
        %3680 = vmatprep.subr.mxu0 0.0
        %3681 = vmatpush1.xpose.msra.mxu0 0.0
        %3682 = vmatprep.subr.mxu0 0.0
        %3683 = vmatpush1.xpose.msra.mxu0 0.0
        %3684 = vmatprep.subr.mxu0 0.0
        %3685 = vmatpush1.xpose.msra.mxu0 0.0
        %3686 = vmatprep.subr.mxu0 0.0
        %3687 = vmatpush1.xpose.msra.mxu0 0.0
        %3688 = vmatprep.subr.mxu0 0.0
        %3689 = vmatpush1.xpose.msra.mxu0 0.0
        %3690 = vmatprep.subr.mxu0 0.0
        %3691 = vmatpush1.xpose.msra.mxu0 0.0
        %3692 = vmatprep.subr.mxu0 0.0
        %3693 = vmatpush1.xpose.msra.mxu0 0.0
        %3694 = vmatprep.subr.mxu0 0.0
        %3695 = vmatpush1.xpose.msra.mxu0 0.0
        %3696 = vmatprep.subr.mxu0 0.0
        %3697 = vmatpush1.xpose.msra.mxu0 0.0
        %3698 = vmatprep.subr.mxu0 0.0
        %3699 = vmatpush1.xpose.msra.mxu0 0.0
        %3700 = vmatprep.subr.mxu0 0.0
        %3701 = vmatpush1.xpose.msra.mxu0 0.0
        %3702 = vmatprep.subr.mxu0 0.0
        %3703 = vmatpush1.xpose.msra.mxu0 0.0
        %3704 = vmatprep.subr.mxu0 0.0
        %3705 = vmatpush1.xpose.msra.mxu0 0.0
        %3706 = vmatprep.subr.mxu0 0.0
        %3707 = vmatpush1.xpose.msra.mxu0 0.0
        %3708 = vmatprep.subr.mxu0 0.0
        %3709 = vmatpush1.xpose.msra.mxu0 0.0
        %3710 = vmatprep.subr.mxu0 0.0
        %3711 = vmatpush1.xpose.msra.mxu0 0.0
        %3712 = vmatprep.subr.mxu0 0.0
        %3713 = vmatpush1.xpose.msra.mxu0 0.0
        %3714 = vmatprep.subr.mxu0 0.0
        %3715 = vmatpush1.xpose.msra.mxu0 0.0
        %3716 = vmatprep.subr.mxu0 0.0
        %3717 = vmatpush1.xpose.msra.mxu0 0.0
        %3718 = vmatprep.subr.mxu0 0.0
        %3719 = vmatpush1.xpose.msra.mxu0 0.0
        %3720 = vmatprep.subr.mxu0 0.0
        %3721 = vmatpush1.xpose.msra.mxu0 0.0
        %3722 = vmatprep.subr.mxu0 0.0
        %3723 = vmatpush1.xpose.msra.mxu0 0.0
        %3724 = vmatprep.subr.mxu0 0.0
        %3725 = vmatpush1.xpose.msra.mxu0 0.0
        %3726 = vmatprep.subr.mxu0 0.0
        %3727 = vmatpush1.xpose.msra.mxu0 0.0
        %3728 = vmatprep.subr.mxu0 0.0
        %3729 = vmatpush1.xpose.msra.mxu0 0.0
        %3730 = vmatprep.subr.mxu0 0.0
        %3731 = vmatpush1.xpose.msra.mxu0 0.0
        %3732 = vmatprep.mubr.f32.mxu0 0.0
        %3733 = vmatmul.mubr.f32.gmra.mrb[0].mxu0 %v3663
        %v3734 = vpop.f32.mrb[0].mxu0
        %v3735 = vadd.f32 0.0, %v3734
        %v3736 = vpop.f32.mrb[0].mxu0
        %3737 = vdwg.mxu0
        %v3739 = vsel %vm1801, %v2956, 0
        %v3742 = vsel %vm1801, %v3239, 0
        %3744 = vmatprep.subr.mxu0 0.0
        %3745 = vmatpush1.xpose.msra.mxu0 %v3742
        %3746 = vmatprep.subr.mxu0 0.0
        %3747 = vmatpush1.xpose.msra.mxu0 0.0
        %3748 = vmatprep.subr.mxu0 0.0
        %3749 = vmatpush1.xpose.msra.mxu0 0.0
        %3750 = vmatprep.subr.mxu0 0.0
        %3751 = vmatpush1.xpose.msra.mxu0 0.0
        %3752 = vmatprep.subr.mxu0 0.0
        %3753 = vmatpush1.xpose.msra.mxu0 0.0
        %3754 = vmatprep.subr.mxu0 0.0
        %3755 = vmatpush1.xpose.msra.mxu0 0.0
        %3756 = vmatprep.subr.mxu0 0.0
        %3757 = vmatpush1.xpose.msra.mxu0 0.0
        %3758 = vmatprep.subr.mxu0 0.0
        %3759 = vmatpush1.xpose.msra.mxu0 0.0
        %3760 = vmatprep.subr.mxu0 0.0
        %3761 = vmatpush1.xpose.msra.mxu0 0.0
        %3762 = vmatprep.subr.mxu0 0.0
        %3763 = vmatpush1.xpose.msra.mxu0 0.0
        %3764 = vmatprep.subr.mxu0 0.0
        %3765 = vmatpush1.xpose.msra.mxu0 0.0
        %3766 = vmatprep.subr.mxu0 0.0
        %3767 = vmatpush1.xpose.msra.mxu0 0.0
        %3768 = vmatprep.subr.mxu0 0.0
        %3769 = vmatpush1.xpose.msra.mxu0 0.0
        %3770 = vmatprep.subr.mxu0 0.0
        %3771 = vmatpush1.xpose.msra.mxu0 0.0
        %3772 = vmatprep.subr.mxu0 0.0
        %3773 = vmatpush1.xpose.msra.mxu0 0.0
        %3774 = vmatprep.subr.mxu0 0.0
        %3775 = vmatpush1.xpose.msra.mxu0 0.0
        %3776 = vmatprep.subr.mxu0 0.0
        %3777 = vmatpush1.xpose.msra.mxu0 0.0
        %3778 = vmatprep.subr.mxu0 0.0
        %3779 = vmatpush1.xpose.msra.mxu0 0.0
        %3780 = vmatprep.subr.mxu0 0.0
        %3781 = vmatpush1.xpose.msra.mxu0 0.0
        %3782 = vmatprep.subr.mxu0 0.0
        %3783 = vmatpush1.xpose.msra.mxu0 0.0
        %3784 = vmatprep.subr.mxu0 0.0
        %3785 = vmatpush1.xpose.msra.mxu0 0.0
        %3786 = vmatprep.subr.mxu0 0.0
        %3787 = vmatpush1.xpose.msra.mxu0 0.0
        %3788 = vmatprep.subr.mxu0 0.0
        %3789 = vmatpush1.xpose.msra.mxu0 0.0
        %3790 = vmatprep.subr.mxu0 0.0
        %3791 = vmatpush1.xpose.msra.mxu0 0.0
        %3792 = vmatprep.subr.mxu0 0.0
        %3793 = vmatpush1.xpose.msra.mxu0 0.0
        %3794 = vmatprep.subr.mxu0 0.0
        %3795 = vmatpush1.xpose.msra.mxu0 0.0
        %3796 = vmatprep.subr.mxu0 0.0
        %3797 = vmatpush1.xpose.msra.mxu0 0.0
        %3798 = vmatprep.subr.mxu0 0.0
        %3799 = vmatpush1.xpose.msra.mxu0 0.0
        %3800 = vmatprep.subr.mxu0 0.0
        %3801 = vmatpush1.xpose.msra.mxu0 0.0
        %3802 = vmatprep.subr.mxu0 0.0
        %3803 = vmatpush1.xpose.msra.mxu0 0.0
        %3804 = vmatprep.subr.mxu0 0.0
        %3805 = vmatpush1.xpose.msra.mxu0 0.0
        %3806 = vmatprep.subr.mxu0 0.0
        %3807 = vmatpush1.xpose.msra.mxu0 0.0
        %3808 = vmatprep.mubr.f32.mxu0 0.0
        %3809 = vmatmul.mubr.f32.gmra.mrb[0].mxu0 %v3739
        %v3810 = vpop.f32.mrb[0].mxu0
        %v3811 = vadd.f32 0.0, %v3810
        %v3812 = vpop.f32.mrb[0].mxu0
        %3813 = vdwg.mxu0
        %v3815 = vsel %vm1801, %v3026, 0
        %v3818 = vsel %vm1801, %v3309, 0
        %3820 = vmatprep.subr.mxu0 0.0
        %3821 = vmatpush1.xpose.msra.mxu0 %v3818
        %3822 = vmatprep.subr.mxu0 0.0
        %3823 = vmatpush1.xpose.msra.mxu0 0.0
        %3824 = vmatprep.subr.mxu0 0.0
        %3825 = vmatpush1.xpose.msra.mxu0 0.0
        %3826 = vmatprep.subr.mxu0 0.0
        %3827 = vmatpush1.xpose.msra.mxu0 0.0
        %3828 = vmatprep.subr.mxu0 0.0
        %3829 = vmatpush1.xpose.msra.mxu0 0.0
        %3830 = vmatprep.subr.mxu0 0.0
        %3831 = vmatpush1.xpose.msra.mxu0 0.0
        %3832 = vmatprep.subr.mxu0 0.0
        %3833 = vmatpush1.xpose.msra.mxu0 0.0
        %3834 = vmatprep.subr.mxu0 0.0
        %3835 = vmatpush1.xpose.msra.mxu0 0.0
        %3836 = vmatprep.subr.mxu0 0.0
        %3837 = vmatpush1.xpose.msra.mxu0 0.0
        %3838 = vmatprep.subr.mxu0 0.0
        %3839 = vmatpush1.xpose.msra.mxu0 0.0
        %3840 = vmatprep.subr.mxu0 0.0
        %3841 = vmatpush1.xpose.msra.mxu0 0.0
        %3842 = vmatprep.subr.mxu0 0.0
        %3843 = vmatpush1.xpose.msra.mxu0 0.0
        %3844 = vmatprep.subr.mxu0 0.0
        %3845 = vmatpush1.xpose.msra.mxu0 0.0
        %3846 = vmatprep.subr.mxu0 0.0
        %3847 = vmatpush1.xpose.msra.mxu0 0.0
        %3848 = vmatprep.subr.mxu0 0.0
        %3849 = vmatpush1.xpose.msra.mxu0 0.0
        %3850 = vmatprep.subr.mxu0 0.0
        %3851 = vmatpush1.xpose.msra.mxu0 0.0
        %3852 = vmatprep.subr.mxu0 0.0
        %3853 = vmatpush1.xpose.msra.mxu0 0.0
        %3854 = vmatprep.subr.mxu0 0.0
        %3855 = vmatpush1.xpose.msra.mxu0 0.0
        %3856 = vmatprep.subr.mxu0 0.0
        %3857 = vmatpush1.xpose.msra.mxu0 0.0
        %3858 = vmatprep.subr.mxu0 0.0
        %3859 = vmatpush1.xpose.msra.mxu0 0.0
        %3860 = vmatprep.subr.mxu0 0.0
        %3861 = vmatpush1.xpose.msra.mxu0 0.0
        %3862 = vmatprep.subr.mxu0 0.0
        %3863 = vmatpush1.xpose.msra.mxu0 0.0
        %3864 = vmatprep.subr.mxu0 0.0
        %3865 = vmatpush1.xpose.msra.mxu0 0.0
        %3866 = vmatprep.subr.mxu0 0.0
        %3867 = vmatpush1.xpose.msra.mxu0 0.0
        %3868 = vmatprep.subr.mxu0 0.0
        %3869 = vmatpush1.xpose.msra.mxu0 0.0
        %3870 = vmatprep.subr.mxu0 0.0
        %3871 = vmatpush1.xpose.msra.mxu0 0.0
        %3872 = vmatprep.subr.mxu0 0.0
        %3873 = vmatpush1.xpose.msra.mxu0 0.0
        %3874 = vmatprep.subr.mxu0 0.0
        %3875 = vmatpush1.xpose.msra.mxu0 0.0
        %3876 = vmatprep.subr.mxu0 0.0
        %3877 = vmatpush1.xpose.msra.mxu0 0.0
        %3878 = vmatprep.subr.mxu0 0.0
        %3879 = vmatpush1.xpose.msra.mxu0 0.0
        %3880 = vmatprep.subr.mxu0 0.0
        %3881 = vmatpush1.xpose.msra.mxu0 0.0
        %3882 = vmatprep.subr.mxu0 0.0
        %3883 = vmatpush1.xpose.msra.mxu0 0.0
        %3884 = vmatprep.mubr.f32.mxu0 0.0
        %3885 = vmatmul.mubr.f32.gmra.mrb[0].mxu0 %v3815
        %v3886 = vpop.f32.mrb[0].mxu0
        %v3887 = vadd.f32 0.0, %v3886
        %v3888 = vpop.f32.mrb[0].mxu0
        %3889 = vdwg.mxu0
        %v3891 = vsel %vm1801, %v3096, 0
        %v3894 = vsel %vm1801, %v3379, 0
        %3896 = vmatprep.subr.mxu0 0.0
        %3897 = vmatpush1.xpose.msra.mxu0 %v3894
        %3898 = vmatprep.subr.mxu0 0.0
        %3899 = vmatpush1.xpose.msra.mxu0 0.0
        %3900 = vmatprep.subr.mxu0 0.0
        %3901 = vmatpush1.xpose.msra.mxu0 0.0
        %3902 = vmatprep.subr.mxu0 0.0
        %3903 = vmatpush1.xpose.msra.mxu0 0.0
        %3904 = vmatprep.subr.mxu0 0.0
        %3905 = vmatpush1.xpose.msra.mxu0 0.0
        %3906 = vmatprep.subr.mxu0 0.0
        %3907 = vmatpush1.xpose.msra.mxu0 0.0
        %3908 = vmatprep.subr.mxu0 0.0
        %3909 = vmatpush1.xpose.msra.mxu0 0.0
        %3910 = vmatprep.subr.mxu0 0.0
        %3911 = vmatpush1.xpose.msra.mxu0 0.0
        %3912 = vmatprep.subr.mxu0 0.0
        %3913 = vmatpush1.xpose.msra.mxu0 0.0
        %3914 = vmatprep.subr.mxu0 0.0
        %3915 = vmatpush1.xpose.msra.mxu0 0.0
        %3916 = vmatprep.subr.mxu0 0.0
        %3917 = vmatpush1.xpose.msra.mxu0 0.0
        %3918 = vmatprep.subr.mxu0 0.0
        %3919 = vmatpush1.xpose.msra.mxu0 0.0
        %3920 = vmatprep.subr.mxu0 0.0
        %3921 = vmatpush1.xpose.msra.mxu0 0.0
        %3922 = vmatprep.subr.mxu0 0.0
        %3923 = vmatpush1.xpose.msra.mxu0 0.0
        %3924 = vmatprep.subr.mxu0 0.0
        %3925 = vmatpush1.xpose.msra.mxu0 0.0
        %3926 = vmatprep.subr.mxu0 0.0
        %3927 = vmatpush1.xpose.msra.mxu0 0.0
        %3928 = vmatprep.subr.mxu0 0.0
        %3929 = vmatpush1.xpose.msra.mxu0 0.0
        %3930 = vmatprep.subr.mxu0 0.0
        %3931 = vmatpush1.xpose.msra.mxu0 0.0
        %3932 = vmatprep.subr.mxu0 0.0
        %3933 = vmatpush1.xpose.msra.mxu0 0.0
        %3934 = vmatprep.subr.mxu0 0.0
        %3935 = vmatpush1.xpose.msra.mxu0 0.0
        %3936 = vmatprep.subr.mxu0 0.0
        %3937 = vmatpush1.xpose.msra.mxu0 0.0
        %3938 = vmatprep.subr.mxu0 0.0
        %3939 = vmatpush1.xpose.msra.mxu0 0.0
        %3940 = vmatprep.subr.mxu0 0.0
        %3941 = vmatpush1.xpose.msra.mxu0 0.0
        %3942 = vmatprep.subr.mxu0 0.0
        %3943 = vmatpush1.xpose.msra.mxu0 0.0
        %3944 = vmatprep.subr.mxu0 0.0
        %3945 = vmatpush1.xpose.msra.mxu0 0.0
        %3946 = vmatprep.subr.mxu0 0.0
        %3947 = vmatpush1.xpose.msra.mxu0 0.0
        %3948 = vmatprep.subr.mxu0 0.0
        %3949 = vmatpush1.xpose.msra.mxu0 0.0
        %3950 = vmatprep.subr.mxu0 0.0
        %3951 = vmatpush1.xpose.msra.mxu0 0.0
        %3952 = vmatprep.subr.mxu0 0.0
        %3953 = vmatpush1.xpose.msra.mxu0 0.0
        %3954 = vmatprep.subr.mxu0 0.0
        %3955 = vmatpush1.xpose.msra.mxu0 0.0
        %3956 = vmatprep.subr.mxu0 0.0
        %3957 = vmatpush1.xpose.msra.mxu0 0.0
        %3958 = vmatprep.subr.mxu0 0.0
        %3959 = vmatpush1.xpose.msra.mxu0 0.0
        %3960 = vmatprep.mubr.f32.mxu0 0.0
        %3961 = vmatmul.mubr.f32.gmra.mrb[0].mxu0 %v3891
        %v3962 = vpop.f32.mrb[0].mxu0
        %v3963 = vadd.f32 0.0, %v3962
        %v3964 = vpop.f32.mrb[0].mxu0
        %3965 = vdwg.mxu0
        %v3966 = vsel %vm904, 1, 0
        %3967 = vset.pattern.permute.xlu0 0
        %3968 = vperm.xlu0 %3967, %v3966
        %v3969 = vpop.permute.xlu0 %3968
        %vm3970 = vcmp.eq.s32.totalorder %v3969, 1
        %v3971 = vsel %vm3970, -1e+09, %v3735
        %v3972 = vsel %vm3970, -1e+09, %v3811
        %v3973 = vsel %vm3970, -1e+09, %v3887
        %v3974 = vsel %vm3970, -1e+09, %v3963
        %v3975 = vsel %vm1801, %v3971, -inf
        %3976 = vmax.xlane.f32.xlu0 %v3975
        %v3977 = vpop.xlane.xlu0 %3976
        %v3978 = vsel %vm1801, %v3972, -inf
        %3979 = vmax.xlane.f32.xlu0 %v3978
        %v3980 = vpop.xlane.xlu0 %3979
        %v3981 = vsel %vm1801, %v3973, -inf
        %3982 = vmax.xlane.f32.xlu0 %v3981
        %v3983 = vpop.xlane.xlu0 %3982
        %v3984 = vsel %vm1801, %v3974, -inf
        %3985 = vmax.xlane.f32.xlu0 %v3984
        %v3986 = vpop.xlane.xlu0 %3985
        %v3987 = vsub.f32 %v3971, %v3977
        %v3988 = vsub.f32 %v3972, %v3980
        %v3989 = vsub.f32 %v3973, %v3983
        %v3990 = vsub.f32 %v3974, %v3986
        %v3991 = vmul.f32 %v3987, 1.442695
        %v3992 = vpow.pop %v3991
        %v3993 = vmul.f32 %v3988, 1.442695
        %v3994 = vpow.pop %v3993
        %v3995 = vmul.f32 %v3989, 1.442695
        %v3996 = vpow.pop %v3995
        %v3997 = vmul.f32 %v3990, 1.442695
        %v3998 = vpow.pop %v3997
        %v3999 = vsel %vm1801, %v3992, 0.0
        %4000 = vadd.xlane.f32.xlu0 %v3999
        %v4001 = vpop.xlane.xlu0 %4000
        %v4002 = vsel %vm1801, %v3994, 0.0
        %4003 = vadd.xlane.f32.xlu0 %v4002
        %v4004 = vpop.xlane.xlu0 %4003
        %v4005 = vsel %vm1801, %v3996, 0.0
        %4006 = vadd.xlane.f32.xlu0 %v4005
        %v4007 = vpop.xlane.xlu0 %4006
        %v4008 = vsel %vm1801, %v3998, 0.0
        %4009 = vadd.xlane.f32.xlu0 %v4008
        %v4010 = vpop.xlane.xlu0 %4009
        %v4011 = vrcp.pop %v4001
        %v4012 = vrcp.pop %v4004
        %v4013 = vrcp.pop %v4007
        %v4014 = vrcp.pop %v4010
        %v4015 = vmul.f32 %v3992, %v4011
        %v4016 = vmul.f32 %v3994, %v4012
        %v4017 = vmul.f32 %v3996, %v4013
        %v4018 = vmul.f32 %v3998, %v4014
        %v4020 = vsel %vm1801, %v4015, 0
        %4022 = vmatprep.subr.mxu0 0.0
        %4023 = vmatpush1.msra.mxu0 %v3449
        %4024 = vmatprep.subr.mxu0 0.0
        %4025 = vmatpush1.msra.mxu0 0.0
        %4026 = vmatprep.subr.mxu0 0.0
        %4027 = vmatpush1.msra.mxu0 0.0
        %4028 = vmatprep.subr.mxu0 0.0
        %4029 = vmatpush1.msra.mxu0 0.0
        %4030 = vmatprep.subr.mxu0 0.0
        %4031 = vmatpush1.msra.mxu0 0.0
        %4032 = vmatprep.subr.mxu0 0.0
        %4033 = vmatpush1.msra.mxu0 0.0
        %4034 = vmatprep.subr.mxu0 0.0
        %4035 = vmatpush1.msra.mxu0 0.0
        %4036 = vmatprep.subr.mxu0 0.0
        %4037 = vmatpush1.msra.mxu0 0.0
        %4038 = vmatprep.subr.mxu0 0.0
        %4039 = vmatpush1.msra.mxu0 0.0
        %4040 = vmatprep.subr.mxu0 0.0
        %4041 = vmatpush1.msra.mxu0 0.0
        %4042 = vmatprep.subr.mxu0 0.0
        %4043 = vmatpush1.msra.mxu0 0.0
        %4044 = vmatprep.subr.mxu0 0.0
        %4045 = vmatpush1.msra.mxu0 0.0
        %4046 = vmatprep.subr.mxu0 0.0
        %4047 = vmatpush1.msra.mxu0 0.0
        %4048 = vmatprep.subr.mxu0 0.0
        %4049 = vmatpush1.msra.mxu0 0.0
        %4050 = vmatprep.subr.mxu0 0.0
        %4051 = vmatpush1.msra.mxu0 0.0
        %4052 = vmatprep.subr.mxu0 0.0
        %4053 = vmatpush1.msra.mxu0 0.0
        %4054 = vmatprep.subr.mxu0 0.0
        %4055 = vmatpush1.msra.mxu0 0.0
        %4056 = vmatprep.subr.mxu0 0.0
        %4057 = vmatpush1.msra.mxu0 0.0
        %4058 = vmatprep.subr.mxu0 0.0
        %4059 = vmatpush1.msra.mxu0 0.0
        %4060 = vmatprep.subr.mxu0 0.0
        %4061 = vmatpush1.msra.mxu0 0.0
        %4062 = vmatprep.subr.mxu0 0.0
        %4063 = vmatpush1.msra.mxu0 0.0
        %4064 = vmatprep.subr.mxu0 0.0
        %4065 = vmatpush1.msra.mxu0 0.0
        %4066 = vmatprep.subr.mxu0 0.0
        %4067 = vmatpush1.msra.mxu0 0.0
        %4068 = vmatprep.subr.mxu0 0.0
        %4069 = vmatpush1.msra.mxu0 0.0
        %4070 = vmatprep.subr.mxu0 0.0
        %4071 = vmatpush1.msra.mxu0 0.0
        %4072 = vmatprep.subr.mxu0 0.0
        %4073 = vmatpush1.msra.mxu0 0.0
        %4074 = vmatprep.subr.mxu0 0.0
        %4075 = vmatpush1.msra.mxu0 0.0
        %4076 = vmatprep.subr.mxu0 0.0
        %4077 = vmatpush1.msra.mxu0 0.0
        %4078 = vmatprep.subr.mxu0 0.0
        %4079 = vmatpush1.msra.mxu0 0.0
        %4080 = vmatprep.subr.mxu0 0.0
        %4081 = vmatpush1.msra.mxu0 0.0
        %4082 = vmatprep.subr.mxu0 0.0
        %4083 = vmatpush1.msra.mxu0 0.0
        %4084 = vmatprep.subr.mxu0 0.0
        %4085 = vmatpush1.msra.mxu0 0.0
        %4086 = vmatprep.mubr.f32.mxu0 0.0
        %4087 = vmatmul.mubr.f32.gmra.mrb[0].mxu0 %v4020
        %v4088 = vpop.f32.mrb[0].mxu0
        %v4089 = vadd.f32 0.0, %v4088
        %v4090 = vpop.f32.mrb[0].mxu0
        %4091 = vdwg.mxu0
        %v4093 = vsel %vm1801, %v4016, 0
        %4095 = vmatprep.subr.mxu0 0.0
        %4096 = vmatpush1.msra.mxu0 %v3519
        %4097 = vmatprep.subr.mxu0 0.0
        %4098 = vmatpush1.msra.mxu0 0.0
        %4099 = vmatprep.subr.mxu0 0.0
        %4100 = vmatpush1.msra.mxu0 0.0
        %4101 = vmatprep.subr.mxu0 0.0
        %4102 = vmatpush1.msra.mxu0 0.0
        %4103 = vmatprep.subr.mxu0 0.0
        %4104 = vmatpush1.msra.mxu0 0.0
        %4105 = vmatprep.subr.mxu0 0.0
        %4106 = vmatpush1.msra.mxu0 0.0
        %4107 = vmatprep.subr.mxu0 0.0
        %4108 = vmatpush1.msra.mxu0 0.0
        %4109 = vmatprep.subr.mxu0 0.0
        %4110 = vmatpush1.msra.mxu0 0.0
        %4111 = vmatprep.subr.mxu0 0.0
        %4112 = vmatpush1.msra.mxu0 0.0
        %4113 = vmatprep.subr.mxu0 0.0
        %4114 = vmatpush1.msra.mxu0 0.0
        %4115 = vmatprep.subr.mxu0 0.0
        %4116 = vmatpush1.msra.mxu0 0.0
        %4117 = vmatprep.subr.mxu0 0.0
        %4118 = vmatpush1.msra.mxu0 0.0
        %4119 = vmatprep.subr.mxu0 0.0
        %4120 = vmatpush1.msra.mxu0 0.0
        %4121 = vmatprep.subr.mxu0 0.0
        %4122 = vmatpush1.msra.mxu0 0.0
        %4123 = vmatprep.subr.mxu0 0.0
        %4124 = vmatpush1.msra.mxu0 0.0
        %4125 = vmatprep.subr.mxu0 0.0
        %4126 = vmatpush1.msra.mxu0 0.0
        %4127 = vmatprep.subr.mxu0 0.0
        %4128 = vmatpush1.msra.mxu0 0.0
        %4129 = vmatprep.subr.mxu0 0.0
        %4130 = vmatpush1.msra.mxu0 0.0
        %4131 = vmatprep.subr.mxu0 0.0
        %4132 = vmatpush1.msra.mxu0 0.0
        %4133 = vmatprep.subr.mxu0 0.0
        %4134 = vmatpush1.msra.mxu0 0.0
        %4135 = vmatprep.subr.mxu0 0.0
        %4136 = vmatpush1.msra.mxu0 0.0
        %4137 = vmatprep.subr.mxu0 0.0
        %4138 = vmatpush1.msra.mxu0 0.0
        %4139 = vmatprep.subr.mxu0 0.0
        %4140 = vmatpush1.msra.mxu0 0.0
        %4141 = vmatprep.subr.mxu0 0.0
        %4142 = vmatpush1.msra.mxu0 0.0
        %4143 = vmatprep.subr.mxu0 0.0
        %4144 = vmatpush1.msra.mxu0 0.0
        %4145 = vmatprep.subr.mxu0 0.0
        %4146 = vmatpush1.msra.mxu0 0.0
        %4147 = vmatprep.subr.mxu0 0.0
        %4148 = vmatpush1.msra.mxu0 0.0
        %4149 = vmatprep.subr.mxu0 0.0
        %4150 = vmatpush1.msra.mxu0 0.0
        %4151 = vmatprep.subr.mxu0 0.0
        %4152 = vmatpush1.msra.mxu0 0.0
        %4153 = vmatprep.subr.mxu0 0.0
        %4154 = vmatpush1.msra.mxu0 0.0
        %4155 = vmatprep.subr.mxu0 0.0
        %4156 = vmatpush1.msra.mxu0 0.0
        %4157 = vmatprep.subr.mxu0 0.0
        %4158 = vmatpush1.msra.mxu0 0.0
        %4159 = vmatprep.mubr.f32.mxu0 0.0
        %4160 = vmatmul.mubr.f32.gmra.mrb[0].mxu0 %v4093
        %v4161 = vpop.f32.mrb[0].mxu0
        %v4162 = vadd.f32 0.0, %v4161
        %v4163 = vpop.f32.mrb[0].mxu0
        %4164 = vdwg.mxu0
        %v4166 = vsel %vm1801, %v4017, 0
        %4168 = vmatprep.subr.mxu0 0.0
        %4169 = vmatpush1.msra.mxu0 %v3589
        %4170 = vmatprep.subr.mxu0 0.0
        %4171 = vmatpush1.msra.mxu0 0.0
        %4172 = vmatprep.subr.mxu0 0.0
        %4173 = vmatpush1.msra.mxu0 0.0
        %4174 = vmatprep.subr.mxu0 0.0
        %4175 = vmatpush1.msra.mxu0 0.0
        %4176 = vmatprep.subr.mxu0 0.0
        %4177 = vmatpush1.msra.mxu0 0.0
        %4178 = vmatprep.subr.mxu0 0.0
        %4179 = vmatpush1.msra.mxu0 0.0
        %4180 = vmatprep.subr.mxu0 0.0
        %4181 = vmatpush1.msra.mxu0 0.0
        %4182 = vmatprep.subr.mxu0 0.0
        %4183 = vmatpush1.msra.mxu0 0.0
        %4184 = vmatprep.subr.mxu0 0.0
        %4185 = vmatpush1.msra.mxu0 0.0
        %4186 = vmatprep.subr.mxu0 0.0
        %4187 = vmatpush1.msra.mxu0 0.0
        %4188 = vmatprep.subr.mxu0 0.0
        %4189 = vmatpush1.msra.mxu0 0.0
        %4190 = vmatprep.subr.mxu0 0.0
        %4191 = vmatpush1.msra.mxu0 0.0
        %4192 = vmatprep.subr.mxu0 0.0
        %4193 = vmatpush1.msra.mxu0 0.0
        %4194 = vmatprep.subr.mxu0 0.0
        %4195 = vmatpush1.msra.mxu0 0.0
        %4196 = vmatprep.subr.mxu0 0.0
        %4197 = vmatpush1.msra.mxu0 0.0
        %4198 = vmatprep.subr.mxu0 0.0
        %4199 = vmatpush1.msra.mxu0 0.0
        %4200 = vmatprep.subr.mxu0 0.0
        %4201 = vmatpush1.msra.mxu0 0.0
        %4202 = vmatprep.subr.mxu0 0.0
        %4203 = vmatpush1.msra.mxu0 0.0
        %4204 = vmatprep.subr.mxu0 0.0
        %4205 = vmatpush1.msra.mxu0 0.0
        %4206 = vmatprep.subr.mxu0 0.0
        %4207 = vmatpush1.msra.mxu0 0.0
        %4208 = vmatprep.subr.mxu0 0.0
        %4209 = vmatpush1.msra.mxu0 0.0
        %4210 = vmatprep.subr.mxu0 0.0
        %4211 = vmatpush1.msra.mxu0 0.0
        %4212 = vmatprep.subr.mxu0 0.0
        %4213 = vmatpush1.msra.mxu0 0.0
        %4214 = vmatprep.subr.mxu0 0.0
        %4215 = vmatpush1.msra.mxu0 0.0
        %4216 = vmatprep.subr.mxu0 0.0
        %4217 = vmatpush1.msra.mxu0 0.0
        %4218 = vmatprep.subr.mxu0 0.0
        %4219 = vmatpush1.msra.mxu0 0.0
        %4220 = vmatprep.subr.mxu0 0.0
        %4221 = vmatpush1.msra.mxu0 0.0
        %4222 = vmatprep.subr.mxu0 0.0
        %4223 = vmatpush1.msra.mxu0 0.0
        %4224 = vmatprep.subr.mxu0 0.0
        %4225 = vmatpush1.msra.mxu0 0.0
        %4226 = vmatprep.subr.mxu0 0.0
        %4227 = vmatpush1.msra.mxu0 0.0
        %4228 = vmatprep.subr.mxu0 0.0
        %4229 = vmatpush1.msra.mxu0 0.0
        %4230 = vmatprep.subr.mxu0 0.0
        %4231 = vmatpush1.msra.mxu0 0.0
        %4232 = vmatprep.mubr.f32.mxu0 0.0
        %4233 = vmatmul.mubr.f32.gmra.mrb[0].mxu0 %v4166
        %v4234 = vpop.f32.mrb[0].mxu0
        %v4235 = vadd.f32 0.0, %v4234
        %v4236 = vpop.f32.mrb[0].mxu0
        %4237 = vdwg.mxu0
        %v4239 = vsel %vm1801, %v4018, 0
        %4241 = vmatprep.subr.mxu0 0.0
        %4242 = vmatpush1.msra.mxu0 %v3659
        %4243 = vmatprep.subr.mxu0 0.0
        %4244 = vmatpush1.msra.mxu0 0.0
        %4245 = vmatprep.subr.mxu0 0.0
        %4246 = vmatpush1.msra.mxu0 0.0
        %4247 = vmatprep.subr.mxu0 0.0
        %4248 = vmatpush1.msra.mxu0 0.0
        %4249 = vmatprep.subr.mxu0 0.0
        %4250 = vmatpush1.msra.mxu0 0.0
        %4251 = vmatprep.subr.mxu0 0.0
        %4252 = vmatpush1.msra.mxu0 0.0
        %4253 = vmatprep.subr.mxu0 0.0
        %4254 = vmatpush1.msra.mxu0 0.0
        %4255 = vmatprep.subr.mxu0 0.0
        %4256 = vmatpush1.msra.mxu0 0.0
        %4257 = vmatprep.subr.mxu0 0.0
        %4258 = vmatpush1.msra.mxu0 0.0
        %4259 = vmatprep.subr.mxu0 0.0
        %4260 = vmatpush1.msra.mxu0 0.0
        %4261 = vmatprep.subr.mxu0 0.0
        %4262 = vmatpush1.msra.mxu0 0.0
        %4263 = vmatprep.subr.mxu0 0.0
        %4264 = vmatpush1.msra.mxu0 0.0
        %4265 = vmatprep.subr.mxu0 0.0
        %4266 = vmatpush1.msra.mxu0 0.0
        %4267 = vmatprep.subr.mxu0 0.0
        %4268 = vmatpush1.msra.mxu0 0.0
        %4269 = vmatprep.subr.mxu0 0.0
        %4270 = vmatpush1.msra.mxu0 0.0
        %4271 = vmatprep.subr.mxu0 0.0
        %4272 = vmatpush1.msra.mxu0 0.0
        %4273 = vmatprep.subr.mxu0 0.0
        %4274 = vmatpush1.msra.mxu0 0.0
        %4275 = vmatprep.subr.mxu0 0.0
        %4276 = vmatpush1.msra.mxu0 0.0
        %4277 = vmatprep.subr.mxu0 0.0
        %4278 = vmatpush1.msra.mxu0 0.0
        %4279 = vmatprep.subr.mxu0 0.0
        %4280 = vmatpush1.msra.mxu0 0.0
        %4281 = vmatprep.subr.mxu0 0.0
        %4282 = vmatpush1.msra.mxu0 0.0
        %4283 = vmatprep.subr.mxu0 0.0
        %4284 = vmatpush1.msra.mxu0 0.0
        %4285 = vmatprep.subr.mxu0 0.0
        %4286 = vmatpush1.msra.mxu0 0.0
        %4287 = vmatprep.subr.mxu0 0.0
        %4288 = vmatpush1.msra.mxu0 0.0
        %4289 = vmatprep.subr.mxu0 0.0
        %4290 = vmatpush1.msra.mxu0 0.0
        %4291 = vmatprep.subr.mxu0 0.0
        %4292 = vmatpush1.msra.mxu0 0.0
        %4293 = vmatprep.subr.mxu0 0.0
        %4294 = vmatpush1.msra.mxu0 0.0
        %4295 = vmatprep.subr.mxu0 0.0
        %4296 = vmatpush1.msra.mxu0 0.0
        %4297 = vmatprep.subr.mxu0 0.0
        %4298 = vmatpush1.msra.mxu0 0.0
        %4299 = vmatprep.subr.mxu0 0.0
        %4300 = vmatpush1.msra.mxu0 0.0
        %4301 = vmatprep.subr.mxu0 0.0
        %4302 = vmatpush1.msra.mxu0 0.0
        %4303 = vmatprep.subr.mxu0 0.0
        %4304 = vmatpush1.msra.mxu0 0.0
        %4305 = vmatprep.mubr.f32.mxu0 0.0
        %4306 = vmatmul.mubr.f32.gmra.mrb[0].mxu0 %v4239
        %v4307 = vpop.f32.mrb[0].mxu0
        %v4308 = vadd.f32 0.0, %v4307
        %v4309 = vpop.f32.mrb[0].mxu0
        %4310 = vdwg.mxu0
        %v4312 = vsel %vm1801, %v4089, 0
        %4314 = vmatprep.subr.mxu0 0.0
        %4315 = vmatpush1.msra.mxu0 %v2812
        %4316 = vmatprep.subr.mxu0 0.0
        %4317 = vmatpush1.msra.mxu0 0.0
        %4318 = vmatprep.subr.mxu0 0.0
        %4319 = vmatpush1.msra.mxu0 0.0
        %4320 = vmatprep.subr.mxu0 0.0
        %4321 = vmatpush1.msra.mxu0 0.0
        %4322 = vmatprep.subr.mxu0 0.0
        %4323 = vmatpush1.msra.mxu0 0.0
        %4324 = vmatprep.subr.mxu0 0.0
        %4325 = vmatpush1.msra.mxu0 0.0
        %4326 = vmatprep.subr.mxu0 0.0
        %4327 = vmatpush1.msra.mxu0 0.0
        %4328 = vmatprep.subr.mxu0 0.0
        %4329 = vmatpush1.msra.mxu0 0.0
        %4330 = vmatprep.subr.mxu0 0.0
        %4331 = vmatpush1.msra.mxu0 0.0
        %4332 = vmatprep.subr.mxu0 0.0
        %4333 = vmatpush1.msra.mxu0 0.0
        %4334 = vmatprep.subr.mxu0 0.0
        %4335 = vmatpush1.msra.mxu0 0.0
        %4336 = vmatprep.subr.mxu0 0.0
        %4337 = vmatpush1.msra.mxu0 0.0
        %4338 = vmatprep.subr.mxu0 0.0
        %4339 = vmatpush1.msra.mxu0 0.0
        %4340 = vmatprep.subr.mxu0 0.0
        %4341 = vmatpush1.msra.mxu0 0.0
        %4342 = vmatprep.subr.mxu0 0.0
        %4343 = vmatpush1.msra.mxu0 0.0
        %4344 = vmatprep.subr.mxu0 0.0
        %4345 = vmatpush1.msra.mxu0 0.0
        %4346 = vmatprep.subr.mxu0 0.0
        %4347 = vmatpush1.msra.mxu0 0.0
        %4348 = vmatprep.subr.mxu0 0.0
        %4349 = vmatpush1.msra.mxu0 0.0
        %4350 = vmatprep.subr.mxu0 0.0
        %4351 = vmatpush1.msra.mxu0 0.0
        %4352 = vmatprep.subr.mxu0 0.0
        %4353 = vmatpush1.msra.mxu0 0.0
        %4354 = vmatprep.subr.mxu0 0.0
        %4355 = vmatpush1.msra.mxu0 0.0
        %4356 = vmatprep.subr.mxu0 0.0
        %4357 = vmatpush1.msra.mxu0 0.0
        %4358 = vmatprep.subr.mxu0 0.0
        %4359 = vmatpush1.msra.mxu0 0.0
        %4360 = vmatprep.subr.mxu0 0.0
        %4361 = vmatpush1.msra.mxu0 0.0
        %4362 = vmatprep.subr.mxu0 0.0
        %4363 = vmatpush1.msra.mxu0 0.0
        %4364 = vmatprep.subr.mxu0 0.0
        %4365 = vmatpush1.msra.mxu0 0.0
        %4366 = vmatprep.subr.mxu0 0.0
        %4367 = vmatpush1.msra.mxu0 0.0
        %4368 = vmatprep.subr.mxu0 0.0
        %4369 = vmatpush1.msra.mxu0 0.0
        %4370 = vmatprep.subr.mxu0 0.0
        %4371 = vmatpush1.msra.mxu0 0.0
        %4372 = vmatprep.subr.mxu0 0.0
        %4373 = vmatpush1.msra.mxu0 0.0
        %4374 = vmatprep.subr.mxu0 0.0
        %4375 = vmatpush1.msra.mxu0 0.0
        %4376 = vmatprep.subr.mxu0 0.0
        %4377 = vmatpush1.msra.mxu0 0.0
        %4378 = vmatprep.mubr.f32.mxu0 0.0
        %4379 = vmatmul.mubr.f32.gmra.mrb[0].mxu0 %v4312
        %v4380 = vpop.f32.mrb[0].mxu0
        %v4381 = vadd.f32 0.0, %v4380
        %v4382 = vpop.f32.mrb[0].mxu0
        %4383 = vdwg.mxu0
        %v4385 = vsel %vm1801, %v4162, 0
        %4387 = vmatprep.subr.mxu0 0.0
        %4388 = vmatpush1.msra.mxu0 %v2813
        %4389 = vmatprep.subr.mxu0 0.0
        %4390 = vmatpush1.msra.mxu0 0.0
        %4391 = vmatprep.subr.mxu0 0.0
        %4392 = vmatpush1.msra.mxu0 0.0
        %4393 = vmatprep.subr.mxu0 0.0
        %4394 = vmatpush1.msra.mxu0 0.0
        %4395 = vmatprep.subr.mxu0 0.0
        %4396 = vmatpush1.msra.mxu0 0.0
        %4397 = vmatprep.subr.mxu0 0.0
        %4398 = vmatpush1.msra.mxu0 0.0
        %4399 = vmatprep.subr.mxu0 0.0
        %4400 = vmatpush1.msra.mxu0 0.0
        %4401 = vmatprep.subr.mxu0 0.0
        %4402 = vmatpush1.msra.mxu0 0.0
        %4403 = vmatprep.subr.mxu0 0.0
        %4404 = vmatpush1.msra.mxu0 0.0
        %4405 = vmatprep.subr.mxu0 0.0
        %4406 = vmatpush1.msra.mxu0 0.0
        %4407 = vmatprep.subr.mxu0 0.0
        %4408 = vmatpush1.msra.mxu0 0.0
        %4409 = vmatprep.subr.mxu0 0.0
        %4410 = vmatpush1.msra.mxu0 0.0
        %4411 = vmatprep.subr.mxu0 0.0
        %4412 = vmatpush1.msra.mxu0 0.0
        %4413 = vmatprep.subr.mxu0 0.0
        %4414 = vmatpush1.msra.mxu0 0.0
        %4415 = vmatprep.subr.mxu0 0.0
        %4416 = vmatpush1.msra.mxu0 0.0
        %4417 = vmatprep.subr.mxu0 0.0
        %4418 = vmatpush1.msra.mxu0 0.0
        %4419 = vmatprep.subr.mxu0 0.0
        %4420 = vmatpush1.msra.mxu0 0.0
        %4421 = vmatprep.subr.mxu0 0.0
        %4422 = vmatpush1.msra.mxu0 0.0
        %4423 = vmatprep.subr.mxu0 0.0
        %4424 = vmatpush1.msra.mxu0 0.0
        %4425 = vmatprep.subr.mxu0 0.0
        %4426 = vmatpush1.msra.mxu0 0.0
        %4427 = vmatprep.subr.mxu0 0.0
        %4428 = vmatpush1.msra.mxu0 0.0
        %4429 = vmatprep.subr.mxu0 0.0
        %4430 = vmatpush1.msra.mxu0 0.0
        %4431 = vmatprep.subr.mxu0 0.0
        %4432 = vmatpush1.msra.mxu0 0.0
        %4433 = vmatprep.subr.mxu0 0.0
        %4434 = vmatpush1.msra.mxu0 0.0
        %4435 = vmatprep.subr.mxu0 0.0
        %4436 = vmatpush1.msra.mxu0 0.0
        %4437 = vmatprep.subr.mxu0 0.0
        %4438 = vmatpush1.msra.mxu0 0.0
        %4439 = vmatprep.subr.mxu0 0.0
        %4440 = vmatpush1.msra.mxu0 0.0
        %4441 = vmatprep.subr.mxu0 0.0
        %4442 = vmatpush1.msra.mxu0 0.0
        %4443 = vmatprep.subr.mxu0 0.0
        %4444 = vmatpush1.msra.mxu0 0.0
        %4445 = vmatprep.subr.mxu0 0.0
        %4446 = vmatpush1.msra.mxu0 0.0
        %4447 = vmatprep.subr.mxu0 0.0
        %4448 = vmatpush1.msra.mxu0 0.0
        %4449 = vmatprep.subr.mxu0 0.0
        %4450 = vmatpush1.msra.mxu0 0.0
        %4451 = vmatprep.mubr.f32.mxu0 0.0
        %4452 = vmatmul.mubr.f32.gmra.mrb[0].mxu0 %v4385
        %v4453 = vpop.f32.mrb[0].mxu0
        %v4454 = vadd.f32 0.0, %v4453
        %v4455 = vpop.f32.mrb[0].mxu0
        %4456 = vdwg.mxu0
        %v4458 = vsel %vm1801, %v4235, 0
        %4460 = vmatprep.subr.mxu0 0.0
        %4461 = vmatpush1.msra.mxu0 %v2814
        %4462 = vmatprep.subr.mxu0 0.0
        %4463 = vmatpush1.msra.mxu0 0.0
        %4464 = vmatprep.subr.mxu0 0.0
        %4465 = vmatpush1.msra.mxu0 0.0
        %4466 = vmatprep.subr.mxu0 0.0
        %4467 = vmatpush1.msra.mxu0 0.0
        %4468 = vmatprep.subr.mxu0 0.0
        %4469 = vmatpush1.msra.mxu0 0.0
        %4470 = vmatprep.subr.mxu0 0.0
        %4471 = vmatpush1.msra.mxu0 0.0
        %4472 = vmatprep.subr.mxu0 0.0
        %4473 = vmatpush1.msra.mxu0 0.0
        %4474 = vmatprep.subr.mxu0 0.0
        %4475 = vmatpush1.msra.mxu0 0.0
        %4476 = vmatprep.subr.mxu0 0.0
        %4477 = vmatpush1.msra.mxu0 0.0
        %4478 = vmatprep.subr.mxu0 0.0
        %4479 = vmatpush1.msra.mxu0 0.0
        %4480 = vmatprep.subr.mxu0 0.0
        %4481 = vmatpush1.msra.mxu0 0.0
        %4482 = vmatprep.subr.mxu0 0.0
        %4483 = vmatpush1.msra.mxu0 0.0
        %4484 = vmatprep.subr.mxu0 0.0
        %4485 = vmatpush1.msra.mxu0 0.0
        %4486 = vmatprep.subr.mxu0 0.0
        %4487 = vmatpush1.msra.mxu0 0.0
        %4488 = vmatprep.subr.mxu0 0.0
        %4489 = vmatpush1.msra.mxu0 0.0
        %4490 = vmatprep.subr.mxu0 0.0
        %4491 = vmatpush1.msra.mxu0 0.0
        %4492 = vmatprep.subr.mxu0 0.0
        %4493 = vmatpush1.msra.mxu0 0.0
        %4494 = vmatprep.subr.mxu0 0.0
        %4495 = vmatpush1.msra.mxu0 0.0
        %4496 = vmatprep.subr.mxu0 0.0
        %4497 = vmatpush1.msra.mxu0 0.0
        %4498 = vmatprep.subr.mxu0 0.0
        %4499 = vmatpush1.msra.mxu0 0.0
        %4500 = vmatprep.subr.mxu0 0.0
        %4501 = vmatpush1.msra.mxu0 0.0
        %4502 = vmatprep.subr.mxu0 0.0
        %4503 = vmatpush1.msra.mxu0 0.0
        %4504 = vmatprep.subr.mxu0 0.0
        %4505 = vmatpush1.msra.mxu0 0.0
        %4506 = vmatprep.subr.mxu0 0.0
        %4507 = vmatpush1.msra.mxu0 0.0
        %4508 = vmatprep.subr.mxu0 0.0
        %4509 = vmatpush1.msra.mxu0 0.0
        %4510 = vmatprep.subr.mxu0 0.0
        %4511 = vmatpush1.msra.mxu0 0.0
        %4512 = vmatprep.subr.mxu0 0.0
        %4513 = vmatpush1.msra.mxu0 0.0
        %4514 = vmatprep.subr.mxu0 0.0
        %4515 = vmatpush1.msra.mxu0 0.0
        %4516 = vmatprep.subr.mxu0 0.0
        %4517 = vmatpush1.msra.mxu0 0.0
        %4518 = vmatprep.subr.mxu0 0.0
        %4519 = vmatpush1.msra.mxu0 0.0
        %4520 = vmatprep.subr.mxu0 0.0
        %4521 = vmatpush1.msra.mxu0 0.0
        %4522 = vmatprep.subr.mxu0 0.0
        %4523 = vmatpush1.msra.mxu0 0.0
        %4524 = vmatprep.mubr.f32.mxu0 0.0
        %4525 = vmatmul.mubr.f32.gmra.mrb[0].mxu0 %v4458
        %v4526 = vpop.f32.mrb[0].mxu0
        %v4527 = vadd.f32 0.0, %v4526
        %v4528 = vpop.f32.mrb[0].mxu0
        %4529 = vdwg.mxu0
        %v4531 = vsel %vm1801, %v4308, 0
        %4533 = vmatprep.subr.mxu0 0.0
        %4534 = vmatpush1.msra.mxu0 %v2815
        %4535 = vmatprep.subr.mxu0 0.0
        %4536 = vmatpush1.msra.mxu0 0.0
        %4537 = vmatprep.subr.mxu0 0.0
        %4538 = vmatpush1.msra.mxu0 0.0
        %4539 = vmatprep.subr.mxu0 0.0
        %4540 = vmatpush1.msra.mxu0 0.0
        %4541 = vmatprep.subr.mxu0 0.0
        %4542 = vmatpush1.msra.mxu0 0.0
        %4543 = vmatprep.subr.mxu0 0.0
        %4544 = vmatpush1.msra.mxu0 0.0
        %4545 = vmatprep.subr.mxu0 0.0
        %4546 = vmatpush1.msra.mxu0 0.0
        %4547 = vmatprep.subr.mxu0 0.0
        %4548 = vmatpush1.msra.mxu0 0.0
        %4549 = vmatprep.subr.mxu0 0.0
        %4550 = vmatpush1.msra.mxu0 0.0
        %4551 = vmatprep.subr.mxu0 0.0
        %4552 = vmatpush1.msra.mxu0 0.0
        %4553 = vmatprep.subr.mxu0 0.0
        %4554 = vmatpush1.msra.mxu0 0.0
        %4555 = vmatprep.subr.mxu0 0.0
        %4556 = vmatpush1.msra.mxu0 0.0
        %4557 = vmatprep.subr.mxu0 0.0
        %4558 = vmatpush1.msra.mxu0 0.0
        %4559 = vmatprep.subr.mxu0 0.0
        %4560 = vmatpush1.msra.mxu0 0.0
        %4561 = vmatprep.subr.mxu0 0.0
        %4562 = vmatpush1.msra.mxu0 0.0
        %4563 = vmatprep.subr.mxu0 0.0
        %4564 = vmatpush1.msra.mxu0 0.0
        %4565 = vmatprep.subr.mxu0 0.0
        %4566 = vmatpush1.msra.mxu0 0.0
        %4567 = vmatprep.subr.mxu0 0.0
        %4568 = vmatpush1.msra.mxu0 0.0
        %4569 = vmatprep.subr.mxu0 0.0
        %4570 = vmatpush1.msra.mxu0 0.0
        %4571 = vmatprep.subr.mxu0 0.0
        %4572 = vmatpush1.msra.mxu0 0.0
        %4573 = vmatprep.subr.mxu0 0.0
        %4574 = vmatpush1.msra.mxu0 0.0
        %4575 = vmatprep.subr.mxu0 0.0
        %4576 = vmatpush1.msra.mxu0 0.0
        %4577 = vmatprep.subr.mxu0 0.0
        %4578 = vmatpush1.msra.mxu0 0.0
        %4579 = vmatprep.subr.mxu0 0.0
        %4580 = vmatpush1.msra.mxu0 0.0
        %4581 = vmatprep.subr.mxu0 0.0
        %4582 = vmatpush1.msra.mxu0 0.0
        %4583 = vmatprep.subr.mxu0 0.0
        %4584 = vmatpush1.msra.mxu0 0.0
        %4585 = vmatprep.subr.mxu0 0.0
        %4586 = vmatpush1.msra.mxu0 0.0
        %4587 = vmatprep.subr.mxu0 0.0
        %4588 = vmatpush1.msra.mxu0 0.0
        %4589 = vmatprep.subr.mxu0 0.0
        %4590 = vmatpush1.msra.mxu0 0.0
        %4591 = vmatprep.subr.mxu0 0.0
        %4592 = vmatpush1.msra.mxu0 0.0
        %4593 = vmatprep.subr.mxu0 0.0
        %4594 = vmatpush1.msra.mxu0 0.0
        %4595 = vmatprep.subr.mxu0 0.0
        %4596 = vmatpush1.msra.mxu0 0.0
        %4597 = vmatprep.mubr.f32.mxu0 0.0
        %4598 = vmatmul.mubr.f32.gmra.mrb[0].mxu0 %v4531
        %v4599 = vpop.f32.mrb[0].mxu0
        %v4600 = vadd.f32 0.0, %v4599
        %v4601 = vpop.f32.mrb[0].mxu0
        %4602 = vdwg.mxu0
        %v4603 = vsel %vm957, %v4381, 0.0
        %v4604 = vsel %vm957, %v4454, 0.0
        %v4605 = vadd.f32 %v4603, %v4604
        %v4606 = vsel %vm957, %v4527, 0.0
        %v4607 = vadd.f32 %v4605, %v4606
        %v4608 = vsel %vm957, %v4600, 0.0
        %v4609 = vadd.f32 %v4607, %v4608
        %v4610 = vadd.f32 %v2763, %v4609
        %v4611 = vsel %vm957, %v4610, 0.0
        %4612 = vadd.xlane.f32.xlu0 %v4611
        %v4613 = vpop.xlane.xlu0 %4612
        %v4614 = vmul.f32 %v4613, %v2751
        %v4615 = vsub.f32 %v4610, %v4614
        %v4616 = vmul.f32 %v4615, %v4615
        %v4617 = vsel %vm957, %v4616, 0.0
        %4618 = vadd.xlane.f32.xlu0 %v4617
        %v4619 = vpop.xlane.xlu0 %4618
        %v4620 = vmul.f32 %v4619, %v2751
        %v4621 = vadd.f32 %v4620, 1e-05
        %v4622 = vrsqrt.pop %v4621
        %v4623 = vmul.f32 %v4615, %v4622
        %v4624 = vmul.f32 %v4623, %v889
        %v4625 = vadd.f32 %v4624, %v896
        %v4626 = vld [vmem:[%s855] sm:$0xff]
        %v4627 = vld [vmem:[%s855 + $0x8] sm:$0xff]
        %v4628 = vld [vmem:[%s855 + $0x10] sm:$0xff]
        %v4629 = vld [vmem:[%s855 + $0x18] sm:$0xff]
        %v4630 = vld [vmem:[%s858] sm:$0x1]
        %v4632 = vlaneseq
        %v4633 = vshrl.u32 %v4632, 7
        %v4634 = vsub.s32 0, %v4633
        %v4635 = vrot.slane %v4630, %v4634
        %v4638 = vsel %vm957, %v4625, 0
        %4640 = vmatprep.subr.mxu0 0.0
        %4641 = vmatpush1.msra.mxu0 %v4626
        %4642 = vmatprep.subr.mxu0 0.0
        %4643 = vmatpush1.msra.mxu0 %v4627
        %4644 = vmatprep.subr.mxu0 0.0
        %4645 = vmatpush1.msra.mxu0 %v4628
        %4646 = vmatprep.subr.mxu0 0.0
        %4647 = vmatpush1.msra.mxu0 %v4629
        %4648 = vmatprep.subr.mxu0 0.0
        %4649 = vmatpush1.msra.mxu0 0.0
        %4650 = vmatprep.subr.mxu0 0.0
        %4651 = vmatpush1.msra.mxu0 0.0
        %4652 = vmatprep.subr.mxu0 0.0
        %4653 = vmatpush1.msra.mxu0 0.0
        %4654 = vmatprep.subr.mxu0 0.0
        %4655 = vmatpush1.msra.mxu0 0.0
        %4656 = vmatprep.subr.mxu0 0.0
        %4657 = vmatpush1.msra.mxu0 0.0
        %4658 = vmatprep.subr.mxu0 0.0
        %4659 = vmatpush1.msra.mxu0 0.0
        %4660 = vmatprep.subr.mxu0 0.0
        %4661 = vmatpush1.msra.mxu0 0.0
        %4662 = vmatprep.subr.mxu0 0.0
        %4663 = vmatpush1.msra.mxu0 0.0
        %4664 = vmatprep.subr.mxu0 0.0
        %4665 = vmatpush1.msra.mxu0 0.0
        %4666 = vmatprep.subr.mxu0 0.0
        %4667 = vmatpush1.msra.mxu0 0.0
        %4668 = vmatprep.subr.mxu0 0.0
        %4669 = vmatpush1.msra.mxu0 0.0
        %4670 = vmatprep.subr.mxu0 0.0
        %4671 = vmatpush1.msra.mxu0 0.0
        %4672 = vmatprep.subr.mxu0 0.0
        %4673 = vmatpush1.msra.mxu0 0.0
        %4674 = vmatprep.subr.mxu0 0.0
        %4675 = vmatpush1.msra.mxu0 0.0
        %4676 = vmatprep.subr.mxu0 0.0
        %4677 = vmatpush1.msra.mxu0 0.0
        %4678 = vmatprep.subr.mxu0 0.0
        %4679 = vmatpush1.msra.mxu0 0.0
        %4680 = vmatprep.subr.mxu0 0.0
        %4681 = vmatpush1.msra.mxu0 0.0
        %4682 = vmatprep.subr.mxu0 0.0
        %4683 = vmatpush1.msra.mxu0 0.0
        %4684 = vmatprep.subr.mxu0 0.0
        %4685 = vmatpush1.msra.mxu0 0.0
        %4686 = vmatprep.subr.mxu0 0.0
        %4687 = vmatpush1.msra.mxu0 0.0
        %4688 = vmatprep.subr.mxu0 0.0
        %4689 = vmatpush1.msra.mxu0 0.0
        %4690 = vmatprep.subr.mxu0 0.0
        %4691 = vmatpush1.msra.mxu0 0.0
        %4692 = vmatprep.subr.mxu0 0.0
        %4693 = vmatpush1.msra.mxu0 0.0
        %4694 = vmatprep.subr.mxu0 0.0
        %4695 = vmatpush1.msra.mxu0 0.0
        %4696 = vmatprep.subr.mxu0 0.0
        %4697 = vmatpush1.msra.mxu0 0.0
        %4698 = vmatprep.subr.mxu0 0.0
        %4699 = vmatpush1.msra.mxu0 0.0
        %4700 = vmatprep.subr.mxu0 0.0
        %4701 = vmatpush1.msra.mxu0 0.0
        %4702 = vmatprep.subr.mxu0 0.0
        %4703 = vmatpush1.msra.mxu0 0.0
        %4704 = vmatprep.mubr.f32.mxu0 0.0
        %4705 = vmatmul.mubr.f32.gmra.mrb[0].mxu0 %v4638
        %v4706 = vpop.f32.mrb[0].mxu0
        %v4707 = vadd.f32 %v4635, %v4706
        %v4708 = vpop.f32.mrb[0].mxu0
        %4709 = vdwg.mxu0
        %v4710 = vmax.f32 %v4707, 0.0
        %v4711 = vld [vmem:[%s863] sm:$0xff]
        %v4712 = vld [vmem:[%s863 + $0x8] sm:$0xff]
        %v4713 = vld [vmem:[%s863 + $0x10] sm:$0xff]
        %v4714 = vld [vmem:[%s863 + $0x18] sm:$0xff]
        %v4715 = vld [vmem:[%s863 + $0x20] sm:$0xff]
        %v4716 = vld [vmem:[%s863 + $0x28] sm:$0xff]
        %v4717 = vld [vmem:[%s863 + $0x30] sm:$0xff]
        %v4718 = vld [vmem:[%s863 + $0x38] sm:$0xff]
        %v4719 = vld [vmem:[%s863 + $0x40] sm:$0xff]
        %v4720 = vld [vmem:[%s863 + $0x48] sm:$0xff]
        %v4721 = vld [vmem:[%s863 + $0x50] sm:$0xff]
        %v4722 = vld [vmem:[%s863 + $0x58] sm:$0xff]
        %v4723 = vld [vmem:[%s863 + $0x60] sm:$0xff]
        %v4724 = vld [vmem:[%s863 + $0x68] sm:$0xff]
        %v4725 = vld [vmem:[%s863 + $0x70] sm:$0xff]
        %v4726 = vld [vmem:[%s863 + $0x78] sm:$0xff]
        %v4727 = vld [vmem:[%s866] sm:$0x1]
        %v4729 = vlaneseq
        %v4730 = vshrl.u32 %v4729, 7
        %v4731 = vsub.s32 0, %v4730
        %v4732 = vrot.slane %v4727, %v4731
        %4734 = vmatprep.subr.mxu0 0.0
        %4735 = vmatpush1.msra.mxu0 %v4711
        %4736 = vmatprep.subr.mxu0 0.0
        %4737 = vmatpush1.msra.mxu0 %v4712
        %4738 = vmatprep.subr.mxu0 0.0
        %4739 = vmatpush1.msra.mxu0 %v4713
        %4740 = vmatprep.subr.mxu0 0.0
        %4741 = vmatpush1.msra.mxu0 %v4714
        %4742 = vmatprep.subr.mxu0 0.0
        %4743 = vmatpush1.msra.mxu0 %v4715
        %4744 = vmatprep.subr.mxu0 0.0
        %4745 = vmatpush1.msra.mxu0 %v4716
        %4746 = vmatprep.subr.mxu0 0.0
        %4747 = vmatpush1.msra.mxu0 %v4717
        %4748 = vmatprep.subr.mxu0 0.0
        %4749 = vmatpush1.msra.mxu0 %v4718
        %4750 = vmatprep.subr.mxu0 0.0
        %4751 = vmatpush1.msra.mxu0 %v4719
        %4752 = vmatprep.subr.mxu0 0.0
        %4753 = vmatpush1.msra.mxu0 %v4720
        %4754 = vmatprep.subr.mxu0 0.0
        %4755 = vmatpush1.msra.mxu0 %v4721
        %4756 = vmatprep.subr.mxu0 0.0
        %4757 = vmatpush1.msra.mxu0 %v4722
        %4758 = vmatprep.subr.mxu0 0.0
        %4759 = vmatpush1.msra.mxu0 %v4723
        %4760 = vmatprep.subr.mxu0 0.0
        %4761 = vmatpush1.msra.mxu0 %v4724
        %4762 = vmatprep.subr.mxu0 0.0
        %4763 = vmatpush1.msra.mxu0 %v4725
        %4764 = vmatprep.subr.mxu0 0.0
        %4765 = vmatpush1.msra.mxu0 %v4726
        %4766 = vmatprep.subr.mxu0 0.0
        %4767 = vmatpush1.msra.mxu0 0.0
        %4768 = vmatprep.subr.mxu0 0.0
        %4769 = vmatpush1.msra.mxu0 0.0
        %4770 = vmatprep.subr.mxu0 0.0
        %4771 = vmatpush1.msra.mxu0 0.0
        %4772 = vmatprep.subr.mxu0 0.0
        %4773 = vmatpush1.msra.mxu0 0.0
        %4774 = vmatprep.subr.mxu0 0.0
        %4775 = vmatpush1.msra.mxu0 0.0
        %4776 = vmatprep.subr.mxu0 0.0
        %4777 = vmatpush1.msra.mxu0 0.0
        %4778 = vmatprep.subr.mxu0 0.0
        %4779 = vmatpush1.msra.mxu0 0.0
        %4780 = vmatprep.subr.mxu0 0.0
        %4781 = vmatpush1.msra.mxu0 0.0
        %4782 = vmatprep.subr.mxu0 0.0
        %4783 = vmatpush1.msra.mxu0 0.0
        %4784 = vmatprep.subr.mxu0 0.0
        %4785 = vmatpush1.msra.mxu0 0.0
        %4786 = vmatprep.subr.mxu0 0.0
        %4787 = vmatpush1.msra.mxu0 0.0
        %4788 = vmatprep.subr.mxu0 0.0
        %4789 = vmatpush1.msra.mxu0 0.0
        %4790 = vmatprep.subr.mxu0 0.0
        %4791 = vmatpush1.msra.mxu0 0.0
        %4792 = vmatprep.subr.mxu0 0.0
        %4793 = vmatpush1.msra.mxu0 0.0
        %4794 = vmatprep.subr.mxu0 0.0
        %4795 = vmatpush1.msra.mxu0 0.0
        %4796 = vmatprep.subr.mxu0 0.0
        %4797 = vmatpush1.msra.mxu0 0.0
        %4798 = vmatprep.mubr.f32.mxu0 0.0
        %4799 = vmatmul.mubr.f32.gmra.mrb[0].mxu0 %v4710
        %v4800 = vpop.f32.mrb[0].mxu0
        %v4801 = vadd.f32 %v4732, %v4800
        %v4802 = vpop.f32.mrb[0].mxu0
        %4803 = vdwg.mxu0
        %v4804 = vadd.f32 %v4625, %v4801
        %v4805 = vsel %vm957, %v4804, 0.0
        %4806 = vadd.xlane.f32.xlu0 %v4805
        %v4807 = vpop.xlane.xlu0 %4806
        %v4808 = vmul.f32 %v4807, %v2751
        %v4809 = vsub.f32 %v4804, %v4808
        %v4810 = vmul.f32 %v4809, %v4809
        %v4811 = vsel %vm957, %v4810, 0.0
        %4812 = vadd.xlane.f32.xlu0 %v4811
        %v4813 = vpop.xlane.xlu0 %4812
        %v4814 = vmul.f32 %v4813, %v2751
        %v4815 = vadd.f32 %v4814, 1e-05
        %v4816 = vrsqrt.pop %v4815
        %v4817 = vmul.f32 %v4809, %v4816
        %v4818 = vmul.f32 %v4817, %v889
        %v4819 = vadd.f32 %v4818, %v896
        %4820 = vst.msk [vmem:[#allocation2] sm:$0xff] %vm957, %v4819
        %4821 = vst.msk [vmem:[%s798] sm:$0xff] %vm957, %v4819
        %s4822 = sand.u32 %s515, 1
        %s4823 = scalar_lea.sflag [#allocation4], %s4822
        %s4824 = sand.u32 %s515, 1
        %s4825 = smul.addr %s4824, 8
        %s4826 = scalar_lea.vmem [#allocation3], %s4825
        // Predicated region
        $region97: #{transformer_decoder_pallas.1} parent=91 // pred_check
          %p4827 = pneg %p525
        $region98: #{transformer_decoder_pallas.1} parent=91 // pred_check_branch
          %4829 = sbr.rel (%p4827) target = $region100
        $region99: #{transformer_decoder_pallas.1} parent=91 // pred_region
          %s4831 = ssub.s32 128, 128
          %4832 = vsyncadd %s4823, %s4831
          %s4833 = smul.addr %s36, 128
          %s4834 = scalar_lea.hbm %s18, %s4833
          %s4836 = sshll.u32 %s4826, 4
          %s4837 = int_to_ptr.vmem [resolvable:$true] %s4836
          %4839 = dma.vmem_to_hbm [thread:$0]  %s4837, 128, %s4834, %s4823
        $region100: #{transformer_decoder_pallas.1} parent=91 // pred_fallthru
          _
      $region92: #{transformer_decoder_pallas.1} parent=5 // pred_fallthru
        _
      %p4840 = scmp.le.s32.totalorder 2, %s27
      // Predicated region
      $region101: #{transformer_decoder_pallas.1} parent=5 // pred_check
        %p4841 = pneg %p4840
      $region102: #{transformer_decoder_pallas.1} parent=5 // pred_check_branch
        %4843 = sbr.rel (%p4841) target = $region104
      $region103: #{transformer_decoder_pallas.1} parent=5 // pred_region
        %s4844 = ssub.s32 %s27, 2
        // Predicated region
        $region105: #{transformer_decoder_pallas.1} parent=103 // pred_check
          %p4845 = pneg %p531
        $region106: #{transformer_decoder_pallas.1} parent=103 // pred_check_branch
          %4847 = sbr.rel (%p4845) target = $region108
        $region107: #{transformer_decoder_pallas.1} parent=103 // pred_region
          %s4848 = sand.u32 %s516, 1
          %s4849 = scalar_lea.sflag [#allocation4], %s4848
          %s4850 = sand.u32 %s516, 1
          %s4851 = smul.addr %s4850, 8
          %s4852 = scalar_lea.vmem [#allocation3], %s4851
          %4853 = dma.done %s4849, 128
        $region108: #{transformer_decoder_pallas.1} parent=103 // pred_fallthru
          _
      $region104: #{transformer_decoder_pallas.1} parent=5 // pred_fallthru
        _
    $region6: #{transformer_decoder_pallas.1} parent=1 // loop_footer
      %s31 = sadd.s32 1, %s27
    $region7: #{transformer_decoder_pallas.1} parent=1 // loop_footer_branch
      %26 = sbr.rel target = $region3
    $region8: #{transformer_decoder_pallas.1} parent=1 // loop_exit
      _
    %4854 = vsyncpa [#allocation4], 1
    %s4855 = scalar_lea.sflag [#allocation4], 1
    %4856 = vsyncpa %s4855, 1

</llo_original>
